<compile_context>
chip_gen: v6e
topology: v6e:2x2x1
jax: 0.10.0
libtpu: 0.0.40
codegen_flags: <defaults>
</compile_context>

<pallas_src>
import numpy as np
import jax
import jax.numpy as jnp
from jax.experimental import pallas as pl
from jax.experimental.pallas import tpu as pltpu

POOLED = 7          # roi_align output_size
IMG_SIZE = 1024     # spatial_scale = H / 1024 (as in the module)
NUM_CLS = 2         # cls_score: Linear(1024, 2)
NUM_BOX = 4         # bbox_pred: Linear(1024, 4)
HEAD_PAD = 128      # lane-dense padded width for the fused head output


# ----------------------------- Pallas kernels ------------------------------

def roi_matmul_kernel(w_ref, f_ref, o_ref):
    """Single-block bias-free matmul: pooled ROIs = W_bilinear @ feat_stack."""
    o_ref[...] = jnp.dot(w_ref[...], f_ref[...],
                         preferred_element_type=jnp.float32).astype(o_ref.dtype)


def roi_matmul_pallas(wmat, feat):
    """One launch for ALL (level, image) ROI-aligns.

    bf16 operands, f32 MXU accumulation, bf16 output (directly consumed by the
    bf16 box head — no extra convert/copy, half the intermediate writeback)."""
    M, K = wmat.shape
    K2, C = feat.shape
    assert K == K2
    flops = 2 * M * K * C
    bytes_accessed = (M * K + K * C + M * C) * 2
    return pl.pallas_call(
        roi_matmul_kernel,
        out_shape=jax.ShapeDtypeStruct((M, C), jnp.bfloat16),
        grid_spec=pltpu.PrefetchScalarGridSpec(
            num_scalar_prefetch=0,
            grid=(1,),
            in_specs=[pl.BlockSpec((M, K), lambda i: (0, 0)),
                      pl.BlockSpec((K, C), lambda i: (0, 0))],
            out_specs=pl.BlockSpec((M, C), lambda i: (0, 0))),
        compiler_params=pltpu.CompilerParams(
            dimension_semantics=("arbitrary",)),
        cost_estimate=pl.CostEstimate(flops=flops, transcendentals=0,
                                      bytes_accessed=bytes_accessed),
    )(wmat.astype(jnp.bfloat16), feat.astype(jnp.bfloat16))


def fused_head_kernel(x_ref, w1_ref, b1_ref, w2_ref, b2_ref, wcb_ref, bcb_ref,
                      o_ref, acc_ref):
    """acc += x[:, k-tile] @ w1[k-tile, :]; on the final K step:
         h   = acc + b1
         h2  = h @ w2 + b2
         out = [softmax(h2 @ Wc + bc) | h2 @ Wb + bb | zeros]   (lane-dense 128)
    """
    k = pl.program_id(0)

    @pl.when(k == 0)
    def _():
        acc_ref[...] = jnp.zeros_like(acc_ref)

    acc_ref[...] += jnp.dot(x_ref[...], w1_ref[...],
                            preferred_element_type=jnp.float32)

    @pl.when(k == pl.num_programs(0) - 1)
    def _():
        h = (acc_ref[...] + b1_ref[...]).astype(jnp.bfloat16)
        h2 = (jnp.dot(h, w2_ref[...], preferred_element_type=jnp.float32)
              + b2_ref[...]).astype(jnp.bfloat16)
        logits = (jnp.dot(h2, wcb_ref[...], preferred_element_type=jnp.float32)
                  + bcb_ref[...])
        col = jax.lax.broadcasted_iota(jnp.int32, logits.shape, 1)
        is_cls = col < NUM_CLS
        masked = jnp.where(is_cls, logits, -jnp.inf)
        m = jnp.max(masked, axis=-1, keepdims=True)
        e = jnp.where(is_cls, jnp.exp(masked - m), 0.0)
        denom = jnp.sum(e, axis=-1, keepdims=True)
        probs = e * pl.reciprocal(denom, approx=True)
        o_ref[...] = jnp.where(is_cls, probs, logits).astype(o_ref.dtype)


def _pick_tk(K, n_cols, max_tile_bytes=13 * (1 << 20)):
    """Largest multiple-of-128 divisor of K whose bf16 (tk, n_cols) weight
    tile stays under max_tile_bytes (double-buffered w1 stays ~26 MB, which
    fits every generation once vmem_limit_bytes is raised)."""
    max_tk = max(128, max_tile_bytes // (n_cols * 2))
    best = 0
    for tk in range(128, K + 1, 128):
        if K % tk == 0 and tk <= max_tk:
            best = tk
    assert best > 0, f"K={K} needs a multiple-of-128 divisor <= {max_tk}"
    return best


def fused_head_pallas(x, w1, b1, w2, b2, wcb, bcb):
    """Fused box_head + cls_score + bbox_pred + softmax, one pallas_call."""
    M, K = x.shape
    Kw, N1 = w1.shape
    assert K == Kw
    P = wcb.shape[1]
    tk = _pick_tk(K, N1)          # K=12544 -> tk=6272, nk=2
    nk = K // tk
    flops = 2 * M * (K * N1 + N1 * N1 + N1 * P)
    bytes_accessed = ((M * K + K * N1 + N1 * N1 + N1 * P) * 2
                      + (2 * N1 + P) * 4 + M * P * 4)
    return pl.pallas_call(
        fused_head_kernel,
        out_shape=jax.ShapeDtypeStruct((M, P), jnp.float32),
        grid_spec=pltpu.PrefetchScalarGridSpec(
            num_scalar_prefetch=0,
            grid=(nk,),
            in_specs=[pl.BlockSpec((M, tk), lambda k: (0, k)),
                      pl.BlockSpec((tk, N1), lambda k: (k, 0)),
                      pl.BlockSpec((1, N1), lambda k: (0, 0)),
                      pl.BlockSpec((N1, N1), lambda k: (0, 0)),
                      pl.BlockSpec((1, N1), lambda k: (0, 0)),
                      pl.BlockSpec((N1, P), lambda k: (0, 0)),
                      pl.BlockSpec((1, P), lambda k: (0, 0))],
            out_specs=pl.BlockSpec((M, P), lambda k: (0, 0)),
            scratch_shapes=[pltpu.VMEM((M, N1), jnp.float32)]),
        compiler_params=pltpu.CompilerParams(
            dimension_semantics=("arbitrary",),
            vmem_limit_bytes=48 * 1024 * 1024),
        cost_estimate=pl.CostEstimate(flops=flops, transcendentals=M * P,
                                      bytes_accessed=bytes_accessed),
    )(x, w1, b1, w2, b2, wcb, bcb)


# ------------------- ROI-Align as precomputed weight matmul -----------------
# Exact torchvision.ops.roi_align semantics (aligned=False, sampling_ratio=-1):
# bilinear sampling weights are computed on the host from concrete proposal
# boxes, producing W s.t. roi = W @ feat_flat.
# TODO(synk): requires concrete host-side boxes; does not work under jit of
# the proposals (same limitation as torchvision's dynamic sampling grid).
# TODO(synk): vectorize this Python triple loop (numpy) for realistic ROI
# counts; at 16 ROIs it is negligible.

def roi_align_weights(boxes, H, W, spatial_scale, pooled=POOLED):
    n = boxes.shape[0]
    Wmat = np.zeros((n, pooled, pooled, H, W), dtype=np.float32)
    for r in range(n):
        x1, y1, x2, y2 = [float(v) for v in boxes[r]]
        roi_start_w = x1 * spatial_scale
        roi_start_h = y1 * spatial_scale
        roi_end_w = x2 * spatial_scale
        roi_end_h = y2 * spatial_scale
        roi_w = max(roi_end_w - roi_start_w, 1.0)
        roi_h = max(roi_end_h - roi_start_h, 1.0)
        bin_h = roi_h / pooled
        bin_w = roi_w / pooled
        grid_h = int(np.ceil(roi_h / pooled))
        grid_w = int(np.ceil(roi_w / pooled))
        count = max(grid_h * grid_w, 1)
        inv = 1.0 / count
        for ph in range(pooled):
            for pw in range(pooled):
                for iy in range(grid_h):
                    y = roi_start_h + ph * bin_h + (iy + 0.5) * bin_h / grid_h
                    for ix in range(grid_w):
                        x = roi_start_w + pw * bin_w + (ix + 0.5) * bin_w / grid_w
                        if y < -1.0 or y > H or x < -1.0 or x > W:
                            continue
                        yy = max(y, 0.0)
                        xx = max(x, 0.0)
                        y_low = int(yy)
                        x_low = int(xx)
                        if y_low >= H - 1:
                            y_low = y_high = H - 1
                            yy = float(y_low)
                        else:
                            y_high = y_low + 1
                        if x_low >= W - 1:
                            x_low = x_high = W - 1
                            xx = float(x_low)
                        else:
                            x_high = x_low + 1
                        ly = yy - y_low
                        lx = xx - x_low
                        hy = 1.0 - ly
                        hx = 1.0 - lx
                        Wmat[r, ph, pw, y_low, x_low] += hy * hx * inv
                        Wmat[r, ph, pw, y_low, x_high] += hy * lx * inv
                        Wmat[r, ph, pw, y_high, x_low] += ly * hx * inv
                        Wmat[r, ph, pw, y_high, x_high] += ly * lx * inv
    return Wmat.reshape(n * pooled * pooled, H * W)


def build_roi_align_operands(features, proposals):
    """Assemble ONE block-diagonal bilinear-weight matrix
    [sum(n*49), sum(B*H*W)] and the matching stacked feature rows
    [sum(B*H*W), C] so the whole multi-level ROI-align is a single matmul
    launch.  Row order is (level, image, roi, ph, pw) — identical to the torch
    module's `torch.cat(roi, dim=0)` order."""
    wmats, feats = [], []
    for feat, props in zip(features, proposals):
        B, C, H, W = feat.shape
        spatial_scale = H / IMG_SIZE
        for img in range(B):
            boxes = np.asarray(props[img], dtype=np.float32)
            wmats.append(roi_align_weights(boxes, H, W, spatial_scale))
            feats.append(jnp.transpose(feat[img], (1, 2, 0)).reshape(H * W, C))
    M = sum(w.shape[0] for w in wmats)
    K = sum(w.shape[1] for w in wmats)
    wbig = np.zeros((M, K), np.float32)
    r = c = 0
    for w in wmats:
        wbig[r:r + w.shape[0], c:c + w.shape[1]] = w
        r += w.shape[0]
        c += w.shape[1]
    return jnp.asarray(wbig), jnp.concatenate(feats, axis=0)


# ------------------------------- RoIHead -----------------------------------

def init_params(key):
    def lin(k, fan_in, fan_out, scale):
        kw, kb = jax.random.split(k)
        w = jax.random.normal(kw, (fan_in, fan_out), jnp.float32) * scale
        b = jax.random.normal(kb, (fan_out,), jnp.float32) * 0.01
        return w, b
    k1, k2, k3, k4 = jax.random.split(key, 4)
    w1, b1 = lin(k1, 12544, 1024, 0.01)    # box_head[0]: Linear(12544, 1024)
    w2, b2 = lin(k2, 1024, 1024, 0.02)     # box_head[1]: Linear(1024, 1024)
    wc, bc = lin(k3, 1024, NUM_CLS, 0.02)  # cls_score:  Linear(1024, 2)
    wb, bb = lin(k4, 1024, NUM_BOX, 0.02)  # bbox_pred:  Linear(1024, 4)
    return dict(w1=w1, b1=b1, w2=w2, b2=b2, wc=wc, bc=bc, wb=wb, bb=bb)


def prepare_inference_params(params, channels=256, pooled=POOLED):
    """One-time host-side weight prep:
       * permute w1 rows from torch's NCHW-flatten (c,ph,pw) order to the
         kernel's (ph,pw,c) order (so no pooled-ROI transpose is needed)
       * concatenate + zero-pad cls/box weights to a lane-dense (1024, 128)
       * cast all matmul weights to bf16."""
    hidden = params['w1'].shape[1]
    w1p = jnp.transpose(params['w1'].reshape(channels, pooled, pooled, hidden),
                        (1, 2, 0, 3)).reshape(pooled * pooled * channels, hidden)
    wcb = jnp.zeros((hidden, HEAD_PAD), jnp.float32)
    wcb = wcb.at[:, :NUM_CLS].set(params['wc'])
    wcb = wcb.at[:, NUM_CLS:NUM_CLS + NUM_BOX].set(params['wb'])
    bcb = jnp.zeros((1, HEAD_PAD), jnp.float32)
    bcb = bcb.at[0, :NUM_CLS].set(params['bc'])
    bcb = bcb.at[0, NUM_CLS:NUM_CLS + NUM_BOX].set(params['bb'])
    return dict(
        w1p=w1p.astype(jnp.bfloat16),
        b1=params['b1'].reshape(1, hidden).astype(jnp.float32),
        w2=params['w2'].astype(jnp.bfloat16),
        b2=params['b2'].reshape(1, hidden).astype(jnp.float32),
        wcb=wcb.astype(jnp.bfloat16),
        bcb=bcb)


def roi_head_forward(prepared, features, proposals):
    """Eval-mode RoIHead.forward.  Two pallas_calls total."""
    wbig, feat_stack = build_roi_align_operands(features, proposals)
    roi = roi_matmul_pallas(wbig, feat_stack)           # [N*49, C] bf16
    n49, C = roi.shape
    N = n49 // (POOLED * POOLED)
    # Keep the contiguous (ph, pw, c) flatten; w1 was row-permuted to match.
    x = roi.reshape(N, POOLED * POOLED * C)             # [N, 12544] bf16
    out = fused_head_pallas(x, prepared['w1p'], prepared['b1'],
                            prepared['w2'], prepared['b2'],
                            prepared['wcb'], prepared['bcb'])   # [N, 128] f32
    cls_score = out[:, :NUM_CLS]
    bbox_pred = out[:, NUM_CLS:NUM_CLS + NUM_BOX]
    # TODO(synk): box_util.apply_deltas on concatenated proposals and the
    # training branch (label_proposals / sample_anchors / compute_loss) depend
    # on external box_util + dynamic-shape sampling and are not implemented.
    detections = {'boxes': bbox_pred, 'labels': cls_score}
    losses = {}
    return detections, losses


def roi_head_reference(params, features, proposals):
    """Plain-jnp reference of the same math (bf16 operands, f32 accumulation),
    using per-(level,image) ROI matmuls, torch's NCHW flatten and the original
    (un-permuted, un-fused, un-padded) weights plus exact softmax — verifies
    the block-diagonal packing, weight permutation and head fusion."""
    def mmb(a, b):
        return jnp.dot(a.astype(jnp.bfloat16), b.astype(jnp.bfloat16),
                       preferred_element_type=jnp.float32)
    rois = []
    for feat, props in zip(features, proposals):
        B, C, H, W = feat.shape
        spatial_scale = H / IMG_SIZE
        for img in range(B):
            boxes = np.asarray(props[img], dtype=np.float32)
            Wmat = jnp.asarray(roi_align_weights(boxes, H, W, spatial_scale))
            feat_flat = jnp.transpose(feat[img], (1, 2, 0)).reshape(H * W, C)
            rois.append(mmb(Wmat, feat_flat))
    roi = jnp.concatenate(rois, axis=0)                 # [N*49, C] f32
    n49, C = roi.shape
    N = n49 // (POOLED * POOLED)
    x = roi.reshape(N, POOLED, POOLED, C).transpose(0, 3, 1, 2).reshape(N, -1)
    x = (mmb(x, params['w1']) + params['b1']).astype(jnp.bfloat16)
    h = (mmb(x, params['w2']) + params['b2']).astype(jnp.bfloat16)
    cls = jax.nn.softmax(mmb(h, params['wc']) + params['bc'], axis=1)
    box = mmb(h, params['wb']) + params['bb']
    return {'boxes': box, 'labels': cls}


# --------------------------------- main -------------------------------------

if __name__ == "__main__":
    key = jax.random.PRNGKey(0)
    kf0, kf1, kp, kparam = jax.random.split(key, 4)

    B, C, KP = 2, 256, 4                      # C=256 so that 256*7*7 == 12544
    features = [
        jax.random.normal(kf0, (B, C, 16, 16), jnp.float32),   # level 0
        jax.random.normal(kf1, (B, C, 8, 8), jnp.float32),     # level 1
    ]

    # proposals[level][image] : [KP, 4] boxes in xyxy, 1024x1024 image coords
    proposals = []
    pk = kp
    for _ in range(len(features)):
        per_img = []
        for _ in range(B):
            pk, k1, k2 = jax.random.split(pk, 3)
            xy = jax.random.uniform(k1, (KP, 2), minval=0.0, maxval=700.0)
            wh = jax.random.uniform(k2, (KP, 2), minval=60.0, maxval=300.0)
            boxes = jnp.concatenate([xy, jnp.minimum(xy + wh, 1023.0)], axis=1)
            per_img.append(np.asarray(boxes, dtype=np.float32))
        proposals.append(per_img)

    params = init_params(kparam)
    prepared = prepare_inference_params(params, channels=C)

    detections, losses = roi_head_forward(prepared, features, proposals)
    detections = jax.block_until_ready(detections)

    ref = roi_head_reference(params, features, proposals)
    np.testing.assert_allclose(np.asarray(detections['boxes']),
                               np.asarray(ref['boxes']), rtol=1e-2, atol=1e-2)
    np.testing.assert_allclose(np.asarray(detections['labels']),
                               np.asarray(ref['labels']), rtol=1e-2, atol=1e-2)

    print("KERNEL_OK")
</pallas_src>

<mosaic_0001>
module attributes {stable_mosaic.version = 11 : i64} {
  func.func @roi_matmul_kernel(%arg0: i32, %arg1: memref<784x640xbf16, #tpu.memory_space<vmem>>, %arg2: memref<640x256xbf16, #tpu.memory_space<vmem>>, %arg3: memref<784x256xbf16, #tpu.memory_space<vmem>>) attributes {dimension_semantics = [#tpu.dimension_semantics<arbitrary>], iteration_bounds = array<i64: 1>, scalar_prefetch = 0 : i64, scratch_operands = 0 : i64, tpu.core_type = #tpu.core_type<tc>, window_params = [{pipeline_mode = #tpu.pipeline_mode<synchronous>, transform_indices = @transform_0, window_bounds = array<i64: 784, 640>}, {pipeline_mode = #tpu.pipeline_mode<synchronous>, transform_indices = @transform_1, window_bounds = array<i64: 640, 256>}, {pipeline_mode = #tpu.pipeline_mode<synchronous>, transform_indices = @transform_2, window_bounds = array<i64: 784, 256>}]} {
    %c0 = arith.constant 0 : index
    %c0_0 = arith.constant 0 : index
    %0 = vector.load %arg1[%c0, %c0_0] : memref<784x640xbf16, #tpu.memory_space<vmem>>, vector<784x640xbf16>
    %c0_1 = arith.constant 0 : index
    %c0_2 = arith.constant 0 : index
    %1 = vector.load %arg2[%c0_1, %c0_2] : memref<640x256xbf16, #tpu.memory_space<vmem>>, vector<640x256xbf16>
    %cst = arith.constant dense<0.000000e+00> : vector<784x256xf32>
    %2 = tpu.matmul %0, %1, %cst {dimension_numbers = #tpu.dot_dimension_numbers<[1], [0], [0], [1], [0, 0, 1, 1], [], []>} : vector<784x640xbf16>, vector<640x256xbf16>, vector<784x256xf32> -> vector<784x256xf32>
    %3 = arith.truncf %2 : vector<784x256xf32> to vector<784x256xbf16>
    %c0_3 = arith.constant 0 : index
    %c0_4 = arith.constant 0 : index
    %4 = vector.load %arg3[%c0_3, %c0_4] : memref<784x256xbf16, #tpu.memory_space<vmem>>, vector<784x256xbf16>
    tpu.vector_store %arg3[%c0_3, %c0_4], %3 {strides = array<i32>} : memref<784x256xbf16, #tpu.memory_space<vmem>>, vector<784x256xbf16>,
    return
  }
  func.func @transform_0(%arg0: i32) -> (i32, i32) {
    %c0_i32 = arith.constant 0 : i32
    %c0_i32_0 = arith.constant 0 : i32
    %c0_i32_1 = arith.constant 0 : i32
    return %c0_i32, %c0_i32_0 : i32, i32
  }
  func.func @transform_1(%arg0: i32) -> (i32, i32) {
    %c0_i32 = arith.constant 0 : i32
    %c0_i32_0 = arith.constant 0 : i32
    %c0_i32_1 = arith.constant 0 : i32
    return %c0_i32, %c0_i32_0 : i32, i32
  }
  func.func @transform_2(%arg0: i32) -> (i32, i32) {
    %c0_i32 = arith.constant 0 : i32
    %c0_i32_0 = arith.constant 0 : i32
    %c0_i32_1 = arith.constant 0 : i32
    return %c0_i32, %c0_i32_0 : i32, i32
  }
}

</mosaic_0001>

<llo_original>
// kernel: tpu_custom_call.1
$region0: #{tpu_custom_call.1}
  #allocation0 [shape = 'u32[]', space=smem, size = 0x4, offset = 0x4, fixed_abs, tag = 'smem constant byte address 0x4 - core index']
  #allocation1 [shape = 'u32[144,128]{1,0:T(1,128)}', space=vmem, size = 0x12000, scoped, tag = 'internal scratch']
  %s0 = inlined_call_operand.hbm [shape: bf16[784,640], index: 0, kind: input, shape index: {}]
  %s1 = inlined_call_operand.hbm [shape: bf16[640,256], index: 1, kind: input, shape index: {}]
  %s2 = inlined_call_operand.hbm [shape: bf16[784,256], index: 2, kind: output, shape index: {}]
  %s3 = sld [smem:[#allocation0]]
  $region26: #{tpu_custom_call.1} parent=0
    _
  %s5 = ssub.s32 1, %s3
  %s6 = scalar_select 0, %s5, %s3
  $region1: #{tpu_custom_call.1} parent=0
    #allocation2 [shape = 'u8[1003520]{0}', space=vmem, size = 0xf5000, scoped, tag = 'input window, operand 0, single buffered']
    #allocation3 [shape = 's32[1]{0}', space=sflag, size = 0x4, scoped, tag = 'scoped memory for tpu_custom_call.1']
    #allocation4 [shape = 's32[1]{0}', space=sflag, size = 0x4, scoped, tag = 'scoped memory for tpu_custom_call.1']
    #allocation5 [shape = 'u8[327680]{0}', space=vmem, size = 0x50000, scoped, tag = 'input window, operand 1, single buffered']
    #allocation6 [shape = 's32[1]{0}', space=sflag, size = 0x4, scoped, tag = 'scoped memory for tpu_custom_call.1']
    #allocation7 [shape = 'u8[401408]{0}', space=vmem, size = 0x62000, scoped, tag = 'output window, operand 0, single buffered']
    %7 = vsyncpa [#allocation3], 0
    %8 = vsyncpa [#allocation6], 0
    %9 = vsyncpa [#allocation4], 0
    // Predicated region
    $region2: #{tpu_custom_call.1} parent=1 // pred_check
      _
    $region3: #{tpu_custom_call.1} parent=1 // pred_check_branch
      %11 = sbr.rel (0) target = $region5
    $region4: #{tpu_custom_call.1} parent=1 // pred_region
      %s13 = ssub.s32 31360, 31360
      %14 = vsyncadd [#allocation3], %s13
      %s15 = sshll.u32 [#allocation2], 4
      %s16 = int_to_ptr.vmem [resolvable:$true] %s15
      %21 = dma.hbm_to_vmem [thread:$0]  %s0, 31360, %s16, [#allocation3], 320, 320, 20
    $region5: #{tpu_custom_call.1} parent=1 // pred_fallthru
      _
    // Predicated region
    $region6: #{tpu_custom_call.1} parent=1 // pred_check
      _
    $region7: #{tpu_custom_call.1} parent=1 // pred_check_branch
      %23 = sbr.rel (0) target = $region9
    $region8: #{tpu_custom_call.1} parent=1 // pred_region
      %s25 = ssub.s32 10240, 10240
      %26 = vsyncadd [#allocation6], %s25
      %s27 = sshll.u32 [#allocation5], 4
      %s28 = int_to_ptr.vmem [resolvable:$true] %s27
      %33 = dma.hbm_to_vmem [thread:$0]  %s1, 10240, %s28, [#allocation6], 128, 128, 8
    $region9: #{tpu_custom_call.1} parent=1 // pred_fallthru
      _
    // Predicated region
    $region10: #{tpu_custom_call.1} parent=1 // pred_check
      _
    $region11: #{tpu_custom_call.1} parent=1 // pred_check_branch
      %35 = sbr.rel (0) target = $region13
    $region12: #{tpu_custom_call.1} parent=1 // pred_region
      %36 = dma.done [#allocation3], 31360
    $region13: #{tpu_custom_call.1} parent=1 // pred_fallthru
      _
    // Predicated region
    $region14: #{tpu_custom_call.1} parent=1 // pred_check
      _
    $region15: #{tpu_custom_call.1} parent=1 // pred_check_branch
      %38 = sbr.rel (0) target = $region17
    $region16: #{tpu_custom_call.1} parent=1 // pred_region
      %39 = dma.done [#allocation6], 10240
    $region17: #{tpu_custom_call.1} parent=1 // pred_fallthru
      _
    %v41 = vld [vmem:[#allocation2] sm:$0xff]
    %v42 = vld [vmem:[#allocation2 + $0x8] sm:$0xff]
    %v43 = vld [vmem:[#allocation2 + $0x10] sm:$0xf]
    %v44 = vld [vmem:[#allocation2 + $0x14] sm:$0xff]
    %v45 = vld [vmem:[#allocation2 + $0x1c] sm:$0xff]
    %v46 = vld [vmem:[#allocation2 + $0x24] sm:$0xf]
    %v47 = vld [vmem:[#allocation2 + $0x28] sm:$0xff]
    %v48 = vld [vmem:[#allocation2 + $0x30] sm:$0xff]
    %v49 = vld [vmem:[#allocation2 + $0x38] sm:$0xf]
    %v50 = vld [vmem:[#allocation2 + $0x3c] sm:$0xff]
    %v51 = vld [vmem:[#allocation2 + $0x44] sm:$0xff]
    %v52 = vld [vmem:[#allocation2 + $0x4c] sm:$0xf]
    %v53 = vld [vmem:[#allocation2 + $0x50] sm:$0xff]
    %v54 = vld [vmem:[#allocation2 + $0x58] sm:$0xff]
    %v55 = vld [vmem:[#allocation2 + $0x60] sm:$0xf]
    %v56 = vld [vmem:[#allocation2 + $0x64] sm:$0xff]
    %v57 = vld [vmem:[#allocation2 + $0x6c] sm:$0xff]
    %v58 = vld [vmem:[#allocation2 + $0x74] sm:$0xf]
    %v59 = vld [vmem:[#allocation2 + $0x78] sm:$0xff]
    %v60 = vld [vmem:[#allocation2 + $0x80] sm:$0xff]
    %v61 = vld [vmem:[#allocation2 + $0x88] sm:$0xf]
    %v62 = vld [vmem:[#allocation2 + $0x8c] sm:$0xff]
    %v63 = vld [vmem:[#allocation2 + $0x94] sm:$0xff]
    %v64 = vld [vmem:[#allocation2 + $0x9c] sm:$0xf]
    %v65 = vld [vmem:[#allocation2 + $0xa0] sm:$0xff]
    %v66 = vld [vmem:[#allocation2 + $0xa8] sm:$0xff]
    %v67 = vld [vmem:[#allocation2 + $0xb0] sm:$0xf]
    %v68 = vld [vmem:[#allocation2 + $0xb4] sm:$0xff]
    %v69 = vld [vmem:[#allocation2 + $0xbc] sm:$0xff]
    %v70 = vld [vmem:[#allocation2 + $0xc4] sm:$0xf]
    %v71 = vld [vmem:[#allocation2 + $0xc8] sm:$0xff]
    %v72 = vld [vmem:[#allocation2 + $0xd0] sm:$0xff]
    %v73 = vld [vmem:[#allocation2 + $0xd8] sm:$0xf]
    %v74 = vld [vmem:[#allocation2 + $0xdc] sm:$0xff]
    %v75 = vld [vmem:[#allocation2 + $0xe4] sm:$0xff]
    %v76 = vld [vmem:[#allocation2 + $0xec] sm:$0xf]
    %v77 = vld [vmem:[#allocation2 + $0xf0] sm:$0xff]
    %v78 = vld [vmem:[#allocation2 + $0xf8] sm:$0xff]
    %v79 = vld [vmem:[#allocation2 + $0x100] sm:$0xf]
    %v80 = vld [vmem:[#allocation2 + $0x104] sm:$0xff]
    %v81 = vld [vmem:[#allocation2 + $0x10c] sm:$0xff]
    %v82 = vld [vmem:[#allocation2 + $0x114] sm:$0xf]
    %v83 = vld [vmem:[#allocation2 + $0x118] sm:$0xff]
    %v84 = vld [vmem:[#allocation2 + $0x120] sm:$0xff]
    %v85 = vld [vmem:[#allocation2 + $0x128] sm:$0xf]
    %v86 = vld [vmem:[#allocation2 + $0x12c] sm:$0xff]
    %v87 = vld [vmem:[#allocation2 + $0x134] sm:$0xff]
    %v88 = vld [vmem:[#allocation2 + $0x13c] sm:$0xf]
    %v89 = vld [vmem:[#allocation2 + $0x140] sm:$0xff]
    %v90 = vld [vmem:[#allocation2 + $0x148] sm:$0xff]
    %v91 = vld [vmem:[#allocation2 + $0x150] sm:$0xf]
    %v92 = vld [vmem:[#allocation2 + $0x154] sm:$0xff]
    %v93 = vld [vmem:[#allocation2 + $0x15c] sm:$0xff]
    %v94 = vld [vmem:[#allocation2 + $0x164] sm:$0xf]
    %v95 = vld [vmem:[#allocation2 + $0x168] sm:$0xff]
    %v96 = vld [vmem:[#allocation2 + $0x170] sm:$0xff]
    %v97 = vld [vmem:[#allocation2 + $0x178] sm:$0xf]
    %v98 = vld [vmem:[#allocation2 + $0x17c] sm:$0xff]
    %v99 = vld [vmem:[#allocation2 + $0x184] sm:$0xff]
    %v100 = vld [vmem:[#allocation2 + $0x18c] sm:$0xf]
    %v101 = vld [vmem:[#allocation2 + $0x190] sm:$0xff]
    %v102 = vld [vmem:[#allocation2 + $0x198] sm:$0xff]
    %v103 = vld [vmem:[#allocation2 + $0x1a0] sm:$0xf]
    %v104 = vld [vmem:[#allocation2 + $0x1a4] sm:$0xff]
    %v105 = vld [vmem:[#allocation2 + $0x1ac] sm:$0xff]
    %v106 = vld [vmem:[#allocation2 + $0x1b4] sm:$0xf]
    %v107 = vld [vmem:[#allocation2 + $0x1b8] sm:$0xff]
    %v108 = vld [vmem:[#allocation2 + $0x1c0] sm:$0xff]
    %v109 = vld [vmem:[#allocation2 + $0x1c8] sm:$0xf]
    %v110 = vld [vmem:[#allocation2 + $0x1cc] sm:$0xff]
    %v111 = vld [vmem:[#allocation2 + $0x1d4] sm:$0xff]
    %v112 = vld [vmem:[#allocation2 + $0x1dc] sm:$0xf]
    %v113 = vld [vmem:[#allocation2 + $0x1e0] sm:$0xff]
    %v114 = vld [vmem:[#allocation2 + $0x1e8] sm:$0xff]
    %v115 = vld [vmem:[#allocation2 + $0x1f0] sm:$0xf]
    %v116 = vld [vmem:[#allocation2 + $0x1f4] sm:$0xff]
    %v117 = vld [vmem:[#allocation2 + $0x1fc] sm:$0xff]
    %v118 = vld [vmem:[#allocation2 + $0x204] sm:$0xf]
    %v119 = vld [vmem:[#allocation2 + $0x208] sm:$0xff]
    %v120 = vld [vmem:[#allocation2 + $0x210] sm:$0xff]
    %v121 = vld [vmem:[#allocation2 + $0x218] sm:$0xf]
    %v122 = vld [vmem:[#allocation2 + $0x21c] sm:$0xff]
    %v123 = vld [vmem:[#allocation2 + $0x224] sm:$0xff]
    %v124 = vld [vmem:[#allocation2 + $0x22c] sm:$0xf]
    %v125 = vld [vmem:[#allocation2 + $0x230] sm:$0xff]
    %v126 = vld [vmem:[#allocation2 + $0x238] sm:$0xff]
    %v127 = vld [vmem:[#allocation2 + $0x240] sm:$0xf]
    %v128 = vld [vmem:[#allocation2 + $0x244] sm:$0xff]
    %v129 = vld [vmem:[#allocation2 + $0x24c] sm:$0xff]
    %v130 = vld [vmem:[#allocation2 + $0x254] sm:$0xf]
    %v131 = vld [vmem:[#allocation2 + $0x258] sm:$0xff]
    %v132 = vld [vmem:[#allocation2 + $0x260] sm:$0xff]
    %v133 = vld [vmem:[#allocation2 + $0x268] sm:$0xf]
    %v134 = vld [vmem:[#allocation2 + $0x26c] sm:$0xff]
    %v135 = vld [vmem:[#allocation2 + $0x274] sm:$0xff]
    %v136 = vld [vmem:[#allocation2 + $0x27c] sm:$0xf]
    %v137 = vld [vmem:[#allocation2 + $0x280] sm:$0xff]
    %v138 = vld [vmem:[#allocation2 + $0x288] sm:$0xff]
    %v139 = vld [vmem:[#allocation2 + $0x290] sm:$0xf]
    %v140 = vld [vmem:[#allocation2 + $0x294] sm:$0xff]
    %v141 = vld [vmem:[#allocation2 + $0x29c] sm:$0xff]
    %v142 = vld [vmem:[#allocation2 + $0x2a4] sm:$0xf]
    %v143 = vld [vmem:[#allocation2 + $0x2a8] sm:$0xff]
    %v144 = vld [vmem:[#allocation2 + $0x2b0] sm:$0xff]
    %v145 = vld [vmem:[#allocation2 + $0x2b8] sm:$0xf]
    %v146 = vld [vmem:[#allocation2 + $0x2bc] sm:$0xff]
    %v147 = vld [vmem:[#allocation2 + $0x2c4] sm:$0xff]
    %v148 = vld [vmem:[#allocation2 + $0x2cc] sm:$0xf]
    %v149 = vld [vmem:[#allocation2 + $0x2d0] sm:$0xff]
    %v150 = vld [vmem:[#allocation2 + $0x2d8] sm:$0xff]
    %v151 = vld [vmem:[#allocation2 + $0x2e0] sm:$0xf]
    %v152 = vld [vmem:[#allocation2 + $0x2e4] sm:$0xff]
    %v153 = vld [vmem:[#allocation2 + $0x2ec] sm:$0xff]
    %v154 = vld [vmem:[#allocation2 + $0x2f4] sm:$0xf]
    %v155 = vld [vmem:[#allocation2 + $0x2f8] sm:$0xff]
    %v156 = vld [vmem:[#allocation2 + $0x300] sm:$0xff]
    %v157 = vld [vmem:[#allocation2 + $0x308] sm:$0xf]
    %v158 = vld [vmem:[#allocation2 + $0x30c] sm:$0xff]
    %v159 = vld [vmem:[#allocation2 + $0x314] sm:$0xff]
    %v160 = vld [vmem:[#allocation2 + $0x31c] sm:$0xf]
    %v161 = vld [vmem:[#allocation2 + $0x320] sm:$0xff]
    %v162 = vld [vmem:[#allocation2 + $0x328] sm:$0xff]
    %v163 = vld [vmem:[#allocation2 + $0x330] sm:$0xf]
    %v164 = vld [vmem:[#allocation2 + $0x334] sm:$0xff]
    %v165 = vld [vmem:[#allocation2 + $0x33c] sm:$0xff]
    %v166 = vld [vmem:[#allocation2 + $0x344] sm:$0xf]
    %v167 = vld [vmem:[#allocation2 + $0x348] sm:$0xff]
    %v168 = vld [vmem:[#allocation2 + $0x350] sm:$0xff]
    %v169 = vld [vmem:[#allocation2 + $0x358] sm:$0xf]
    %v170 = vld [vmem:[#allocation2 + $0x35c] sm:$0xff]
    %v171 = vld [vmem:[#allocation2 + $0x364] sm:$0xff]
    %v172 = vld [vmem:[#allocation2 + $0x36c] sm:$0xf]
    %v173 = vld [vmem:[#allocation2 + $0x370] sm:$0xff]
    %v174 = vld [vmem:[#allocation2 + $0x378] sm:$0xff]
    %v175 = vld [vmem:[#allocation2 + $0x380] sm:$0xf]
    %v176 = vld [vmem:[#allocation2 + $0x384] sm:$0xff]
    %v177 = vld [vmem:[#allocation2 + $0x38c] sm:$0xff]
    %v178 = vld [vmem:[#allocation2 + $0x394] sm:$0xf]
    %v179 = vld [vmem:[#allocation2 + $0x398] sm:$0xff]
    %v180 = vld [vmem:[#allocation2 + $0x3a0] sm:$0xff]
    %v181 = vld [vmem:[#allocation2 + $0x3a8] sm:$0xf]
    %v182 = vld [vmem:[#allocation2 + $0x3ac] sm:$0xff]
    %v183 = vld [vmem:[#allocation2 + $0x3b4] sm:$0xff]
    %v184 = vld [vmem:[#allocation2 + $0x3bc] sm:$0xf]
    %v185 = vld [vmem:[#allocation2 + $0x3c0] sm:$0xff]
    %v186 = vld [vmem:[#allocation2 + $0x3c8] sm:$0xff]
    %v187 = vld [vmem:[#allocation2 + $0x3d0] sm:$0xf]
    %v188 = vld [vmem:[#allocation2 + $0x3d4] sm:$0xff]
    %v189 = vld [vmem:[#allocation2 + $0x3dc] sm:$0xff]
    %v190 = vld [vmem:[#allocation2 + $0x3e4] sm:$0xf]
    %v191 = vld [vmem:[#allocation2 + $0x3e8] sm:$0xff]
    %v192 = vld [vmem:[#allocation2 + $0x3f0] sm:$0xff]
    %v193 = vld [vmem:[#allocation2 + $0x3f8] sm:$0xf]
    %v194 = vld [vmem:[#allocation2 + $0x3fc] sm:$0xff]
    %v195 = vld [vmem:[#allocation2 + $0x404] sm:$0xff]
    %v196 = vld [vmem:[#allocation2 + $0x40c] sm:$0xf]
    %v197 = vld [vmem:[#allocation2 + $0x410] sm:$0xff]
    %v198 = vld [vmem:[#allocation2 + $0x418] sm:$0xff]
    %v199 = vld [vmem:[#allocation2 + $0x420] sm:$0xf]
    %v200 = vld [vmem:[#allocation2 + $0x424] sm:$0xff]
    %v201 = vld [vmem:[#allocation2 + $0x42c] sm:$0xff]
    %v202 = vld [vmem:[#allocation2 + $0x434] sm:$0xf]
    %v203 = vld [vmem:[#allocation2 + $0x438] sm:$0xff]
    %v204 = vld [vmem:[#allocation2 + $0x440] sm:$0xff]
    %v205 = vld [vmem:[#allocation2 + $0x448] sm:$0xf]
    %v206 = vld [vmem:[#allocation2 + $0x44c] sm:$0xff]
    %v207 = vld [vmem:[#allocation2 + $0x454] sm:$0xff]
    %v208 = vld [vmem:[#allocation2 + $0x45c] sm:$0xf]
    %v209 = vld [vmem:[#allocation2 + $0x460] sm:$0xff]
    %v210 = vld [vmem:[#allocation2 + $0x468] sm:$0xff]
    %v211 = vld [vmem:[#allocation2 + $0x470] sm:$0xf]
    %v212 = vld [vmem:[#allocation2 + $0x474] sm:$0xff]
    %v213 = vld [vmem:[#allocation2 + $0x47c] sm:$0xff]
    %v214 = vld [vmem:[#allocation2 + $0x484] sm:$0xf]
    %v215 = vld [vmem:[#allocation2 + $0x488] sm:$0xff]
    %v216 = vld [vmem:[#allocation2 + $0x490] sm:$0xff]
    %v217 = vld [vmem:[#allocation2 + $0x498] sm:$0xf]
    %v218 = vld [vmem:[#allocation2 + $0x49c] sm:$0xff]
    %v219 = vld [vmem:[#allocation2 + $0x4a4] sm:$0xff]
    %v220 = vld [vmem:[#allocation2 + $0x4ac] sm:$0xf]
    %v221 = vld [vmem:[#allocation2 + $0x4b0] sm:$0xff]
    %v222 = vld [vmem:[#allocation2 + $0x4b8] sm:$0xff]
    %v223 = vld [vmem:[#allocation2 + $0x4c0] sm:$0xf]
    %v224 = vld [vmem:[#allocation2 + $0x4c4] sm:$0xff]
    %v225 = vld [vmem:[#allocation2 + $0x4cc] sm:$0xff]
    %v226 = vld [vmem:[#allocation2 + $0x4d4] sm:$0xf]
    %v227 = vld [vmem:[#allocation2 + $0x4d8] sm:$0xff]
    %v228 = vld [vmem:[#allocation2 + $0x4e0] sm:$0xff]
    %v229 = vld [vmem:[#allocation2 + $0x4e8] sm:$0xf]
    %v230 = vld [vmem:[#allocation2 + $0x4ec] sm:$0xff]
    %v231 = vld [vmem:[#allocation2 + $0x4f4] sm:$0xff]
    %v232 = vld [vmem:[#allocation2 + $0x4fc] sm:$0xf]
    %v233 = vld [vmem:[#allocation2 + $0x500] sm:$0xff]
    %v234 = vld [vmem:[#allocation2 + $0x508] sm:$0xff]
    %v235 = vld [vmem:[#allocation2 + $0x510] sm:$0xf]
    %v236 = vld [vmem:[#allocation2 + $0x514] sm:$0xff]
    %v237 = vld [vmem:[#allocation2 + $0x51c] sm:$0xff]
    %v238 = vld [vmem:[#allocation2 + $0x524] sm:$0xf]
    %v239 = vld [vmem:[#allocation2 + $0x528] sm:$0xff]
    %v240 = vld [vmem:[#allocation2 + $0x530] sm:$0xff]
    %v241 = vld [vmem:[#allocation2 + $0x538] sm:$0xf]
    %v242 = vld [vmem:[#allocation2 + $0x53c] sm:$0xff]
    %v243 = vld [vmem:[#allocation2 + $0x544] sm:$0xff]
    %v244 = vld [vmem:[#allocation2 + $0x54c] sm:$0xf]
    %v245 = vld [vmem:[#allocation2 + $0x550] sm:$0xff]
    %v246 = vld [vmem:[#allocation2 + $0x558] sm:$0xff]
    %v247 = vld [vmem:[#allocation2 + $0x560] sm:$0xf]
    %v248 = vld [vmem:[#allocation2 + $0x564] sm:$0xff]
    %v249 = vld [vmem:[#allocation2 + $0x56c] sm:$0xff]
    %v250 = vld [vmem:[#allocation2 + $0x574] sm:$0xf]
    %v251 = vld [vmem:[#allocation2 + $0x578] sm:$0xff]
    %v252 = vld [vmem:[#allocation2 + $0x580] sm:$0xff]
    %v253 = vld [vmem:[#allocation2 + $0x588] sm:$0xf]
    %v254 = vld [vmem:[#allocation2 + $0x58c] sm:$0xff]
    %v255 = vld [vmem:[#allocation2 + $0x594] sm:$0xff]
    %v256 = vld [vmem:[#allocation2 + $0x59c] sm:$0xf]
    %v257 = vld [vmem:[#allocation2 + $0x5a0] sm:$0xff]
    %v258 = vld [vmem:[#allocation2 + $0x5a8] sm:$0xff]
    %v259 = vld [vmem:[#allocation2 + $0x5b0] sm:$0xf]
    %v260 = vld [vmem:[#allocation2 + $0x5b4] sm:$0xff]
    %v261 = vld [vmem:[#allocation2 + $0x5bc] sm:$0xff]
    %v262 = vld [vmem:[#allocation2 + $0x5c4] sm:$0xf]
    %v263 = vld [vmem:[#allocation2 + $0x5c8] sm:$0xff]
    %v264 = vld [vmem:[#allocation2 + $0x5d0] sm:$0xff]
    %v265 = vld [vmem:[#allocation2 + $0x5d8] sm:$0xf]
    %v266 = vld [vmem:[#allocation2 + $0x5dc] sm:$0xff]
    %v267 = vld [vmem:[#allocation2 + $0x5e4] sm:$0xff]
    %v268 = vld [vmem:[#allocation2 + $0x5ec] sm:$0xf]
    %v269 = vld [vmem:[#allocation2 + $0x5f0] sm:$0xff]
    %v270 = vld [vmem:[#allocation2 + $0x5f8] sm:$0xff]
    %v271 = vld [vmem:[#allocation2 + $0x600] sm:$0xf]
    %v272 = vld [vmem:[#allocation2 + $0x604] sm:$0xff]
    %v273 = vld [vmem:[#allocation2 + $0x60c] sm:$0xff]
    %v274 = vld [vmem:[#allocation2 + $0x614] sm:$0xf]
    %v275 = vld [vmem:[#allocation2 + $0x618] sm:$0xff]
    %v276 = vld [vmem:[#allocation2 + $0x620] sm:$0xff]
    %v277 = vld [vmem:[#allocation2 + $0x628] sm:$0xf]
    %v278 = vld [vmem:[#allocation2 + $0x62c] sm:$0xff]
    %v279 = vld [vmem:[#allocation2 + $0x634] sm:$0xff]
    %v280 = vld [vmem:[#allocation2 + $0x63c] sm:$0xf]
    %v281 = vld [vmem:[#allocation2 + $0x640] sm:$0xff]
    %v282 = vld [vmem:[#allocation2 + $0x648] sm:$0xff]
    %v283 = vld [vmem:[#allocation2 + $0x650] sm:$0xf]
    %v284 = vld [vmem:[#allocation2 + $0x654] sm:$0xff]
    %v285 = vld [vmem:[#allocation2 + $0x65c] sm:$0xff]
    %v286 = vld [vmem:[#allocation2 + $0x664] sm:$0xf]
    %v287 = vld [vmem:[#allocation2 + $0x668] sm:$0xff]
    %v288 = vld [vmem:[#allocation2 + $0x670] sm:$0xff]
    %v289 = vld [vmem:[#allocation2 + $0x678] sm:$0xf]
    %v290 = vld [vmem:[#allocation2 + $0x67c] sm:$0xff]
    %v291 = vld [vmem:[#allocation2 + $0x684] sm:$0xff]
    %v292 = vld [vmem:[#allocation2 + $0x68c] sm:$0xf]
    %v293 = vld [vmem:[#allocation2 + $0x690] sm:$0xff]
    %v294 = vld [vmem:[#allocation2 + $0x698] sm:$0xff]
    %v295 = vld [vmem:[#allocation2 + $0x6a0] sm:$0xf]
    %v296 = vld [vmem:[#allocation2 + $0x6a4] sm:$0xff]
    %v297 = vld [vmem:[#allocation2 + $0x6ac] sm:$0xff]
    %v298 = vld [vmem:[#allocation2 + $0x6b4] sm:$0xf]
    %v299 = vld [vmem:[#allocation2 + $0x6b8] sm:$0xff]
    %v300 = vld [vmem:[#allocation2 + $0x6c0] sm:$0xff]
    %v301 = vld [vmem:[#allocation2 + $0x6c8] sm:$0xf]
    %v302 = vld [vmem:[#allocation2 + $0x6cc] sm:$0xff]
    %v303 = vld [vmem:[#allocation2 + $0x6d4] sm:$0xff]
    %v304 = vld [vmem:[#allocation2 + $0x6dc] sm:$0xf]
    %v305 = vld [vmem:[#allocation2 + $0x6e0] sm:$0xff]
    %v306 = vld [vmem:[#allocation2 + $0x6e8] sm:$0xff]
    %v307 = vld [vmem:[#allocation2 + $0x6f0] sm:$0xf]
    %v308 = vld [vmem:[#allocation2 + $0x6f4] sm:$0xff]
    %v309 = vld [vmem:[#allocation2 + $0x6fc] sm:$0xff]
    %v310 = vld [vmem:[#allocation2 + $0x704] sm:$0xf]
    %v311 = vld [vmem:[#allocation2 + $0x708] sm:$0xff]
    %v312 = vld [vmem:[#allocation2 + $0x710] sm:$0xff]
    %v313 = vld [vmem:[#allocation2 + $0x718] sm:$0xf]
    %v314 = vld [vmem:[#allocation2 + $0x71c] sm:$0xff]
    %v315 = vld [vmem:[#allocation2 + $0x724] sm:$0xff]
    %v316 = vld [vmem:[#allocation2 + $0x72c] sm:$0xf]
    %v317 = vld [vmem:[#allocation2 + $0x730] sm:$0xff]
    %v318 = vld [vmem:[#allocation2 + $0x738] sm:$0xff]
    %v319 = vld [vmem:[#allocation2 + $0x740] sm:$0xf]
    %v320 = vld [vmem:[#allocation2 + $0x744] sm:$0xff]
    %v321 = vld [vmem:[#allocation2 + $0x74c] sm:$0xff]
    %v322 = vld [vmem:[#allocation2 + $0x754] sm:$0xf]
    %v323 = vld [vmem:[#allocation2 + $0x758] sm:$0xff]
    %v324 = vld [vmem:[#allocation2 + $0x760] sm:$0xff]
    %v325 = vld [vmem:[#allocation2 + $0x768] sm:$0xf]
    %v326 = vld [vmem:[#allocation2 + $0x76c] sm:$0xff]
    %v327 = vld [vmem:[#allocation2 + $0x774] sm:$0xff]
    %v328 = vld [vmem:[#allocation2 + $0x77c] sm:$0xf]
    %v329 = vld [vmem:[#allocation2 + $0x780] sm:$0xff]
    %v330 = vld [vmem:[#allocation2 + $0x788] sm:$0xff]
    %v331 = vld [vmem:[#allocation2 + $0x790] sm:$0xf]
    %v332 = vld [vmem:[#allocation2 + $0x794] sm:$0xff]
    %v333 = vld [vmem:[#allocation2 + $0x79c] sm:$0xff]
    %v334 = vld [vmem:[#allocation2 + $0x7a4] sm:$0xf]
    %v335 = vld [vmem:[#allocation5] sm:$0xff]
    %v336 = vld [vmem:[#allocation5 + $0x8] sm:$0xff]
    %v337 = vld [vmem:[#allocation5 + $0x10] sm:$0xff]
    %v338 = vld [vmem:[#allocation5 + $0x18] sm:$0xff]
    %v339 = vld [vmem:[#allocation5 + $0x20] sm:$0xff]
    %v340 = vld [vmem:[#allocation5 + $0x28] sm:$0xff]
    %v341 = vld [vmem:[#allocation5 + $0x30] sm:$0xff]
    %v342 = vld [vmem:[#allocation5 + $0x38] sm:$0xff]
    %v343 = vld [vmem:[#allocation5 + $0x40] sm:$0xff]
    %v344 = vld [vmem:[#allocation5 + $0x48] sm:$0xff]
    %v345 = vld [vmem:[#allocation5 + $0x50] sm:$0xff]
    %v346 = vld [vmem:[#allocation5 + $0x58] sm:$0xff]
    %v347 = vld [vmem:[#allocation5 + $0x60] sm:$0xff]
    %v348 = vld [vmem:[#allocation5 + $0x68] sm:$0xff]
    %v349 = vld [vmem:[#allocation5 + $0x70] sm:$0xff]
    %v350 = vld [vmem:[#allocation5 + $0x78] sm:$0xff]
    %v351 = vld [vmem:[#allocation5 + $0x80] sm:$0xff]
    %v352 = vld [vmem:[#allocation5 + $0x88] sm:$0xff]
    %v353 = vld [vmem:[#allocation5 + $0x90] sm:$0xff]
    %v354 = vld [vmem:[#allocation5 + $0x98] sm:$0xff]
    %v355 = vld [vmem:[#allocation5 + $0xa0] sm:$0xff]
    %v356 = vld [vmem:[#allocation5 + $0xa8] sm:$0xff]
    %v357 = vld [vmem:[#allocation5 + $0xb0] sm:$0xff]
    %v358 = vld [vmem:[#allocation5 + $0xb8] sm:$0xff]
    %v359 = vld [vmem:[#allocation5 + $0xc0] sm:$0xff]
    %v360 = vld [vmem:[#allocation5 + $0xc8] sm:$0xff]
    %v361 = vld [vmem:[#allocation5 + $0xd0] sm:$0xff]
    %v362 = vld [vmem:[#allocation5 + $0xd8] sm:$0xff]
    %v363 = vld [vmem:[#allocation5 + $0xe0] sm:$0xff]
    %v364 = vld [vmem:[#allocation5 + $0xe8] sm:$0xff]
    %v365 = vld [vmem:[#allocation5 + $0xf0] sm:$0xff]
    %v366 = vld [vmem:[#allocation5 + $0xf8] sm:$0xff]
    %v367 = vld [vmem:[#allocation5 + $0x100] sm:$0xff]
    %v368 = vld [vmem:[#allocation5 + $0x108] sm:$0xff]
    %v369 = vld [vmem:[#allocation5 + $0x110] sm:$0xff]
    %v370 = vld [vmem:[#allocation5 + $0x118] sm:$0xff]
    %v371 = vld [vmem:[#allocation5 + $0x120] sm:$0xff]
    %v372 = vld [vmem:[#allocation5 + $0x128] sm:$0xff]
    %v373 = vld [vmem:[#allocation5 + $0x130] sm:$0xff]
    %v374 = vld [vmem:[#allocation5 + $0x138] sm:$0xff]
    %v375 = vld [vmem:[#allocation5 + $0x140] sm:$0xff]
    %v376 = vld [vmem:[#allocation5 + $0x148] sm:$0xff]
    %v377 = vld [vmem:[#allocation5 + $0x150] sm:$0xff]
    %v378 = vld [vmem:[#allocation5 + $0x158] sm:$0xff]
    %v379 = vld [vmem:[#allocation5 + $0x160] sm:$0xff]
    %v380 = vld [vmem:[#allocation5 + $0x168] sm:$0xff]
    %v381 = vld [vmem:[#allocation5 + $0x170] sm:$0xff]
    %v382 = vld [vmem:[#allocation5 + $0x178] sm:$0xff]
    %v383 = vld [vmem:[#allocation5 + $0x180] sm:$0xff]
    %v384 = vld [vmem:[#allocation5 + $0x188] sm:$0xff]
    %v385 = vld [vmem:[#allocation5 + $0x190] sm:$0xff]
    %v386 = vld [vmem:[#allocation5 + $0x198] sm:$0xff]
    %v387 = vld [vmem:[#allocation5 + $0x1a0] sm:$0xff]
    %v388 = vld [vmem:[#allocation5 + $0x1a8] sm:$0xff]
    %v389 = vld [vmem:[#allocation5 + $0x1b0] sm:$0xff]
    %v390 = vld [vmem:[#allocation5 + $0x1b8] sm:$0xff]
    %v391 = vld [vmem:[#allocation5 + $0x1c0] sm:$0xff]
    %v392 = vld [vmem:[#allocation5 + $0x1c8] sm:$0xff]
    %v393 = vld [vmem:[#allocation5 + $0x1d0] sm:$0xff]
    %v394 = vld [vmem:[#allocation5 + $0x1d8] sm:$0xff]
    %v395 = vld [vmem:[#allocation5 + $0x1e0] sm:$0xff]
    %v396 = vld [vmem:[#allocation5 + $0x1e8] sm:$0xff]
    %v397 = vld [vmem:[#allocation5 + $0x1f0] sm:$0xff]
    %v398 = vld [vmem:[#allocation5 + $0x1f8] sm:$0xff]
    %v399 = vld [vmem:[#allocation5 + $0x200] sm:$0xff]
    %v400 = vld [vmem:[#allocation5 + $0x208] sm:$0xff]
    %v401 = vld [vmem:[#allocation5 + $0x210] sm:$0xff]
    %v402 = vld [vmem:[#allocation5 + $0x218] sm:$0xff]
    %v403 = vld [vmem:[#allocation5 + $0x220] sm:$0xff]
    %v404 = vld [vmem:[#allocation5 + $0x228] sm:$0xff]
    %v405 = vld [vmem:[#allocation5 + $0x230] sm:$0xff]
    %v406 = vld [vmem:[#allocation5 + $0x238] sm:$0xff]
    %v407 = vld [vmem:[#allocation5 + $0x240] sm:$0xff]
    %v408 = vld [vmem:[#allocation5 + $0x248] sm:$0xff]
    %v409 = vld [vmem:[#allocation5 + $0x250] sm:$0xff]
    %v410 = vld [vmem:[#allocation5 + $0x258] sm:$0xff]
    %v411 = vld [vmem:[#allocation5 + $0x260] sm:$0xff]
    %v412 = vld [vmem:[#allocation5 + $0x268] sm:$0xff]
    %v413 = vld [vmem:[#allocation5 + $0x270] sm:$0xff]
    %v414 = vld [vmem:[#allocation5 + $0x278] sm:$0xff]
    %v709 = vunpack.c.l.b16 %v41
    %v710 = vunpack.c.h.b16 %v41
    %v711 = vunpack.c.l.b16 %v42
    %v712 = vunpack.c.h.b16 %v42
    %v713 = vunpack.c.l.b16 %v43
    %v714 = vunpack.c.l.b16 %v44
    %v715 = vunpack.c.h.b16 %v44
    %v716 = vunpack.c.l.b16 %v45
    %v717 = vunpack.c.h.b16 %v45
    %v718 = vunpack.c.l.b16 %v46
    %v719 = vunpack.c.l.b16 %v47
    %v720 = vunpack.c.h.b16 %v47
    %v721 = vunpack.c.l.b16 %v48
    %v722 = vunpack.c.h.b16 %v48
    %v723 = vunpack.c.l.b16 %v49
    %v724 = vunpack.c.l.b16 %v50
    %v725 = vunpack.c.h.b16 %v50
    %v726 = vunpack.c.l.b16 %v51
    %v727 = vunpack.c.h.b16 %v51
    %v728 = vunpack.c.l.b16 %v52
    %v729 = vunpack.c.l.b16 %v53
    %v730 = vunpack.c.h.b16 %v53
    %v731 = vunpack.c.l.b16 %v54
    %v732 = vunpack.c.h.b16 %v54
    %v733 = vunpack.c.l.b16 %v55
    %v734 = vunpack.c.l.b16 %v56
    %v735 = vunpack.c.h.b16 %v56
    %v736 = vunpack.c.l.b16 %v57
    %v737 = vunpack.c.h.b16 %v57
    %v738 = vunpack.c.l.b16 %v58
    %v739 = vunpack.c.l.b16 %v59
    %v740 = vunpack.c.h.b16 %v59
    %v741 = vunpack.c.l.b16 %v60
    %v742 = vunpack.c.h.b16 %v60
    %v743 = vunpack.c.l.b16 %v61
    %v744 = vunpack.c.l.b16 %v62
    %v745 = vunpack.c.h.b16 %v62
    %v746 = vunpack.c.l.b16 %v63
    %v747 = vunpack.c.h.b16 %v63
    %v748 = vunpack.c.l.b16 %v64
    %v749 = vunpack.c.l.b16 %v65
    %v750 = vunpack.c.h.b16 %v65
    %v751 = vunpack.c.l.b16 %v66
    %v752 = vunpack.c.h.b16 %v66
    %v753 = vunpack.c.l.b16 %v67
    %v754 = vunpack.c.l.b16 %v68
    %v755 = vunpack.c.h.b16 %v68
    %v756 = vunpack.c.l.b16 %v69
    %v757 = vunpack.c.h.b16 %v69
    %v758 = vunpack.c.l.b16 %v70
    %v759 = vunpack.c.l.b16 %v71
    %v760 = vunpack.c.h.b16 %v71
    %v761 = vunpack.c.l.b16 %v72
    %v762 = vunpack.c.h.b16 %v72
    %v763 = vunpack.c.l.b16 %v73
    %v764 = vunpack.c.l.b16 %v74
    %v765 = vunpack.c.h.b16 %v74
    %v766 = vunpack.c.l.b16 %v75
    %v767 = vunpack.c.h.b16 %v75
    %v768 = vunpack.c.l.b16 %v76
    %v769 = vunpack.c.l.b16 %v77
    %v770 = vunpack.c.h.b16 %v77
    %v771 = vunpack.c.l.b16 %v78
    %v772 = vunpack.c.h.b16 %v78
    %v773 = vunpack.c.l.b16 %v79
    %v774 = vunpack.c.l.b16 %v80
    %v775 = vunpack.c.h.b16 %v80
    %v776 = vunpack.c.l.b16 %v81
    %v777 = vunpack.c.h.b16 %v81
    %v778 = vunpack.c.l.b16 %v82
    %v779 = vunpack.c.l.b16 %v83
    %v780 = vunpack.c.h.b16 %v83
    %v781 = vunpack.c.l.b16 %v84
    %v782 = vunpack.c.h.b16 %v84
    %v783 = vunpack.c.l.b16 %v85
    %v784 = vunpack.c.l.b16 %v86
    %v785 = vunpack.c.h.b16 %v86
    %v786 = vunpack.c.l.b16 %v87
    %v787 = vunpack.c.h.b16 %v87
    %v788 = vunpack.c.l.b16 %v88
    %v789 = vunpack.c.l.b16 %v89
    %v790 = vunpack.c.h.b16 %v89
    %v791 = vunpack.c.l.b16 %v90
    %v792 = vunpack.c.h.b16 %v90
    %v793 = vunpack.c.l.b16 %v91
    %v794 = vunpack.c.l.b16 %v92
    %v795 = vunpack.c.h.b16 %v92
    %v796 = vunpack.c.l.b16 %v93
    %v797 = vunpack.c.h.b16 %v93
    %v798 = vunpack.c.l.b16 %v94
    %v799 = vunpack.c.l.b16 %v95
    %v800 = vunpack.c.h.b16 %v95
    %v801 = vunpack.c.l.b16 %v96
    %v802 = vunpack.c.h.b16 %v96
    %v803 = vunpack.c.l.b16 %v97
    %v804 = vunpack.c.l.b16 %v98
    %v805 = vunpack.c.h.b16 %v98
    %v806 = vunpack.c.l.b16 %v99
    %v807 = vunpack.c.h.b16 %v99
    %v808 = vunpack.c.l.b16 %v100
    %v809 = vunpack.c.l.b16 %v101
    %v810 = vunpack.c.h.b16 %v101
    %v811 = vunpack.c.l.b16 %v102
    %v812 = vunpack.c.h.b16 %v102
    %v813 = vunpack.c.l.b16 %v103
    %v814 = vunpack.c.l.b16 %v104
    %v815 = vunpack.c.h.b16 %v104
    %v816 = vunpack.c.l.b16 %v105
    %v817 = vunpack.c.h.b16 %v105
    %v818 = vunpack.c.l.b16 %v106
    %v819 = vunpack.c.l.b16 %v107
    %v820 = vunpack.c.h.b16 %v107
    %v821 = vunpack.c.l.b16 %v108
    %v822 = vunpack.c.h.b16 %v108
    %v823 = vunpack.c.l.b16 %v109
    %v824 = vunpack.c.l.b16 %v110
    %v825 = vunpack.c.h.b16 %v110
    %v826 = vunpack.c.l.b16 %v111
    %v827 = vunpack.c.h.b16 %v111
    %v828 = vunpack.c.l.b16 %v112
    %v829 = vunpack.c.l.b16 %v113
    %v830 = vunpack.c.h.b16 %v113
    %v831 = vunpack.c.l.b16 %v114
    %v832 = vunpack.c.h.b16 %v114
    %v833 = vunpack.c.l.b16 %v115
    %v834 = vunpack.c.l.b16 %v116
    %v835 = vunpack.c.h.b16 %v116
    %v836 = vunpack.c.l.b16 %v117
    %v837 = vunpack.c.h.b16 %v117
    %v838 = vunpack.c.l.b16 %v118
    %v839 = vunpack.c.l.b16 %v119
    %v840 = vunpack.c.h.b16 %v119
    %v841 = vunpack.c.l.b16 %v120
    %v842 = vunpack.c.h.b16 %v120
    %v843 = vunpack.c.l.b16 %v121
    %v844 = vunpack.c.l.b16 %v122
    %v845 = vunpack.c.h.b16 %v122
    %v846 = vunpack.c.l.b16 %v123
    %v847 = vunpack.c.h.b16 %v123
    %v848 = vunpack.c.l.b16 %v124
    %v849 = vunpack.c.l.b16 %v125
    %v850 = vunpack.c.h.b16 %v125
    %v851 = vunpack.c.l.b16 %v126
    %v852 = vunpack.c.h.b16 %v126
    %v853 = vunpack.c.l.b16 %v127
    %v854 = vunpack.c.l.b16 %v128
    %v855 = vunpack.c.h.b16 %v128
    %v856 = vunpack.c.l.b16 %v129
    %v857 = vunpack.c.h.b16 %v129
    %v858 = vunpack.c.l.b16 %v130
    %v859 = vunpack.c.l.b16 %v131
    %v860 = vunpack.c.h.b16 %v131
    %v861 = vunpack.c.l.b16 %v132
    %v862 = vunpack.c.h.b16 %v132
    %v863 = vunpack.c.l.b16 %v133
    %v864 = vunpack.c.l.b16 %v134
    %v865 = vunpack.c.h.b16 %v134
    %v866 = vunpack.c.l.b16 %v135
    %v867 = vunpack.c.h.b16 %v135
    %v868 = vunpack.c.l.b16 %v136
    %v869 = vunpack.c.l.b16 %v137
    %v870 = vunpack.c.h.b16 %v137
    %v871 = vunpack.c.l.b16 %v138
    %v872 = vunpack.c.h.b16 %v138
    %v873 = vunpack.c.l.b16 %v139
    %v874 = vunpack.c.l.b16 %v140
    %v875 = vunpack.c.h.b16 %v140
    %v876 = vunpack.c.l.b16 %v141
    %v877 = vunpack.c.h.b16 %v141
    %v878 = vunpack.c.l.b16 %v142
    %v879 = vunpack.c.l.b16 %v143
    %v880 = vunpack.c.h.b16 %v143
    %v881 = vunpack.c.l.b16 %v144
    %v882 = vunpack.c.h.b16 %v144
    %v883 = vunpack.c.l.b16 %v145
    %v884 = vunpack.c.l.b16 %v146
    %v885 = vunpack.c.h.b16 %v146
    %v886 = vunpack.c.l.b16 %v147
    %v887 = vunpack.c.h.b16 %v147
    %v888 = vunpack.c.l.b16 %v148
    %v889 = vunpack.c.l.b16 %v149
    %v890 = vunpack.c.h.b16 %v149
    %v891 = vunpack.c.l.b16 %v150
    %v892 = vunpack.c.h.b16 %v150
    %v893 = vunpack.c.l.b16 %v151
    %v894 = vunpack.c.l.b16 %v152
    %v895 = vunpack.c.h.b16 %v152
    %v896 = vunpack.c.l.b16 %v153
    %v897 = vunpack.c.h.b16 %v153
    %v898 = vunpack.c.l.b16 %v154
    %v899 = vunpack.c.l.b16 %v155
    %v900 = vunpack.c.h.b16 %v155
    %v901 = vunpack.c.l.b16 %v156
    %v902 = vunpack.c.h.b16 %v156
    %v903 = vunpack.c.l.b16 %v157
    %v904 = vunpack.c.l.b16 %v158
    %v905 = vunpack.c.h.b16 %v158
    %v906 = vunpack.c.l.b16 %v159
    %v907 = vunpack.c.h.b16 %v159
    %v908 = vunpack.c.l.b16 %v160
    %v909 = vunpack.c.l.b16 %v161
    %v910 = vunpack.c.h.b16 %v161
    %v911 = vunpack.c.l.b16 %v162
    %v912 = vunpack.c.h.b16 %v162
    %v913 = vunpack.c.l.b16 %v163
    %v914 = vunpack.c.l.b16 %v164
    %v915 = vunpack.c.h.b16 %v164
    %v916 = vunpack.c.l.b16 %v165
    %v917 = vunpack.c.h.b16 %v165
    %v918 = vunpack.c.l.b16 %v166
    %v919 = vunpack.c.l.b16 %v167
    %v920 = vunpack.c.h.b16 %v167
    %v921 = vunpack.c.l.b16 %v168
    %v922 = vunpack.c.h.b16 %v168
    %v923 = vunpack.c.l.b16 %v169
    %v924 = vunpack.c.l.b16 %v170
    %v925 = vunpack.c.h.b16 %v170
    %v926 = vunpack.c.l.b16 %v171
    %v927 = vunpack.c.h.b16 %v171
    %v928 = vunpack.c.l.b16 %v172
    %v929 = vunpack.c.l.b16 %v173
    %v930 = vunpack.c.h.b16 %v173
    %v931 = vunpack.c.l.b16 %v174
    %v932 = vunpack.c.h.b16 %v174
    %v933 = vunpack.c.l.b16 %v175
    %v934 = vunpack.c.l.b16 %v176
    %v935 = vunpack.c.h.b16 %v176
    %v936 = vunpack.c.l.b16 %v177
    %v937 = vunpack.c.h.b16 %v177
    %v938 = vunpack.c.l.b16 %v178
    %v939 = vunpack.c.l.b16 %v179
    %v940 = vunpack.c.h.b16 %v179
    %v941 = vunpack.c.l.b16 %v180
    %v942 = vunpack.c.h.b16 %v180
    %v943 = vunpack.c.l.b16 %v181
    %v944 = vunpack.c.l.b16 %v182
    %v945 = vunpack.c.h.b16 %v182
    %v946 = vunpack.c.l.b16 %v183
    %v947 = vunpack.c.h.b16 %v183
    %v948 = vunpack.c.l.b16 %v184
    %v949 = vunpack.c.l.b16 %v185
    %v950 = vunpack.c.h.b16 %v185
    %v951 = vunpack.c.l.b16 %v186
    %v952 = vunpack.c.h.b16 %v186
    %v953 = vunpack.c.l.b16 %v187
    %v954 = vunpack.c.l.b16 %v188
    %v955 = vunpack.c.h.b16 %v188
    %v956 = vunpack.c.l.b16 %v189
    %v957 = vunpack.c.h.b16 %v189
    %v958 = vunpack.c.l.b16 %v190
    %v959 = vunpack.c.l.b16 %v191
    %v960 = vunpack.c.h.b16 %v191
    %v961 = vunpack.c.l.b16 %v192
    %v962 = vunpack.c.h.b16 %v192
    %v963 = vunpack.c.l.b16 %v193
    %v964 = vunpack.c.l.b16 %v194
    %v965 = vunpack.c.h.b16 %v194
    %v966 = vunpack.c.l.b16 %v195
    %v967 = vunpack.c.h.b16 %v195
    %v968 = vunpack.c.l.b16 %v196
    %v969 = vunpack.c.l.b16 %v197
    %v970 = vunpack.c.h.b16 %v197
    %v971 = vunpack.c.l.b16 %v198
    %v972 = vunpack.c.h.b16 %v198
    %v973 = vunpack.c.l.b16 %v199
    %v974 = vunpack.c.l.b16 %v200
    %v975 = vunpack.c.h.b16 %v200
    %v976 = vunpack.c.l.b16 %v201
    %v977 = vunpack.c.h.b16 %v201
    %v978 = vunpack.c.l.b16 %v202
    %v979 = vunpack.c.l.b16 %v203
    %v980 = vunpack.c.h.b16 %v203
    %v981 = vunpack.c.l.b16 %v204
    %v982 = vunpack.c.h.b16 %v204
    %v983 = vunpack.c.l.b16 %v205
    %v984 = vunpack.c.l.b16 %v206
    %v985 = vunpack.c.h.b16 %v206
    %v986 = vunpack.c.l.b16 %v207
    %v987 = vunpack.c.h.b16 %v207
    %v988 = vunpack.c.l.b16 %v208
    %v989 = vunpack.c.l.b16 %v209
    %v990 = vunpack.c.h.b16 %v209
    %v991 = vunpack.c.l.b16 %v210
    %v992 = vunpack.c.h.b16 %v210
    %v993 = vunpack.c.l.b16 %v211
    %v994 = vunpack.c.l.b16 %v212
    %v995 = vunpack.c.h.b16 %v212
    %v996 = vunpack.c.l.b16 %v213
    %v997 = vunpack.c.h.b16 %v213
    %v998 = vunpack.c.l.b16 %v214
    %v999 = vunpack.c.l.b16 %v215
    %v1000 = vunpack.c.h.b16 %v215
    %v1001 = vunpack.c.l.b16 %v216
    %v1002 = vunpack.c.h.b16 %v216
    %v1003 = vunpack.c.l.b16 %v217
    %v1004 = vunpack.c.l.b16 %v218
    %v1005 = vunpack.c.h.b16 %v218
    %v1006 = vunpack.c.l.b16 %v219
    %v1007 = vunpack.c.h.b16 %v219
    %v1008 = vunpack.c.l.b16 %v220
    %v1009 = vunpack.c.l.b16 %v221
    %v1010 = vunpack.c.h.b16 %v221
    %v1011 = vunpack.c.l.b16 %v222
    %v1012 = vunpack.c.h.b16 %v222
    %v1013 = vunpack.c.l.b16 %v223
    %v1014 = vunpack.c.l.b16 %v224
    %v1015 = vunpack.c.h.b16 %v224
    %v1016 = vunpack.c.l.b16 %v225
    %v1017 = vunpack.c.h.b16 %v225
    %v1018 = vunpack.c.l.b16 %v226
    %v1019 = vunpack.c.l.b16 %v227
    %v1020 = vunpack.c.h.b16 %v227
    %v1021 = vunpack.c.l.b16 %v228
    %v1022 = vunpack.c.h.b16 %v228
    %v1023 = vunpack.c.l.b16 %v229
    %v1024 = vunpack.c.l.b16 %v230
    %v1025 = vunpack.c.h.b16 %v230
    %v1026 = vunpack.c.l.b16 %v231
    %v1027 = vunpack.c.h.b16 %v231
    %v1028 = vunpack.c.l.b16 %v232
    %v1029 = vunpack.c.l.b16 %v233
    %v1030 = vunpack.c.h.b16 %v233
    %v1031 = vunpack.c.l.b16 %v234
    %v1032 = vunpack.c.h.b16 %v234
    %v1033 = vunpack.c.l.b16 %v235
    %v1034 = vunpack.c.l.b16 %v236
    %v1035 = vunpack.c.h.b16 %v236
    %v1036 = vunpack.c.l.b16 %v237
    %v1037 = vunpack.c.h.b16 %v237
    %v1038 = vunpack.c.l.b16 %v238
    %v1039 = vunpack.c.l.b16 %v239
    %v1040 = vunpack.c.h.b16 %v239
    %v1041 = vunpack.c.l.b16 %v240
    %v1042 = vunpack.c.h.b16 %v240
    %v1043 = vunpack.c.l.b16 %v241
    %v1044 = vunpack.c.l.b16 %v242
    %v1045 = vunpack.c.h.b16 %v242
    %v1046 = vunpack.c.l.b16 %v243
    %v1047 = vunpack.c.h.b16 %v243
    %v1048 = vunpack.c.l.b16 %v244
    %v1049 = vunpack.c.l.b16 %v245
    %v1050 = vunpack.c.h.b16 %v245
    %v1051 = vunpack.c.l.b16 %v246
    %v1052 = vunpack.c.h.b16 %v246
    %v1053 = vunpack.c.l.b16 %v247
    %v1054 = vunpack.c.l.b16 %v248
    %v1055 = vunpack.c.h.b16 %v248
    %v1056 = vunpack.c.l.b16 %v249
    %v1057 = vunpack.c.h.b16 %v249
    %v1058 = vunpack.c.l.b16 %v250
    %v1059 = vunpack.c.l.b16 %v251
    %v1060 = vunpack.c.h.b16 %v251
    %v1061 = vunpack.c.l.b16 %v252
    %v1062 = vunpack.c.h.b16 %v252
    %v1063 = vunpack.c.l.b16 %v253
    %v1064 = vunpack.c.l.b16 %v254
    %v1065 = vunpack.c.h.b16 %v254
    %v1066 = vunpack.c.l.b16 %v255
    %v1067 = vunpack.c.h.b16 %v255
    %v1068 = vunpack.c.l.b16 %v256
    %v1069 = vunpack.c.l.b16 %v257
    %v1070 = vunpack.c.h.b16 %v257
    %v1071 = vunpack.c.l.b16 %v258
    %v1072 = vunpack.c.h.b16 %v258
    %v1073 = vunpack.c.l.b16 %v259
    %v1074 = vunpack.c.l.b16 %v260
    %v1075 = vunpack.c.h.b16 %v260
    %v1076 = vunpack.c.l.b16 %v261
    %v1077 = vunpack.c.h.b16 %v261
    %v1078 = vunpack.c.l.b16 %v262
    %v1079 = vunpack.c.l.b16 %v263
    %v1080 = vunpack.c.h.b16 %v263
    %v1081 = vunpack.c.l.b16 %v264
    %v1082 = vunpack.c.h.b16 %v264
    %v1083 = vunpack.c.l.b16 %v265
    %v1084 = vunpack.c.l.b16 %v266
    %v1085 = vunpack.c.h.b16 %v266
    %v1086 = vunpack.c.l.b16 %v267
    %v1087 = vunpack.c.h.b16 %v267
    %v1088 = vunpack.c.l.b16 %v268
    %v1089 = vunpack.c.l.b16 %v269
    %v1090 = vunpack.c.h.b16 %v269
    %v1091 = vunpack.c.l.b16 %v270
    %v1092 = vunpack.c.h.b16 %v270
    %v1093 = vunpack.c.l.b16 %v271
    %v1094 = vunpack.c.l.b16 %v272
    %v1095 = vunpack.c.h.b16 %v272
    %v1096 = vunpack.c.l.b16 %v273
    %v1097 = vunpack.c.h.b16 %v273
    %v1098 = vunpack.c.l.b16 %v274
    %v1099 = vunpack.c.l.b16 %v275
    %v1100 = vunpack.c.h.b16 %v275
    %v1101 = vunpack.c.l.b16 %v276
    %v1102 = vunpack.c.h.b16 %v276
    %v1103 = vunpack.c.l.b16 %v277
    %v1104 = vunpack.c.l.b16 %v278
    %v1105 = vunpack.c.h.b16 %v278
    %v1106 = vunpack.c.l.b16 %v279
    %v1107 = vunpack.c.h.b16 %v279
    %v1108 = vunpack.c.l.b16 %v280
    %v1109 = vunpack.c.l.b16 %v281
    %v1110 = vunpack.c.h.b16 %v281
    %v1111 = vunpack.c.l.b16 %v282
    %v1112 = vunpack.c.h.b16 %v282
    %v1113 = vunpack.c.l.b16 %v283
    %v1114 = vunpack.c.l.b16 %v284
    %v1115 = vunpack.c.h.b16 %v284
    %v1116 = vunpack.c.l.b16 %v285
    %v1117 = vunpack.c.h.b16 %v285
    %v1118 = vunpack.c.l.b16 %v286
    %v1119 = vunpack.c.l.b16 %v287
    %v1120 = vunpack.c.h.b16 %v287
    %v1121 = vunpack.c.l.b16 %v288
    %v1122 = vunpack.c.h.b16 %v288
    %v1123 = vunpack.c.l.b16 %v289
    %v1124 = vunpack.c.l.b16 %v290
    %v1125 = vunpack.c.h.b16 %v290
    %v1126 = vunpack.c.l.b16 %v291
    %v1127 = vunpack.c.h.b16 %v291
    %v1128 = vunpack.c.l.b16 %v292
    %v1129 = vunpack.c.l.b16 %v293
    %v1130 = vunpack.c.h.b16 %v293
    %v1131 = vunpack.c.l.b16 %v294
    %v1132 = vunpack.c.h.b16 %v294
    %v1133 = vunpack.c.l.b16 %v295
    %v1134 = vunpack.c.l.b16 %v296
    %v1135 = vunpack.c.h.b16 %v296
    %v1136 = vunpack.c.l.b16 %v297
    %v1137 = vunpack.c.h.b16 %v297
    %v1138 = vunpack.c.l.b16 %v298
    %v1139 = vunpack.c.l.b16 %v299
    %v1140 = vunpack.c.h.b16 %v299
    %v1141 = vunpack.c.l.b16 %v300
    %v1142 = vunpack.c.h.b16 %v300
    %v1143 = vunpack.c.l.b16 %v301
    %v1144 = vunpack.c.l.b16 %v302
    %v1145 = vunpack.c.h.b16 %v302
    %v1146 = vunpack.c.l.b16 %v303
    %v1147 = vunpack.c.h.b16 %v303
    %v1148 = vunpack.c.l.b16 %v304
    %v1149 = vunpack.c.l.b16 %v305
    %v1150 = vunpack.c.h.b16 %v305
    %v1151 = vunpack.c.l.b16 %v306
    %v1152 = vunpack.c.h.b16 %v306
    %v1153 = vunpack.c.l.b16 %v307
    %v1154 = vunpack.c.l.b16 %v308
    %v1155 = vunpack.c.h.b16 %v308
    %v1156 = vunpack.c.l.b16 %v309
    %v1157 = vunpack.c.h.b16 %v309
    %v1158 = vunpack.c.l.b16 %v310
    %v1159 = vunpack.c.l.b16 %v311
    %v1160 = vunpack.c.h.b16 %v311
    %v1161 = vunpack.c.l.b16 %v312
    %v1162 = vunpack.c.h.b16 %v312
    %v1163 = vunpack.c.l.b16 %v313
    %v1164 = vunpack.c.l.b16 %v314
    %v1165 = vunpack.c.h.b16 %v314
    %v1166 = vunpack.c.l.b16 %v315
    %v1167 = vunpack.c.h.b16 %v315
    %v1168 = vunpack.c.l.b16 %v316
    %v1169 = vunpack.c.l.b16 %v317
    %v1170 = vunpack.c.h.b16 %v317
    %v1171 = vunpack.c.l.b16 %v318
    %v1172 = vunpack.c.h.b16 %v318
    %v1173 = vunpack.c.l.b16 %v319
    %v1174 = vunpack.c.l.b16 %v320
    %v1175 = vunpack.c.h.b16 %v320
    %v1176 = vunpack.c.l.b16 %v321
    %v1177 = vunpack.c.h.b16 %v321
    %v1178 = vunpack.c.l.b16 %v322
    %v1179 = vunpack.c.l.b16 %v323
    %v1180 = vunpack.c.h.b16 %v323
    %v1181 = vunpack.c.l.b16 %v324
    %v1182 = vunpack.c.h.b16 %v324
    %v1183 = vunpack.c.l.b16 %v325
    %v1184 = vunpack.c.l.b16 %v326
    %v1185 = vunpack.c.h.b16 %v326
    %v1186 = vunpack.c.l.b16 %v327
    %v1187 = vunpack.c.h.b16 %v327
    %v1188 = vunpack.c.l.b16 %v328
    %v1189 = vunpack.c.l.b16 %v329
    %v1190 = vunpack.c.h.b16 %v329
    %v1191 = vunpack.c.l.b16 %v330
    %v1192 = vunpack.c.h.b16 %v330
    %v1193 = vunpack.c.l.b16 %v331
    %v1194 = vunpack.c.l.b16 %v332
    %v1195 = vunpack.c.h.b16 %v332
    %v1196 = vunpack.c.l.b16 %v333
    %v1197 = vunpack.c.h.b16 %v333
    %v1198 = vunpack.c.l.b16 %v334
    %v1199 = vpack.c.b16 %v714, %v709
    %v1200 = vpack.c.b16 %v715, %v710
    %v1201 = vpack.c.b16 %v716, %v711
    %v1202 = vpack.c.b16 %v717, %v712
    %v1203 = vpack.c.b16 %v718, %v713
    %v1204 = vpack.c.b16 %v724, %v719
    %v1205 = vpack.c.b16 %v725, %v720
    %v1206 = vpack.c.b16 %v726, %v721
    %v1207 = vpack.c.b16 %v727, %v722
    %v1208 = vpack.c.b16 %v728, %v723
    %v1209 = vpack.c.b16 %v734, %v729
    %v1210 = vpack.c.b16 %v735, %v730
    %v1211 = vpack.c.b16 %v736, %v731
    %v1212 = vpack.c.b16 %v737, %v732
    %v1213 = vpack.c.b16 %v738, %v733
    %v1214 = vpack.c.b16 %v744, %v739
    %v1215 = vpack.c.b16 %v745, %v740
    %v1216 = vpack.c.b16 %v746, %v741
    %v1217 = vpack.c.b16 %v747, %v742
    %v1218 = vpack.c.b16 %v748, %v743
    %v1219 = vpack.c.b16 %v754, %v749
    %v1220 = vpack.c.b16 %v755, %v750
    %v1221 = vpack.c.b16 %v756, %v751
    %v1222 = vpack.c.b16 %v757, %v752
    %v1223 = vpack.c.b16 %v758, %v753
    %v1224 = vpack.c.b16 %v764, %v759
    %v1225 = vpack.c.b16 %v765, %v760
    %v1226 = vpack.c.b16 %v766, %v761
    %v1227 = vpack.c.b16 %v767, %v762
    %v1228 = vpack.c.b16 %v768, %v763
    %v1229 = vpack.c.b16 %v774, %v769
    %v1230 = vpack.c.b16 %v775, %v770
    %v1231 = vpack.c.b16 %v776, %v771
    %v1232 = vpack.c.b16 %v777, %v772
    %v1233 = vpack.c.b16 %v778, %v773
    %v1234 = vpack.c.b16 %v784, %v779
    %v1235 = vpack.c.b16 %v785, %v780
    %v1236 = vpack.c.b16 %v786, %v781
    %v1237 = vpack.c.b16 %v787, %v782
    %v1238 = vpack.c.b16 %v788, %v783
    %v1239 = vpack.c.b16 %v794, %v789
    %v1240 = vpack.c.b16 %v795, %v790
    %v1241 = vpack.c.b16 %v796, %v791
    %v1242 = vpack.c.b16 %v797, %v792
    %v1243 = vpack.c.b16 %v798, %v793
    %v1244 = vpack.c.b16 %v804, %v799
    %v1245 = vpack.c.b16 %v805, %v800
    %v1246 = vpack.c.b16 %v806, %v801
    %v1247 = vpack.c.b16 %v807, %v802
    %v1248 = vpack.c.b16 %v808, %v803
    %v1249 = vpack.c.b16 %v814, %v809
    %v1250 = vpack.c.b16 %v815, %v810
    %v1251 = vpack.c.b16 %v816, %v811
    %v1252 = vpack.c.b16 %v817, %v812
    %v1253 = vpack.c.b16 %v818, %v813
    %v1254 = vpack.c.b16 %v824, %v819
    %v1255 = vpack.c.b16 %v825, %v820
    %v1256 = vpack.c.b16 %v826, %v821
    %v1257 = vpack.c.b16 %v827, %v822
    %v1258 = vpack.c.b16 %v828, %v823
    %v1259 = vpack.c.b16 %v834, %v829
    %v1260 = vpack.c.b16 %v835, %v830
    %v1261 = vpack.c.b16 %v836, %v831
    %v1262 = vpack.c.b16 %v837, %v832
    %v1263 = vpack.c.b16 %v838, %v833
    %v1264 = vpack.c.b16 %v844, %v839
    %v1265 = vpack.c.b16 %v845, %v840
    %v1266 = vpack.c.b16 %v846, %v841
    %v1267 = vpack.c.b16 %v847, %v842
    %v1268 = vpack.c.b16 %v848, %v843
    %v1269 = vpack.c.b16 %v854, %v849
    %v1270 = vpack.c.b16 %v855, %v850
    %v1271 = vpack.c.b16 %v856, %v851
    %v1272 = vpack.c.b16 %v857, %v852
    %v1273 = vpack.c.b16 %v858, %v853
    %v1274 = vpack.c.b16 %v864, %v859
    %v1275 = vpack.c.b16 %v865, %v860
    %v1276 = vpack.c.b16 %v866, %v861
    %v1277 = vpack.c.b16 %v867, %v862
    %v1278 = vpack.c.b16 %v868, %v863
    %v1279 = vpack.c.b16 %v874, %v869
    %v1280 = vpack.c.b16 %v875, %v870
    %v1281 = vpack.c.b16 %v876, %v871
    %v1282 = vpack.c.b16 %v877, %v872
    %v1283 = vpack.c.b16 %v878, %v873
    %v1284 = vpack.c.b16 %v884, %v879
    %v1285 = vpack.c.b16 %v885, %v880
    %v1286 = vpack.c.b16 %v886, %v881
    %v1287 = vpack.c.b16 %v887, %v882
    %v1288 = vpack.c.b16 %v888, %v883
    %v1289 = vpack.c.b16 %v894, %v889
    %v1290 = vpack.c.b16 %v895, %v890
    %v1291 = vpack.c.b16 %v896, %v891
    %v1292 = vpack.c.b16 %v897, %v892
    %v1293 = vpack.c.b16 %v898, %v893
    %v1294 = vpack.c.b16 %v904, %v899
    %v1295 = vpack.c.b16 %v905, %v900
    %v1296 = vpack.c.b16 %v906, %v901
    %v1297 = vpack.c.b16 %v907, %v902
    %v1298 = vpack.c.b16 %v908, %v903
    %v1299 = vpack.c.b16 %v914, %v909
    %v1300 = vpack.c.b16 %v915, %v910
    %v1301 = vpack.c.b16 %v916, %v911
    %v1302 = vpack.c.b16 %v917, %v912
    %v1303 = vpack.c.b16 %v918, %v913
    %v1304 = vpack.c.b16 %v924, %v919
    %v1305 = vpack.c.b16 %v925, %v920
    %v1306 = vpack.c.b16 %v926, %v921
    %v1307 = vpack.c.b16 %v927, %v922
    %v1308 = vpack.c.b16 %v928, %v923
    %v1309 = vpack.c.b16 %v934, %v929
    %v1310 = vpack.c.b16 %v935, %v930
    %v1311 = vpack.c.b16 %v936, %v931
    %v1312 = vpack.c.b16 %v937, %v932
    %v1313 = vpack.c.b16 %v938, %v933
    %v1314 = vpack.c.b16 %v944, %v939
    %v1315 = vpack.c.b16 %v945, %v940
    %v1316 = vpack.c.b16 %v946, %v941
    %v1317 = vpack.c.b16 %v947, %v942
    %v1318 = vpack.c.b16 %v948, %v943
    %v1319 = vpack.c.b16 %v954, %v949
    %v1320 = vpack.c.b16 %v955, %v950
    %v1321 = vpack.c.b16 %v956, %v951
    %v1322 = vpack.c.b16 %v957, %v952
    %v1323 = vpack.c.b16 %v958, %v953
    %v1324 = vpack.c.b16 %v964, %v959
    %v1325 = vpack.c.b16 %v965, %v960
    %v1326 = vpack.c.b16 %v966, %v961
    %v1327 = vpack.c.b16 %v967, %v962
    %v1328 = vpack.c.b16 %v968, %v963
    %v1329 = vpack.c.b16 %v974, %v969
    %v1330 = vpack.c.b16 %v975, %v970
    %v1331 = vpack.c.b16 %v976, %v971
    %v1332 = vpack.c.b16 %v977, %v972
    %v1333 = vpack.c.b16 %v978, %v973
    %v1334 = vpack.c.b16 %v984, %v979
    %v1335 = vpack.c.b16 %v985, %v980
    %v1336 = vpack.c.b16 %v986, %v981
    %v1337 = vpack.c.b16 %v987, %v982
    %v1338 = vpack.c.b16 %v988, %v983
    %v1339 = vpack.c.b16 %v994, %v989
    %v1340 = vpack.c.b16 %v995, %v990
    %v1341 = vpack.c.b16 %v996, %v991
    %v1342 = vpack.c.b16 %v997, %v992
    %v1343 = vpack.c.b16 %v998, %v993
    %v1344 = vpack.c.b16 %v1004, %v999
    %v1345 = vpack.c.b16 %v1005, %v1000
    %v1346 = vpack.c.b16 %v1006, %v1001
    %v1347 = vpack.c.b16 %v1007, %v1002
    %v1348 = vpack.c.b16 %v1008, %v1003
    %v1349 = vpack.c.b16 %v1014, %v1009
    %v1350 = vpack.c.b16 %v1015, %v1010
    %v1351 = vpack.c.b16 %v1016, %v1011
    %v1352 = vpack.c.b16 %v1017, %v1012
    %v1353 = vpack.c.b16 %v1018, %v1013
    %v1354 = vpack.c.b16 %v1024, %v1019
    %v1355 = vpack.c.b16 %v1025, %v1020
    %v1356 = vpack.c.b16 %v1026, %v1021
    %v1357 = vpack.c.b16 %v1027, %v1022
    %v1358 = vpack.c.b16 %v1028, %v1023
    %v1359 = vpack.c.b16 %v1034, %v1029
    %v1360 = vpack.c.b16 %v1035, %v1030
    %v1361 = vpack.c.b16 %v1036, %v1031
    %v1362 = vpack.c.b16 %v1037, %v1032
    %v1363 = vpack.c.b16 %v1038, %v1033
    %v1364 = vpack.c.b16 %v1044, %v1039
    %v1365 = vpack.c.b16 %v1045, %v1040
    %v1366 = vpack.c.b16 %v1046, %v1041
    %v1367 = vpack.c.b16 %v1047, %v1042
    %v1368 = vpack.c.b16 %v1048, %v1043
    %v1369 = vpack.c.b16 %v1054, %v1049
    %v1370 = vpack.c.b16 %v1055, %v1050
    %v1371 = vpack.c.b16 %v1056, %v1051
    %v1372 = vpack.c.b16 %v1057, %v1052
    %v1373 = vpack.c.b16 %v1058, %v1053
    %v1374 = vpack.c.b16 %v1064, %v1059
    %v1375 = vpack.c.b16 %v1065, %v1060
    %v1376 = vpack.c.b16 %v1066, %v1061
    %v1377 = vpack.c.b16 %v1067, %v1062
    %v1378 = vpack.c.b16 %v1068, %v1063
    %v1379 = vpack.c.b16 %v1074, %v1069
    %v1380 = vpack.c.b16 %v1075, %v1070
    %v1381 = vpack.c.b16 %v1076, %v1071
    %v1382 = vpack.c.b16 %v1077, %v1072
    %v1383 = vpack.c.b16 %v1078, %v1073
    %v1384 = vpack.c.b16 %v1084, %v1079
    %v1385 = vpack.c.b16 %v1085, %v1080
    %v1386 = vpack.c.b16 %v1086, %v1081
    %v1387 = vpack.c.b16 %v1087, %v1082
    %v1388 = vpack.c.b16 %v1088, %v1083
    %v1389 = vpack.c.b16 %v1094, %v1089
    %v1390 = vpack.c.b16 %v1095, %v1090
    %v1391 = vpack.c.b16 %v1096, %v1091
    %v1392 = vpack.c.b16 %v1097, %v1092
    %v1393 = vpack.c.b16 %v1098, %v1093
    %v1394 = vpack.c.b16 %v1104, %v1099
    %v1395 = vpack.c.b16 %v1105, %v1100
    %v1396 = vpack.c.b16 %v1106, %v1101
    %v1397 = vpack.c.b16 %v1107, %v1102
    %v1398 = vpack.c.b16 %v1108, %v1103
    %v1399 = vpack.c.b16 %v1114, %v1109
    %v1400 = vpack.c.b16 %v1115, %v1110
    %v1401 = vpack.c.b16 %v1116, %v1111
    %v1402 = vpack.c.b16 %v1117, %v1112
    %v1403 = vpack.c.b16 %v1118, %v1113
    %v1404 = vpack.c.b16 %v1124, %v1119
    %v1405 = vpack.c.b16 %v1125, %v1120
    %v1406 = vpack.c.b16 %v1126, %v1121
    %v1407 = vpack.c.b16 %v1127, %v1122
    %v1408 = vpack.c.b16 %v1128, %v1123
    %v1409 = vpack.c.b16 %v1134, %v1129
    %v1410 = vpack.c.b16 %v1135, %v1130
    %v1411 = vpack.c.b16 %v1136, %v1131
    %v1412 = vpack.c.b16 %v1137, %v1132
    %v1413 = vpack.c.b16 %v1138, %v1133
    %v1414 = vpack.c.b16 %v1144, %v1139
    %v1415 = vpack.c.b16 %v1145, %v1140
    %v1416 = vpack.c.b16 %v1146, %v1141
    %v1417 = vpack.c.b16 %v1147, %v1142
    %v1418 = vpack.c.b16 %v1148, %v1143
    %v1419 = vpack.c.b16 %v1154, %v1149
    %v1420 = vpack.c.b16 %v1155, %v1150
    %v1421 = vpack.c.b16 %v1156, %v1151
    %v1422 = vpack.c.b16 %v1157, %v1152
    %v1423 = vpack.c.b16 %v1158, %v1153
    %v1424 = vpack.c.b16 %v1164, %v1159
    %v1425 = vpack.c.b16 %v1165, %v1160
    %v1426 = vpack.c.b16 %v1166, %v1161
    %v1427 = vpack.c.b16 %v1167, %v1162
    %v1428 = vpack.c.b16 %v1168, %v1163
    %v1429 = vpack.c.b16 %v1174, %v1169
    %v1430 = vpack.c.b16 %v1175, %v1170
    %v1431 = vpack.c.b16 %v1176, %v1171
    %v1432 = vpack.c.b16 %v1177, %v1172
    %v1433 = vpack.c.b16 %v1178, %v1173
    %v1434 = vpack.c.b16 %v1184, %v1179
    %v1435 = vpack.c.b16 %v1185, %v1180
    %v1436 = vpack.c.b16 %v1186, %v1181
    %v1437 = vpack.c.b16 %v1187, %v1182
    %v1438 = vpack.c.b16 %v1188, %v1183
    %v1439 = vpack.c.b16 %v1194, %v1189
    %v1440 = vpack.c.b16 %v1195, %v1190
    %v1441 = vpack.c.b16 %v1196, %v1191
    %v1442 = vpack.c.b16 %v1197, %v1192
    %v1443 = vpack.c.b16 %v1198, %v1193
    %v1769 = vunpack.c.l.b16 %v335
    %v1770 = vunpack.c.h.b16 %v335
    %v1771 = vunpack.c.l.b16 %v336
    %v1772 = vunpack.c.h.b16 %v336
    %v1773 = vunpack.c.l.b16 %v337
    %v1774 = vunpack.c.h.b16 %v337
    %v1775 = vunpack.c.l.b16 %v338
    %v1776 = vunpack.c.h.b16 %v338
    %v1777 = vunpack.c.l.b16 %v339
    %v1778 = vunpack.c.h.b16 %v339
    %v1779 = vunpack.c.l.b16 %v340
    %v1780 = vunpack.c.h.b16 %v340
    %v1781 = vunpack.c.l.b16 %v341
    %v1782 = vunpack.c.h.b16 %v341
    %v1783 = vunpack.c.l.b16 %v342
    %v1784 = vunpack.c.h.b16 %v342
    %v1785 = vunpack.c.l.b16 %v343
    %v1786 = vunpack.c.h.b16 %v343
    %v1787 = vunpack.c.l.b16 %v344
    %v1788 = vunpack.c.h.b16 %v344
    %v1789 = vunpack.c.l.b16 %v345
    %v1790 = vunpack.c.h.b16 %v345
    %v1791 = vunpack.c.l.b16 %v346
    %v1792 = vunpack.c.h.b16 %v346
    %v1793 = vunpack.c.l.b16 %v347
    %v1794 = vunpack.c.h.b16 %v347
    %v1795 = vunpack.c.l.b16 %v348
    %v1796 = vunpack.c.h.b16 %v348
    %v1797 = vunpack.c.l.b16 %v349
    %v1798 = vunpack.c.h.b16 %v349
    %v1799 = vunpack.c.l.b16 %v350
    %v1800 = vunpack.c.h.b16 %v350
    %v1801 = vunpack.c.l.b16 %v351
    %v1802 = vunpack.c.h.b16 %v351
    %v1803 = vunpack.c.l.b16 %v352
    %v1804 = vunpack.c.h.b16 %v352
    %v1805 = vunpack.c.l.b16 %v353
    %v1806 = vunpack.c.h.b16 %v353
    %v1807 = vunpack.c.l.b16 %v354
    %v1808 = vunpack.c.h.b16 %v354
    %v1809 = vunpack.c.l.b16 %v355
    %v1810 = vunpack.c.h.b16 %v355
    %v1811 = vunpack.c.l.b16 %v356
    %v1812 = vunpack.c.h.b16 %v356
    %v1813 = vunpack.c.l.b16 %v357
    %v1814 = vunpack.c.h.b16 %v357
    %v1815 = vunpack.c.l.b16 %v358
    %v1816 = vunpack.c.h.b16 %v358
    %v1817 = vunpack.c.l.b16 %v359
    %v1818 = vunpack.c.h.b16 %v359
    %v1819 = vunpack.c.l.b16 %v360
    %v1820 = vunpack.c.h.b16 %v360
    %v1821 = vunpack.c.l.b16 %v361
    %v1822 = vunpack.c.h.b16 %v361
    %v1823 = vunpack.c.l.b16 %v362
    %v1824 = vunpack.c.h.b16 %v362
    %v1825 = vunpack.c.l.b16 %v363
    %v1826 = vunpack.c.h.b16 %v363
    %v1827 = vunpack.c.l.b16 %v364
    %v1828 = vunpack.c.h.b16 %v364
    %v1829 = vunpack.c.l.b16 %v365
    %v1830 = vunpack.c.h.b16 %v365
    %v1831 = vunpack.c.l.b16 %v366
    %v1832 = vunpack.c.h.b16 %v366
    %v1833 = vunpack.c.l.b16 %v367
    %v1834 = vunpack.c.h.b16 %v367
    %v1835 = vunpack.c.l.b16 %v368
    %v1836 = vunpack.c.h.b16 %v368
    %v1837 = vunpack.c.l.b16 %v369
    %v1838 = vunpack.c.h.b16 %v369
    %v1839 = vunpack.c.l.b16 %v370
    %v1840 = vunpack.c.h.b16 %v370
    %v1841 = vunpack.c.l.b16 %v371
    %v1842 = vunpack.c.h.b16 %v371
    %v1843 = vunpack.c.l.b16 %v372
    %v1844 = vunpack.c.h.b16 %v372
    %v1845 = vunpack.c.l.b16 %v373
    %v1846 = vunpack.c.h.b16 %v373
    %v1847 = vunpack.c.l.b16 %v374
    %v1848 = vunpack.c.h.b16 %v374
    %v1849 = vunpack.c.l.b16 %v375
    %v1850 = vunpack.c.h.b16 %v375
    %v1851 = vunpack.c.l.b16 %v376
    %v1852 = vunpack.c.h.b16 %v376
    %v1853 = vunpack.c.l.b16 %v377
    %v1854 = vunpack.c.h.b16 %v377
    %v1855 = vunpack.c.l.b16 %v378
    %v1856 = vunpack.c.h.b16 %v378
    %v1857 = vunpack.c.l.b16 %v379
    %v1858 = vunpack.c.h.b16 %v379
    %v1859 = vunpack.c.l.b16 %v380
    %v1860 = vunpack.c.h.b16 %v380
    %v1861 = vunpack.c.l.b16 %v381
    %v1862 = vunpack.c.h.b16 %v381
    %v1863 = vunpack.c.l.b16 %v382
    %v1864 = vunpack.c.h.b16 %v382
    %v1865 = vunpack.c.l.b16 %v383
    %v1866 = vunpack.c.h.b16 %v383
    %v1867 = vunpack.c.l.b16 %v384
    %v1868 = vunpack.c.h.b16 %v384
    %v1869 = vunpack.c.l.b16 %v385
    %v1870 = vunpack.c.h.b16 %v385
    %v1871 = vunpack.c.l.b16 %v386
    %v1872 = vunpack.c.h.b16 %v386
    %v1873 = vunpack.c.l.b16 %v387
    %v1874 = vunpack.c.h.b16 %v387
    %v1875 = vunpack.c.l.b16 %v388
    %v1876 = vunpack.c.h.b16 %v388
    %v1877 = vunpack.c.l.b16 %v389
    %v1878 = vunpack.c.h.b16 %v389
    %v1879 = vunpack.c.l.b16 %v390
    %v1880 = vunpack.c.h.b16 %v390
    %v1881 = vunpack.c.l.b16 %v391
    %v1882 = vunpack.c.h.b16 %v391
    %v1883 = vunpack.c.l.b16 %v392
    %v1884 = vunpack.c.h.b16 %v392
    %v1885 = vunpack.c.l.b16 %v393
    %v1886 = vunpack.c.h.b16 %v393
    %v1887 = vunpack.c.l.b16 %v394
    %v1888 = vunpack.c.h.b16 %v394
    %v1889 = vunpack.c.l.b16 %v395
    %v1890 = vunpack.c.h.b16 %v395
    %v1891 = vunpack.c.l.b16 %v396
    %v1892 = vunpack.c.h.b16 %v396
    %v1893 = vunpack.c.l.b16 %v397
    %v1894 = vunpack.c.h.b16 %v397
    %v1895 = vunpack.c.l.b16 %v398
    %v1896 = vunpack.c.h.b16 %v398
    %v1897 = vunpack.c.l.b16 %v399
    %v1898 = vunpack.c.h.b16 %v399
    %v1899 = vunpack.c.l.b16 %v400
    %v1900 = vunpack.c.h.b16 %v400
    %v1901 = vunpack.c.l.b16 %v401
    %v1902 = vunpack.c.h.b16 %v401
    %v1903 = vunpack.c.l.b16 %v402
    %v1904 = vunpack.c.h.b16 %v402
    %v1905 = vunpack.c.l.b16 %v403
    %v1906 = vunpack.c.h.b16 %v403
    %v1907 = vunpack.c.l.b16 %v404
    %v1908 = vunpack.c.h.b16 %v404
    %v1909 = vunpack.c.l.b16 %v405
    %v1910 = vunpack.c.h.b16 %v405
    %v1911 = vunpack.c.l.b16 %v406
    %v1912 = vunpack.c.h.b16 %v406
    %v1913 = vunpack.c.l.b16 %v407
    %v1914 = vunpack.c.h.b16 %v407
    %v1915 = vunpack.c.l.b16 %v408
    %v1916 = vunpack.c.h.b16 %v408
    %v1917 = vunpack.c.l.b16 %v409
    %v1918 = vunpack.c.h.b16 %v409
    %v1919 = vunpack.c.l.b16 %v410
    %v1920 = vunpack.c.h.b16 %v410
    %v1921 = vunpack.c.l.b16 %v411
    %v1922 = vunpack.c.h.b16 %v411
    %v1923 = vunpack.c.l.b16 %v412
    %v1924 = vunpack.c.h.b16 %v412
    %v1925 = vunpack.c.l.b16 %v413
    %v1926 = vunpack.c.h.b16 %v413
    %v1927 = vunpack.c.l.b16 %v414
    %v1928 = vunpack.c.h.b16 %v414
    %v1929 = vpack.c.b16 %v1771, %v1769
    %v1930 = vpack.c.b16 %v1772, %v1770
    %v1931 = vpack.c.b16 %v1775, %v1773
    %v1932 = vpack.c.b16 %v1776, %v1774
    %v1933 = vpack.c.b16 %v1779, %v1777
    %v1934 = vpack.c.b16 %v1780, %v1778
    %v1935 = vpack.c.b16 %v1783, %v1781
    %v1936 = vpack.c.b16 %v1784, %v1782
    %v1937 = vpack.c.b16 %v1787, %v1785
    %v1938 = vpack.c.b16 %v1788, %v1786
    %v1939 = vpack.c.b16 %v1791, %v1789
    %v1940 = vpack.c.b16 %v1792, %v1790
    %v1941 = vpack.c.b16 %v1795, %v1793
    %v1942 = vpack.c.b16 %v1796, %v1794
    %v1943 = vpack.c.b16 %v1799, %v1797
    %v1944 = vpack.c.b16 %v1800, %v1798
    %v1945 = vpack.c.b16 %v1803, %v1801
    %v1946 = vpack.c.b16 %v1804, %v1802
    %v1947 = vpack.c.b16 %v1807, %v1805
    %v1948 = vpack.c.b16 %v1808, %v1806
    %v1949 = vpack.c.b16 %v1811, %v1809
    %v1950 = vpack.c.b16 %v1812, %v1810
    %v1951 = vpack.c.b16 %v1815, %v1813
    %v1952 = vpack.c.b16 %v1816, %v1814
    %v1953 = vpack.c.b16 %v1819, %v1817
    %v1954 = vpack.c.b16 %v1820, %v1818
    %v1955 = vpack.c.b16 %v1823, %v1821
    %v1956 = vpack.c.b16 %v1824, %v1822
    %v1957 = vpack.c.b16 %v1827, %v1825
    %v1958 = vpack.c.b16 %v1828, %v1826
    %v1959 = vpack.c.b16 %v1831, %v1829
    %v1960 = vpack.c.b16 %v1832, %v1830
    %v1961 = vpack.c.b16 %v1835, %v1833
    %v1962 = vpack.c.b16 %v1836, %v1834
    %v1963 = vpack.c.b16 %v1839, %v1837
    %v1964 = vpack.c.b16 %v1840, %v1838
    %v1965 = vpack.c.b16 %v1843, %v1841
    %v1966 = vpack.c.b16 %v1844, %v1842
    %v1967 = vpack.c.b16 %v1847, %v1845
    %v1968 = vpack.c.b16 %v1848, %v1846
    %v1969 = vpack.c.b16 %v1851, %v1849
    %v1970 = vpack.c.b16 %v1852, %v1850
    %v1971 = vpack.c.b16 %v1855, %v1853
    %v1972 = vpack.c.b16 %v1856, %v1854
    %v1973 = vpack.c.b16 %v1859, %v1857
    %v1974 = vpack.c.b16 %v1860, %v1858
    %v1975 = vpack.c.b16 %v1863, %v1861
    %v1976 = vpack.c.b16 %v1864, %v1862
    %v1977 = vpack.c.b16 %v1867, %v1865
    %v1978 = vpack.c.b16 %v1868, %v1866
    %v1979 = vpack.c.b16 %v1871, %v1869
    %v1980 = vpack.c.b16 %v1872, %v1870
    %v1981 = vpack.c.b16 %v1875, %v1873
    %v1982 = vpack.c.b16 %v1876, %v1874
    %v1983 = vpack.c.b16 %v1879, %v1877
    %v1984 = vpack.c.b16 %v1880, %v1878
    %v1985 = vpack.c.b16 %v1883, %v1881
    %v1986 = vpack.c.b16 %v1884, %v1882
    %v1987 = vpack.c.b16 %v1887, %v1885
    %v1988 = vpack.c.b16 %v1888, %v1886
    %v1989 = vpack.c.b16 %v1891, %v1889
    %v1990 = vpack.c.b16 %v1892, %v1890
    %v1991 = vpack.c.b16 %v1895, %v1893
    %v1992 = vpack.c.b16 %v1896, %v1894
    %v1993 = vpack.c.b16 %v1899, %v1897
    %v1994 = vpack.c.b16 %v1900, %v1898
    %v1995 = vpack.c.b16 %v1903, %v1901
    %v1996 = vpack.c.b16 %v1904, %v1902
    %v1997 = vpack.c.b16 %v1907, %v1905
    %v1998 = vpack.c.b16 %v1908, %v1906
    %v1999 = vpack.c.b16 %v1911, %v1909
    %v2000 = vpack.c.b16 %v1912, %v1910
    %v2001 = vpack.c.b16 %v1915, %v1913
    %v2002 = vpack.c.b16 %v1916, %v1914
    %v2003 = vpack.c.b16 %v1919, %v1917
    %v2004 = vpack.c.b16 %v1920, %v1918
    %v2005 = vpack.c.b16 %v1923, %v1921
    %v2006 = vpack.c.b16 %v1924, %v1922
    %v2007 = vpack.c.b16 %v1927, %v1925
    %v2008 = vpack.c.b16 %v1928, %v1926
    %2089 = vmatprep.subr.bf16.mxu0 %v1944
    %2090 = vmatpush1.bf16.msra.mxu0 %v1943
    %2091 = vmatprep.subr.bf16.mxu0 %v1942
    %2092 = vmatpush1.bf16.msra.mxu0 %v1941
    %2093 = vmatprep.subr.bf16.mxu0 %v1940
    %2094 = vmatpush1.bf16.msra.mxu0 %v1939
    %2095 = vmatprep.subr.bf16.mxu0 %v1938
    %2096 = vmatpush1.bf16.msra.mxu0 %v1937
    %2097 = vmatprep.subr.bf16.mxu0 %v1936
    %2098 = vmatpush1.bf16.msra.mxu0 %v1935
    %2099 = vmatprep.subr.bf16.mxu0 %v1934
    %2100 = vmatpush1.bf16.msra.mxu0 %v1933
    %2101 = vmatprep.subr.bf16.mxu0 %v1932
    %2102 = vmatpush1.bf16.msra.mxu0 %v1931
    %2103 = vmatprep.subr.bf16.mxu0 %v1930
    %2104 = vmatpush1.bf16.msra.mxu0 %v1929
    %2105 = vmatprep.subr.bf16.mxu0 %v1960
    %2106 = vmatpush2.bf16.msra.mxu0 %v1959
    %2107 = vmatprep.subr.bf16.mxu0 %v1958
    %2108 = vmatpush2.bf16.msra.mxu0 %v1957
    %2109 = vmatprep.subr.bf16.mxu0 %v1956
    %2110 = vmatpush2.bf16.msra.mxu0 %v1955
    %2111 = vmatprep.subr.bf16.mxu0 %v1954
    %2112 = vmatpush2.bf16.msra.mxu0 %v1953
    %2113 = vmatprep.subr.bf16.mxu0 %v1952
    %2114 = vmatpush2.bf16.msra.mxu0 %v1951
    %2115 = vmatprep.subr.bf16.mxu0 %v1950
    %2116 = vmatpush2.bf16.msra.mxu0 %v1949
    %2117 = vmatprep.subr.bf16.mxu0 %v1948
    %2118 = vmatpush2.bf16.msra.mxu0 %v1947
    %2119 = vmatprep.subr.bf16.mxu0 %v1946
    %2120 = vmatpush2.bf16.msra.mxu0 %v1945
    %2121 = vmatprep.mubr.bf16.mxu0 %v1200
    %2122 = vmatmul.mubr.bf16.gmra.mxu0 %v1199
    %v2123 = vpop.f32.mrf.mxu0
    %v2124 = vadd.f32 0.0, %v2123
    %v2125 = vpop.f32.mrf.mxu0
    %v2126 = vadd.f32 0.0, %v2125
    %v2127 = vpop.f32.mrf.mxu0
    %v2128 = vadd.f32 0.0, %v2127
    %v2129 = vpop.f32.mrf.mxu0
    %v2130 = vadd.f32 0.0, %v2129
    %2131 = vmatprep.mubr.bf16.mxu0 %v1205
    %2132 = vmatmul.mubr.bf16.gmra.mxu0 %v1204
    %v2133 = vpop.f32.mrf.mxu0
    %v2134 = vadd.f32 0.0, %v2133
    %v2135 = vpop.f32.mrf.mxu0
    %v2136 = vadd.f32 0.0, %v2135
    %v2137 = vpop.f32.mrf.mxu0
    %v2138 = vadd.f32 0.0, %v2137
    %v2139 = vpop.f32.mrf.mxu0
    %v2140 = vadd.f32 0.0, %v2139
    %2141 = vmatprep.mubr.bf16.mxu0 %v1210
    %2142 = vmatmul.mubr.bf16.gmra.mxu0 %v1209
    %v2143 = vpop.f32.mrf.mxu0
    %v2144 = vadd.f32 0.0, %v2143
    %v2145 = vpop.f32.mrf.mxu0
    %v2146 = vadd.f32 0.0, %v2145
    %v2147 = vpop.f32.mrf.mxu0
    %v2148 = vadd.f32 0.0, %v2147
    %v2149 = vpop.f32.mrf.mxu0
    %v2150 = vadd.f32 0.0, %v2149
    %2151 = vmatprep.mubr.bf16.mxu0 %v1215
    %2152 = vmatmul.mubr.bf16.gmra.mxu0 %v1214
    %v2153 = vpop.f32.mrf.mxu0
    %v2154 = vadd.f32 0.0, %v2153
    %v2155 = vpop.f32.mrf.mxu0
    %v2156 = vadd.f32 0.0, %v2155
    %v2157 = vpop.f32.mrf.mxu0
    %v2158 = vadd.f32 0.0, %v2157
    %v2159 = vpop.f32.mrf.mxu0
    %v2160 = vadd.f32 0.0, %v2159
    %2161 = vmatprep.mubr.bf16.mxu0 %v1220
    %2162 = vmatmul.mubr.bf16.gmra.mxu0 %v1219
    %v2163 = vpop.f32.mrf.mxu0
    %v2164 = vadd.f32 0.0, %v2163
    %v2165 = vpop.f32.mrf.mxu0
    %v2166 = vadd.f32 0.0, %v2165
    %v2167 = vpop.f32.mrf.mxu0
    %v2168 = vadd.f32 0.0, %v2167
    %v2169 = vpop.f32.mrf.mxu0
    %v2170 = vadd.f32 0.0, %v2169
    %2171 = vmatprep.mubr.bf16.mxu0 %v1225
    %2172 = vmatmul.mubr.bf16.gmra.mxu0 %v1224
    %v2173 = vpop.f32.mrf.mxu0
    %v2174 = vadd.f32 0.0, %v2173
    %v2175 = vpop.f32.mrf.mxu0
    %v2176 = vadd.f32 0.0, %v2175
    %v2177 = vpop.f32.mrf.mxu0
    %v2178 = vadd.f32 0.0, %v2177
    %v2179 = vpop.f32.mrf.mxu0
    %v2180 = vadd.f32 0.0, %v2179
    %2181 = vmatprep.mubr.bf16.mxu0 %v1230
    %2182 = vmatmul.mubr.bf16.gmra.mxu0 %v1229
    %v2183 = vpop.f32.mrf.mxu0
    %v2184 = vadd.f32 0.0, %v2183
    %v2185 = vpop.f32.mrf.mxu0
    %v2186 = vadd.f32 0.0, %v2185
    %v2187 = vpop.f32.mrf.mxu0
    %v2188 = vadd.f32 0.0, %v2187
    %v2189 = vpop.f32.mrf.mxu0
    %v2190 = vadd.f32 0.0, %v2189
    %2191 = vmatprep.mubr.bf16.mxu0 %v1235
    %2192 = vmatmul.mubr.bf16.gmra.mxu0 %v1234
    %v2193 = vpop.f32.mrf.mxu0
    %v2194 = vadd.f32 0.0, %v2193
    %v2195 = vpop.f32.mrf.mxu0
    %v2196 = vadd.f32 0.0, %v2195
    %v2197 = vpop.f32.mrf.mxu0
    %v2198 = vadd.f32 0.0, %v2197
    %v2199 = vpop.f32.mrf.mxu0
    %v2200 = vadd.f32 0.0, %v2199
    %2201 = vmatprep.mubr.bf16.mxu0 %v1240
    %2202 = vmatmul.mubr.bf16.gmra.mxu0 %v1239
    %v2203 = vpop.f32.mrf.mxu0
    %v2204 = vadd.f32 0.0, %v2203
    %v2205 = vpop.f32.mrf.mxu0
    %v2206 = vadd.f32 0.0, %v2205
    %v2207 = vpop.f32.mrf.mxu0
    %v2208 = vadd.f32 0.0, %v2207
    %v2209 = vpop.f32.mrf.mxu0
    %v2210 = vadd.f32 0.0, %v2209
    %2211 = vmatprep.mubr.bf16.mxu0 %v1245
    %2212 = vmatmul.mubr.bf16.gmra.mxu0 %v1244
    %v2213 = vpop.f32.mrf.mxu0
    %v2214 = vadd.f32 0.0, %v2213
    %v2215 = vpop.f32.mrf.mxu0
    %v2216 = vadd.f32 0.0, %v2215
    %v2217 = vpop.f32.mrf.mxu0
    %v2218 = vadd.f32 0.0, %v2217
    %v2219 = vpop.f32.mrf.mxu0
    %v2220 = vadd.f32 0.0, %v2219
    %2221 = vmatprep.mubr.bf16.mxu0 %v1250
    %2222 = vmatmul.mubr.bf16.gmra.mxu0 %v1249
    %v2223 = vpop.f32.mrf.mxu0
    %v2224 = vadd.f32 0.0, %v2223
    %v2225 = vpop.f32.mrf.mxu0
    %v2226 = vadd.f32 0.0, %v2225
    %v2227 = vpop.f32.mrf.mxu0
    %v2228 = vadd.f32 0.0, %v2227
    %v2229 = vpop.f32.mrf.mxu0
    %v2230 = vadd.f32 0.0, %v2229
    %2231 = vmatprep.mubr.bf16.mxu0 %v1255
    %2232 = vmatmul.mubr.bf16.gmra.mxu0 %v1254
    %v2233 = vpop.f32.mrf.mxu0
    %v2234 = vadd.f32 0.0, %v2233
    %v2235 = vpop.f32.mrf.mxu0
    %v2236 = vadd.f32 0.0, %v2235
    %v2237 = vpop.f32.mrf.mxu0
    %v2238 = vadd.f32 0.0, %v2237
    %v2239 = vpop.f32.mrf.mxu0
    %v2240 = vadd.f32 0.0, %v2239
    %2241 = vmatprep.mubr.bf16.mxu0 %v1260
    %2242 = vmatmul.mubr.bf16.gmra.mxu0 %v1259
    %v2243 = vpop.f32.mrf.mxu0
    %v2244 = vadd.f32 0.0, %v2243
    %v2245 = vpop.f32.mrf.mxu0
    %v2246 = vadd.f32 0.0, %v2245
    %v2247 = vpop.f32.mrf.mxu0
    %v2248 = vadd.f32 0.0, %v2247
    %v2249 = vpop.f32.mrf.mxu0
    %v2250 = vadd.f32 0.0, %v2249
    %2251 = vmatprep.mubr.bf16.mxu0 %v1265
    %2252 = vmatmul.mubr.bf16.gmra.mxu0 %v1264
    %v2253 = vpop.f32.mrf.mxu0
    %v2254 = vadd.f32 0.0, %v2253
    %v2255 = vpop.f32.mrf.mxu0
    %v2256 = vadd.f32 0.0, %v2255
    %v2257 = vpop.f32.mrf.mxu0
    %v2258 = vadd.f32 0.0, %v2257
    %v2259 = vpop.f32.mrf.mxu0
    %v2260 = vadd.f32 0.0, %v2259
    %2261 = vmatprep.mubr.bf16.mxu0 %v1270
    %2262 = vmatmul.mubr.bf16.gmra.mxu0 %v1269
    %v2263 = vpop.f32.mrf.mxu0
    %v2264 = vadd.f32 0.0, %v2263
    %v2265 = vpop.f32.mrf.mxu0
    %v2266 = vadd.f32 0.0, %v2265
    %v2267 = vpop.f32.mrf.mxu0
    %v2268 = vadd.f32 0.0, %v2267
    %v2269 = vpop.f32.mrf.mxu0
    %v2270 = vadd.f32 0.0, %v2269
    %2271 = vmatprep.mubr.bf16.mxu0 %v1275
    %2272 = vmatmul.mubr.bf16.gmra.mxu0 %v1274
    %v2273 = vpop.f32.mrf.mxu0
    %v2274 = vadd.f32 0.0, %v2273
    %v2275 = vpop.f32.mrf.mxu0
    %v2276 = vadd.f32 0.0, %v2275
    %v2277 = vpop.f32.mrf.mxu0
    %v2278 = vadd.f32 0.0, %v2277
    %v2279 = vpop.f32.mrf.mxu0
    %v2280 = vadd.f32 0.0, %v2279
    %2281 = vmatprep.mubr.bf16.mxu0 %v1280
    %2282 = vmatmul.mubr.bf16.gmra.mxu0 %v1279
    %v2283 = vpop.f32.mrf.mxu0
    %v2284 = vadd.f32 0.0, %v2283
    %v2285 = vpop.f32.mrf.mxu0
    %v2286 = vadd.f32 0.0, %v2285
    %v2287 = vpop.f32.mrf.mxu0
    %v2288 = vadd.f32 0.0, %v2287
    %v2289 = vpop.f32.mrf.mxu0
    %v2290 = vadd.f32 0.0, %v2289
    %2291 = vmatprep.mubr.bf16.mxu0 %v1285
    %2292 = vmatmul.mubr.bf16.gmra.mxu0 %v1284
    %v2293 = vpop.f32.mrf.mxu0
    %v2294 = vadd.f32 0.0, %v2293
    %v2295 = vpop.f32.mrf.mxu0
    %v2296 = vadd.f32 0.0, %v2295
    %v2297 = vpop.f32.mrf.mxu0
    %v2298 = vadd.f32 0.0, %v2297
    %v2299 = vpop.f32.mrf.mxu0
    %v2300 = vadd.f32 0.0, %v2299
    %2301 = vmatprep.mubr.bf16.mxu0 %v1290
    %2302 = vmatmul.mubr.bf16.gmra.mxu0 %v1289
    %v2303 = vpop.f32.mrf.mxu0
    %v2304 = vadd.f32 0.0, %v2303
    %v2305 = vpop.f32.mrf.mxu0
    %v2306 = vadd.f32 0.0, %v2305
    %v2307 = vpop.f32.mrf.mxu0
    %v2308 = vadd.f32 0.0, %v2307
    %v2309 = vpop.f32.mrf.mxu0
    %v2310 = vadd.f32 0.0, %v2309
    %2311 = vmatprep.mubr.bf16.mxu0 %v1295
    %2312 = vmatmul.mubr.bf16.gmra.mxu0 %v1294
    %v2313 = vpop.f32.mrf.mxu0
    %v2314 = vadd.f32 0.0, %v2313
    %v2315 = vpop.f32.mrf.mxu0
    %v2316 = vadd.f32 0.0, %v2315
    %v2317 = vpop.f32.mrf.mxu0
    %v2318 = vadd.f32 0.0, %v2317
    %v2319 = vpop.f32.mrf.mxu0
    %v2320 = vadd.f32 0.0, %v2319
    %2321 = vmatprep.mubr.bf16.mxu0 %v1300
    %2322 = vmatmul.mubr.bf16.gmra.mxu0 %v1299
    %v2323 = vpop.f32.mrf.mxu0
    %v2324 = vadd.f32 0.0, %v2323
    %v2325 = vpop.f32.mrf.mxu0
    %v2326 = vadd.f32 0.0, %v2325
    %v2327 = vpop.f32.mrf.mxu0
    %v2328 = vadd.f32 0.0, %v2327
    %v2329 = vpop.f32.mrf.mxu0
    %v2330 = vadd.f32 0.0, %v2329
    %2331 = vmatprep.mubr.bf16.mxu0 %v1305
    %2332 = vmatmul.mubr.bf16.gmra.mxu0 %v1304
    %v2333 = vpop.f32.mrf.mxu0
    %v2334 = vadd.f32 0.0, %v2333
    %v2335 = vpop.f32.mrf.mxu0
    %v2336 = vadd.f32 0.0, %v2335
    %v2337 = vpop.f32.mrf.mxu0
    %v2338 = vadd.f32 0.0, %v2337
    %v2339 = vpop.f32.mrf.mxu0
    %v2340 = vadd.f32 0.0, %v2339
    %2341 = vmatprep.mubr.bf16.mxu0 %v1310
    %2342 = vmatmul.mubr.bf16.gmra.mxu0 %v1309
    %v2343 = vpop.f32.mrf.mxu0
    %v2344 = vadd.f32 0.0, %v2343
    %v2345 = vpop.f32.mrf.mxu0
    %v2346 = vadd.f32 0.0, %v2345
    %v2347 = vpop.f32.mrf.mxu0
    %v2348 = vadd.f32 0.0, %v2347
    %v2349 = vpop.f32.mrf.mxu0
    %v2350 = vadd.f32 0.0, %v2349
    %2351 = vmatprep.mubr.bf16.mxu0 %v1315
    %2352 = vmatmul.mubr.bf16.gmra.mxu0 %v1314
    %v2353 = vpop.f32.mrf.mxu0
    %v2354 = vadd.f32 0.0, %v2353
    %v2355 = vpop.f32.mrf.mxu0
    %v2356 = vadd.f32 0.0, %v2355
    %v2357 = vpop.f32.mrf.mxu0
    %v2358 = vadd.f32 0.0, %v2357
    %v2359 = vpop.f32.mrf.mxu0
    %v2360 = vadd.f32 0.0, %v2359
    %2361 = vmatprep.mubr.bf16.mxu0 %v1320
    %2362 = vmatmul.mubr.bf16.gmra.mxu0 %v1319
    %v2363 = vpop.f32.mrf.mxu0
    %v2364 = vadd.f32 0.0, %v2363
    %v2365 = vpop.f32.mrf.mxu0
    %v2366 = vadd.f32 0.0, %v2365
    %v2367 = vpop.f32.mrf.mxu0
    %v2368 = vadd.f32 0.0, %v2367
    %v2369 = vpop.f32.mrf.mxu0
    %v2370 = vadd.f32 0.0, %v2369
    %2371 = vmatprep.mubr.bf16.mxu0 %v1325
    %2372 = vmatmul.mubr.bf16.gmra.mxu0 %v1324
    %v2373 = vpop.f32.mrf.mxu0
    %v2374 = vadd.f32 0.0, %v2373
    %v2375 = vpop.f32.mrf.mxu0
    %v2376 = vadd.f32 0.0, %v2375
    %v2377 = vpop.f32.mrf.mxu0
    %v2378 = vadd.f32 0.0, %v2377
    %v2379 = vpop.f32.mrf.mxu0
    %v2380 = vadd.f32 0.0, %v2379
    %2381 = vmatprep.mubr.bf16.mxu0 %v1330
    %2382 = vmatmul.mubr.bf16.gmra.mxu0 %v1329
    %v2383 = vpop.f32.mrf.mxu0
    %v2384 = vadd.f32 0.0, %v2383
    %v2385 = vpop.f32.mrf.mxu0
    %v2386 = vadd.f32 0.0, %v2385
    %v2387 = vpop.f32.mrf.mxu0
    %v2388 = vadd.f32 0.0, %v2387
    %v2389 = vpop.f32.mrf.mxu0
    %v2390 = vadd.f32 0.0, %v2389
    %2391 = vmatprep.mubr.bf16.mxu0 %v1335
    %2392 = vmatmul.mubr.bf16.gmra.mxu0 %v1334
    %v2393 = vpop.f32.mrf.mxu0
    %v2394 = vadd.f32 0.0, %v2393
    %v2395 = vpop.f32.mrf.mxu0
    %v2396 = vadd.f32 0.0, %v2395
    %v2397 = vpop.f32.mrf.mxu0
    %v2398 = vadd.f32 0.0, %v2397
    %v2399 = vpop.f32.mrf.mxu0
    %v2400 = vadd.f32 0.0, %v2399
    %2401 = vmatprep.mubr.bf16.mxu0 %v1340
    %2402 = vmatmul.mubr.bf16.gmra.mxu0 %v1339
    %v2403 = vpop.f32.mrf.mxu0
    %v2404 = vadd.f32 0.0, %v2403
    %v2405 = vpop.f32.mrf.mxu0
    %v2406 = vadd.f32 0.0, %v2405
    %v2407 = vpop.f32.mrf.mxu0
    %v2408 = vadd.f32 0.0, %v2407
    %v2409 = vpop.f32.mrf.mxu0
    %v2410 = vadd.f32 0.0, %v2409
    %2411 = vmatprep.mubr.bf16.mxu0 %v1345
    %2412 = vmatmul.mubr.bf16.gmra.mxu0 %v1344
    %v2413 = vpop.f32.mrf.mxu0
    %v2414 = vadd.f32 0.0, %v2413
    %v2415 = vpop.f32.mrf.mxu0
    %v2416 = vadd.f32 0.0, %v2415
    %v2417 = vpop.f32.mrf.mxu0
    %v2418 = vadd.f32 0.0, %v2417
    %v2419 = vpop.f32.mrf.mxu0
    %v2420 = vadd.f32 0.0, %v2419
    %2421 = vmatprep.mubr.bf16.mxu0 %v1350
    %2422 = vmatmul.mubr.bf16.gmra.mxu0 %v1349
    %v2423 = vpop.f32.mrf.mxu0
    %v2424 = vadd.f32 0.0, %v2423
    %v2425 = vpop.f32.mrf.mxu0
    %v2426 = vadd.f32 0.0, %v2425
    %v2427 = vpop.f32.mrf.mxu0
    %v2428 = vadd.f32 0.0, %v2427
    %v2429 = vpop.f32.mrf.mxu0
    %v2430 = vadd.f32 0.0, %v2429
    %2431 = vmatprep.mubr.bf16.mxu0 %v1355
    %2432 = vmatmul.mubr.bf16.gmra.mxu0 %v1354
    %v2433 = vpop.f32.mrf.mxu0
    %v2434 = vadd.f32 0.0, %v2433
    %v2435 = vpop.f32.mrf.mxu0
    %v2436 = vadd.f32 0.0, %v2435
    %v2437 = vpop.f32.mrf.mxu0
    %v2438 = vadd.f32 0.0, %v2437
    %v2439 = vpop.f32.mrf.mxu0
    %v2440 = vadd.f32 0.0, %v2439
    %2441 = vmatprep.mubr.bf16.mxu0 %v1360
    %2442 = vmatmul.mubr.bf16.gmra.mxu0 %v1359
    %v2443 = vpop.f32.mrf.mxu0
    %v2444 = vadd.f32 0.0, %v2443
    %v2445 = vpop.f32.mrf.mxu0
    %v2446 = vadd.f32 0.0, %v2445
    %v2447 = vpop.f32.mrf.mxu0
    %v2448 = vadd.f32 0.0, %v2447
    %v2449 = vpop.f32.mrf.mxu0
    %v2450 = vadd.f32 0.0, %v2449
    %2451 = vmatprep.mubr.bf16.mxu0 %v1365
    %2452 = vmatmul.mubr.bf16.gmra.mxu0 %v1364
    %v2453 = vpop.f32.mrf.mxu0
    %v2454 = vadd.f32 0.0, %v2453
    %v2455 = vpop.f32.mrf.mxu0
    %v2456 = vadd.f32 0.0, %v2455
    %v2457 = vpop.f32.mrf.mxu0
    %v2458 = vadd.f32 0.0, %v2457
    %v2459 = vpop.f32.mrf.mxu0
    %v2460 = vadd.f32 0.0, %v2459
    %2461 = vmatprep.mubr.bf16.mxu0 %v1370
    %2462 = vmatmul.mubr.bf16.gmra.mxu0 %v1369
    %v2463 = vpop.f32.mrf.mxu0
    %v2464 = vadd.f32 0.0, %v2463
    %v2465 = vpop.f32.mrf.mxu0
    %v2466 = vadd.f32 0.0, %v2465
    %v2467 = vpop.f32.mrf.mxu0
    %v2468 = vadd.f32 0.0, %v2467
    %v2469 = vpop.f32.mrf.mxu0
    %v2470 = vadd.f32 0.0, %v2469
    %2471 = vmatprep.mubr.bf16.mxu0 %v1375
    %2472 = vmatmul.mubr.bf16.gmra.mxu0 %v1374
    %v2473 = vpop.f32.mrf.mxu0
    %v2474 = vadd.f32 0.0, %v2473
    %v2475 = vpop.f32.mrf.mxu0
    %v2476 = vadd.f32 0.0, %v2475
    %v2477 = vpop.f32.mrf.mxu0
    %v2478 = vadd.f32 0.0, %v2477
    %v2479 = vpop.f32.mrf.mxu0
    %v2480 = vadd.f32 0.0, %v2479
    %2481 = vmatprep.mubr.bf16.mxu0 %v1380
    %2482 = vmatmul.mubr.bf16.gmra.mxu0 %v1379
    %v2483 = vpop.f32.mrf.mxu0
    %v2484 = vadd.f32 0.0, %v2483
    %v2485 = vpop.f32.mrf.mxu0
    %v2486 = vadd.f32 0.0, %v2485
    %v2487 = vpop.f32.mrf.mxu0
    %v2488 = vadd.f32 0.0, %v2487
    %v2489 = vpop.f32.mrf.mxu0
    %v2490 = vadd.f32 0.0, %v2489
    %2491 = vmatprep.mubr.bf16.mxu0 %v1385
    %2492 = vmatmul.mubr.bf16.gmra.mxu0 %v1384
    %v2493 = vpop.f32.mrf.mxu0
    %v2494 = vadd.f32 0.0, %v2493
    %v2495 = vpop.f32.mrf.mxu0
    %v2496 = vadd.f32 0.0, %v2495
    %v2497 = vpop.f32.mrf.mxu0
    %v2498 = vadd.f32 0.0, %v2497
    %v2499 = vpop.f32.mrf.mxu0
    %v2500 = vadd.f32 0.0, %v2499
    %2501 = vmatprep.mubr.bf16.mxu0 %v1390
    %2502 = vmatmul.mubr.bf16.gmra.mxu0 %v1389
    %v2503 = vpop.f32.mrf.mxu0
    %v2504 = vadd.f32 0.0, %v2503
    %v2505 = vpop.f32.mrf.mxu0
    %v2506 = vadd.f32 0.0, %v2505
    %v2507 = vpop.f32.mrf.mxu0
    %v2508 = vadd.f32 0.0, %v2507
    %v2509 = vpop.f32.mrf.mxu0
    %v2510 = vadd.f32 0.0, %v2509
    %2511 = vmatprep.mubr.bf16.mxu0 %v1395
    %2512 = vmatmul.mubr.bf16.gmra.mxu0 %v1394
    %v2513 = vpop.f32.mrf.mxu0
    %v2514 = vadd.f32 0.0, %v2513
    %v2515 = vpop.f32.mrf.mxu0
    %v2516 = vadd.f32 0.0, %v2515
    %v2517 = vpop.f32.mrf.mxu0
    %v2518 = vadd.f32 0.0, %v2517
    %v2519 = vpop.f32.mrf.mxu0
    %v2520 = vadd.f32 0.0, %v2519
    %2521 = vmatprep.mubr.bf16.mxu0 %v1400
    %2522 = vmatmul.mubr.bf16.gmra.mxu0 %v1399
    %v2523 = vpop.f32.mrf.mxu0
    %v2524 = vadd.f32 0.0, %v2523
    %v2525 = vpop.f32.mrf.mxu0
    %v2526 = vadd.f32 0.0, %v2525
    %v2527 = vpop.f32.mrf.mxu0
    %v2528 = vadd.f32 0.0, %v2527
    %v2529 = vpop.f32.mrf.mxu0
    %v2530 = vadd.f32 0.0, %v2529
    %2531 = vmatprep.mubr.bf16.mxu0 %v1405
    %2532 = vmatmul.mubr.bf16.gmra.mxu0 %v1404
    %v2533 = vpop.f32.mrf.mxu0
    %v2534 = vadd.f32 0.0, %v2533
    %v2535 = vpop.f32.mrf.mxu0
    %v2536 = vadd.f32 0.0, %v2535
    %v2537 = vpop.f32.mrf.mxu0
    %v2538 = vadd.f32 0.0, %v2537
    %v2539 = vpop.f32.mrf.mxu0
    %v2540 = vadd.f32 0.0, %v2539
    %2541 = vmatprep.mubr.bf16.mxu0 %v1410
    %2542 = vmatmul.mubr.bf16.gmra.mxu0 %v1409
    %v2543 = vpop.f32.mrf.mxu0
    %v2544 = vadd.f32 0.0, %v2543
    %v2545 = vpop.f32.mrf.mxu0
    %v2546 = vadd.f32 0.0, %v2545
    %v2547 = vpop.f32.mrf.mxu0
    %v2548 = vadd.f32 0.0, %v2547
    %v2549 = vpop.f32.mrf.mxu0
    %v2550 = vadd.f32 0.0, %v2549
    %2551 = vmatprep.mubr.bf16.mxu0 %v1415
    %2552 = vmatmul.mubr.bf16.gmra.mxu0 %v1414
    %v2553 = vpop.f32.mrf.mxu0
    %v2554 = vadd.f32 0.0, %v2553
    %v2555 = vpop.f32.mrf.mxu0
    %v2556 = vadd.f32 0.0, %v2555
    %v2557 = vpop.f32.mrf.mxu0
    %v2558 = vadd.f32 0.0, %v2557
    %v2559 = vpop.f32.mrf.mxu0
    %v2560 = vadd.f32 0.0, %v2559
    %2561 = vmatprep.mubr.bf16.mxu0 %v1420
    %2562 = vmatmul.mubr.bf16.gmra.mxu0 %v1419
    %v2563 = vpop.f32.mrf.mxu0
    %v2564 = vadd.f32 0.0, %v2563
    %v2565 = vpop.f32.mrf.mxu0
    %v2566 = vadd.f32 0.0, %v2565
    %v2567 = vpop.f32.mrf.mxu0
    %v2568 = vadd.f32 0.0, %v2567
    %v2569 = vpop.f32.mrf.mxu0
    %v2570 = vadd.f32 0.0, %v2569
    %2571 = vmatprep.mubr.bf16.mxu0 %v1425
    %2572 = vmatmul.mubr.bf16.gmra.mxu0 %v1424
    %v2573 = vpop.f32.mrf.mxu0
    %v2574 = vadd.f32 0.0, %v2573
    %v2575 = vpop.f32.mrf.mxu0
    %v2576 = vadd.f32 0.0, %v2575
    %v2577 = vpop.f32.mrf.mxu0
    %v2578 = vadd.f32 0.0, %v2577
    %v2579 = vpop.f32.mrf.mxu0
    %v2580 = vadd.f32 0.0, %v2579
    %2581 = vmatprep.mubr.bf16.mxu0 %v1430
    %2582 = vmatmul.mubr.bf16.gmra.mxu0 %v1429
    %v2583 = vpop.f32.mrf.mxu0
    %v2584 = vadd.f32 0.0, %v2583
    %v2585 = vpop.f32.mrf.mxu0
    %v2586 = vadd.f32 0.0, %v2585
    %v2587 = vpop.f32.mrf.mxu0
    %v2588 = vadd.f32 0.0, %v2587
    %v2589 = vpop.f32.mrf.mxu0
    %v2590 = vadd.f32 0.0, %v2589
    %2591 = vmatprep.mubr.bf16.mxu0 %v1435
    %2592 = vmatmul.mubr.bf16.gmra.mxu0 %v1434
    %v2593 = vpop.f32.mrf.mxu0
    %v2594 = vadd.f32 0.0, %v2593
    %v2595 = vpop.f32.mrf.mxu0
    %v2596 = vadd.f32 0.0, %v2595
    %v2597 = vpop.f32.mrf.mxu0
    %v2598 = vadd.f32 0.0, %v2597
    %v2599 = vpop.f32.mrf.mxu0
    %v2600 = vadd.f32 0.0, %v2599
    %2601 = vmatprep.mubr.bf16.mxu0 %v1440
    %2602 = vmatmul.mubr.bf16.gmra.mxu0 %v1439
    %v2603 = vpop.f32.mrf.mxu0
    %v2604 = vadd.f32 0.0, %v2603
    %v2605 = vpop.f32.mrf.mxu0
    %v2606 = vadd.f32 0.0, %v2605
    %v2607 = vpop.f32.mrf.mxu0
    %v2608 = vadd.f32 0.0, %v2607
    %v2609 = vpop.f32.mrf.mxu0
    %v2610 = vadd.f32 0.0, %v2609
    %2611 = vdwg.mxu0
    %2612 = vmatprep.subr.bf16.mxu0 %v1976
    %2613 = vmatpush1.bf16.msra.mxu0 %v1975
    %2614 = vmatprep.subr.bf16.mxu0 %v1974
    %2615 = vmatpush1.bf16.msra.mxu0 %v1973
    %2616 = vmatprep.subr.bf16.mxu0 %v1972
    %2617 = vmatpush1.bf16.msra.mxu0 %v1971
    %2618 = vmatprep.subr.bf16.mxu0 %v1970
    %2619 = vmatpush1.bf16.msra.mxu0 %v1969
    %2620 = vmatprep.subr.bf16.mxu0 %v1968
    %2621 = vmatpush1.bf16.msra.mxu0 %v1967
    %2622 = vmatprep.subr.bf16.mxu0 %v1966
    %2623 = vmatpush1.bf16.msra.mxu0 %v1965
    %2624 = vmatprep.subr.bf16.mxu0 %v1964
    %2625 = vmatpush1.bf16.msra.mxu0 %v1963
    %2626 = vmatprep.subr.bf16.mxu0 %v1962
    %2627 = vmatpush1.bf16.msra.mxu0 %v1961
    %2628 = vmatprep.subr.bf16.mxu0 %v1992
    %2629 = vmatpush2.bf16.msra.mxu0 %v1991
    %2630 = vmatprep.subr.bf16.mxu0 %v1990
    %2631 = vmatpush2.bf16.msra.mxu0 %v1989
    %2632 = vmatprep.subr.bf16.mxu0 %v1988
    %2633 = vmatpush2.bf16.msra.mxu0 %v1987
    %2634 = vmatprep.subr.bf16.mxu0 %v1986
    %2635 = vmatpush2.bf16.msra.mxu0 %v1985
    %2636 = vmatprep.subr.bf16.mxu0 %v1984
    %2637 = vmatpush2.bf16.msra.mxu0 %v1983
    %2638 = vmatprep.subr.bf16.mxu0 %v1982
    %2639 = vmatpush2.bf16.msra.mxu0 %v1981
    %2640 = vmatprep.subr.bf16.mxu0 %v1980
    %2641 = vmatpush2.bf16.msra.mxu0 %v1979
    %2642 = vmatprep.subr.bf16.mxu0 %v1978
    %2643 = vmatpush2.bf16.msra.mxu0 %v1977
    %2644 = vmatprep.mubr.bf16.mxu0 %v1202
    %2645 = vmatmul.mubr.bf16.gmra.mxu0 %v1201
    %v2646 = vpop.f32.mrf.mxu0
    %v2647 = vadd.f32 %v2124, %v2646
    %v2648 = vpop.f32.mrf.mxu0
    %v2649 = vadd.f32 %v2126, %v2648
    %v2650 = vpop.f32.mrf.mxu0
    %v2651 = vadd.f32 %v2128, %v2650
    %v2652 = vpop.f32.mrf.mxu0
    %v2653 = vadd.f32 %v2130, %v2652
    %2654 = vmatprep.mubr.bf16.mxu0 %v1207
    %2655 = vmatmul.mubr.bf16.gmra.mxu0 %v1206
    %v2656 = vpop.f32.mrf.mxu0
    %v2657 = vadd.f32 %v2134, %v2656
    %v2658 = vpop.f32.mrf.mxu0
    %v2659 = vadd.f32 %v2136, %v2658
    %v2660 = vpop.f32.mrf.mxu0
    %v2661 = vadd.f32 %v2138, %v2660
    %v2662 = vpop.f32.mrf.mxu0
    %v2663 = vadd.f32 %v2140, %v2662
    %2664 = vmatprep.mubr.bf16.mxu0 %v1212
    %2665 = vmatmul.mubr.bf16.gmra.mxu0 %v1211
    %v2666 = vpop.f32.mrf.mxu0
    %v2667 = vadd.f32 %v2144, %v2666
    %v2668 = vpop.f32.mrf.mxu0
    %v2669 = vadd.f32 %v2146, %v2668
    %v2670 = vpop.f32.mrf.mxu0
    %v2671 = vadd.f32 %v2148, %v2670
    %v2672 = vpop.f32.mrf.mxu0
    %v2673 = vadd.f32 %v2150, %v2672
    %2674 = vmatprep.mubr.bf16.mxu0 %v1217
    %2675 = vmatmul.mubr.bf16.gmra.mxu0 %v1216
    %v2676 = vpop.f32.mrf.mxu0
    %v2677 = vadd.f32 %v2154, %v2676
    %v2678 = vpop.f32.mrf.mxu0
    %v2679 = vadd.f32 %v2156, %v2678
    %v2680 = vpop.f32.mrf.mxu0
    %v2681 = vadd.f32 %v2158, %v2680
    %v2682 = vpop.f32.mrf.mxu0
    %v2683 = vadd.f32 %v2160, %v2682
    %2684 = vmatprep.mubr.bf16.mxu0 %v1222
    %2685 = vmatmul.mubr.bf16.gmra.mxu0 %v1221
    %v2686 = vpop.f32.mrf.mxu0
    %v2687 = vadd.f32 %v2164, %v2686
    %v2688 = vpop.f32.mrf.mxu0
    %v2689 = vadd.f32 %v2166, %v2688
    %v2690 = vpop.f32.mrf.mxu0
    %v2691 = vadd.f32 %v2168, %v2690
    %v2692 = vpop.f32.mrf.mxu0
    %v2693 = vadd.f32 %v2170, %v2692
    %2694 = vmatprep.mubr.bf16.mxu0 %v1227
    %2695 = vmatmul.mubr.bf16.gmra.mxu0 %v1226
    %v2696 = vpop.f32.mrf.mxu0
    %v2697 = vadd.f32 %v2174, %v2696
    %v2698 = vpop.f32.mrf.mxu0
    %v2699 = vadd.f32 %v2176, %v2698
    %v2700 = vpop.f32.mrf.mxu0
    %v2701 = vadd.f32 %v2178, %v2700
    %v2702 = vpop.f32.mrf.mxu0
    %v2703 = vadd.f32 %v2180, %v2702
    %2704 = vmatprep.mubr.bf16.mxu0 %v1232
    %2705 = vmatmul.mubr.bf16.gmra.mxu0 %v1231
    %v2706 = vpop.f32.mrf.mxu0
    %v2707 = vadd.f32 %v2184, %v2706
    %v2708 = vpop.f32.mrf.mxu0
    %v2709 = vadd.f32 %v2186, %v2708
    %v2710 = vpop.f32.mrf.mxu0
    %v2711 = vadd.f32 %v2188, %v2710
    %v2712 = vpop.f32.mrf.mxu0
    %v2713 = vadd.f32 %v2190, %v2712
    %2714 = vmatprep.mubr.bf16.mxu0 %v1237
    %2715 = vmatmul.mubr.bf16.gmra.mxu0 %v1236
    %v2716 = vpop.f32.mrf.mxu0
    %v2717 = vadd.f32 %v2194, %v2716
    %v2718 = vpop.f32.mrf.mxu0
    %v2719 = vadd.f32 %v2196, %v2718
    %v2720 = vpop.f32.mrf.mxu0
    %v2721 = vadd.f32 %v2198, %v2720
    %v2722 = vpop.f32.mrf.mxu0
    %v2723 = vadd.f32 %v2200, %v2722
    %2724 = vmatprep.mubr.bf16.mxu0 %v1242
    %2725 = vmatmul.mubr.bf16.gmra.mxu0 %v1241
    %v2726 = vpop.f32.mrf.mxu0
    %v2727 = vadd.f32 %v2204, %v2726
    %v2728 = vpop.f32.mrf.mxu0
    %v2729 = vadd.f32 %v2206, %v2728
    %v2730 = vpop.f32.mrf.mxu0
    %v2731 = vadd.f32 %v2208, %v2730
    %v2732 = vpop.f32.mrf.mxu0
    %v2733 = vadd.f32 %v2210, %v2732
    %2734 = vmatprep.mubr.bf16.mxu0 %v1247
    %2735 = vmatmul.mubr.bf16.gmra.mxu0 %v1246
    %v2736 = vpop.f32.mrf.mxu0
    %v2737 = vadd.f32 %v2214, %v2736
    %v2738 = vpop.f32.mrf.mxu0
    %v2739 = vadd.f32 %v2216, %v2738
    %v2740 = vpop.f32.mrf.mxu0
    %v2741 = vadd.f32 %v2218, %v2740
    %v2742 = vpop.f32.mrf.mxu0
    %v2743 = vadd.f32 %v2220, %v2742
    %2744 = vmatprep.mubr.bf16.mxu0 %v1252
    %2745 = vmatmul.mubr.bf16.gmra.mxu0 %v1251
    %v2746 = vpop.f32.mrf.mxu0
    %v2747 = vadd.f32 %v2224, %v2746
    %v2748 = vpop.f32.mrf.mxu0
    %v2749 = vadd.f32 %v2226, %v2748
    %v2750 = vpop.f32.mrf.mxu0
    %v2751 = vadd.f32 %v2228, %v2750
    %v2752 = vpop.f32.mrf.mxu0
    %v2753 = vadd.f32 %v2230, %v2752
    %2754 = vmatprep.mubr.bf16.mxu0 %v1257
    %2755 = vmatmul.mubr.bf16.gmra.mxu0 %v1256
    %v2756 = vpop.f32.mrf.mxu0
    %v2757 = vadd.f32 %v2234, %v2756
    %v2758 = vpop.f32.mrf.mxu0
    %v2759 = vadd.f32 %v2236, %v2758
    %v2760 = vpop.f32.mrf.mxu0
    %v2761 = vadd.f32 %v2238, %v2760
    %v2762 = vpop.f32.mrf.mxu0
    %v2763 = vadd.f32 %v2240, %v2762
    %2764 = vmatprep.mubr.bf16.mxu0 %v1262
    %2765 = vmatmul.mubr.bf16.gmra.mxu0 %v1261
    %v2766 = vpop.f32.mrf.mxu0
    %v2767 = vadd.f32 %v2244, %v2766
    %v2768 = vpop.f32.mrf.mxu0
    %v2769 = vadd.f32 %v2246, %v2768
    %v2770 = vpop.f32.mrf.mxu0
    %v2771 = vadd.f32 %v2248, %v2770
    %v2772 = vpop.f32.mrf.mxu0
    %v2773 = vadd.f32 %v2250, %v2772
    %2774 = vmatprep.mubr.bf16.mxu0 %v1267
    %2775 = vmatmul.mubr.bf16.gmra.mxu0 %v1266
    %v2776 = vpop.f32.mrf.mxu0
    %v2777 = vadd.f32 %v2254, %v2776
    %v2778 = vpop.f32.mrf.mxu0
    %v2779 = vadd.f32 %v2256, %v2778
    %v2780 = vpop.f32.mrf.mxu0
    %v2781 = vadd.f32 %v2258, %v2780
    %v2782 = vpop.f32.mrf.mxu0
    %v2783 = vadd.f32 %v2260, %v2782
    %2784 = vmatprep.mubr.bf16.mxu0 %v1272
    %2785 = vmatmul.mubr.bf16.gmra.mxu0 %v1271
    %v2786 = vpop.f32.mrf.mxu0
    %v2787 = vadd.f32 %v2264, %v2786
    %v2788 = vpop.f32.mrf.mxu0
    %v2789 = vadd.f32 %v2266, %v2788
    %v2790 = vpop.f32.mrf.mxu0
    %v2791 = vadd.f32 %v2268, %v2790
    %v2792 = vpop.f32.mrf.mxu0
    %v2793 = vadd.f32 %v2270, %v2792
    %2794 = vmatprep.mubr.bf16.mxu0 %v1277
    %2795 = vmatmul.mubr.bf16.gmra.mxu0 %v1276
    %v2796 = vpop.f32.mrf.mxu0
    %v2797 = vadd.f32 %v2274, %v2796
    %v2798 = vpop.f32.mrf.mxu0
    %v2799 = vadd.f32 %v2276, %v2798
    %v2800 = vpop.f32.mrf.mxu0
    %v2801 = vadd.f32 %v2278, %v2800
    %v2802 = vpop.f32.mrf.mxu0
    %v2803 = vadd.f32 %v2280, %v2802
    %2804 = vmatprep.mubr.bf16.mxu0 %v1282
    %2805 = vmatmul.mubr.bf16.gmra.mxu0 %v1281
    %v2806 = vpop.f32.mrf.mxu0
    %v2807 = vadd.f32 %v2284, %v2806
    %v2808 = vpop.f32.mrf.mxu0
    %v2809 = vadd.f32 %v2286, %v2808
    %v2810 = vpop.f32.mrf.mxu0
    %v2811 = vadd.f32 %v2288, %v2810
    %v2812 = vpop.f32.mrf.mxu0
    %v2813 = vadd.f32 %v2290, %v2812
    %2814 = vmatprep.mubr.bf16.mxu0 %v1287
    %2815 = vmatmul.mubr.bf16.gmra.mxu0 %v1286
    %v2816 = vpop.f32.mrf.mxu0
    %v2817 = vadd.f32 %v2294, %v2816
    %v2818 = vpop.f32.mrf.mxu0
    %v2819 = vadd.f32 %v2296, %v2818
    %v2820 = vpop.f32.mrf.mxu0
    %v2821 = vadd.f32 %v2298, %v2820
    %v2822 = vpop.f32.mrf.mxu0
    %v2823 = vadd.f32 %v2300, %v2822
    %2824 = vmatprep.mubr.bf16.mxu0 %v1292
    %2825 = vmatmul.mubr.bf16.gmra.mxu0 %v1291
    %v2826 = vpop.f32.mrf.mxu0
    %v2827 = vadd.f32 %v2304, %v2826
    %v2828 = vpop.f32.mrf.mxu0
    %v2829 = vadd.f32 %v2306, %v2828
    %v2830 = vpop.f32.mrf.mxu0
    %v2831 = vadd.f32 %v2308, %v2830
    %v2832 = vpop.f32.mrf.mxu0
    %v2833 = vadd.f32 %v2310, %v2832
    %2834 = vmatprep.mubr.bf16.mxu0 %v1297
    %2835 = vmatmul.mubr.bf16.gmra.mxu0 %v1296
    %v2836 = vpop.f32.mrf.mxu0
    %v2837 = vadd.f32 %v2314, %v2836
    %v2838 = vpop.f32.mrf.mxu0
    %v2839 = vadd.f32 %v2316, %v2838
    %v2840 = vpop.f32.mrf.mxu0
    %v2841 = vadd.f32 %v2318, %v2840
    %v2842 = vpop.f32.mrf.mxu0
    %v2843 = vadd.f32 %v2320, %v2842
    %2844 = vmatprep.mubr.bf16.mxu0 %v1302
    %2845 = vmatmul.mubr.bf16.gmra.mxu0 %v1301
    %v2846 = vpop.f32.mrf.mxu0
    %v2847 = vadd.f32 %v2324, %v2846
    %v2848 = vpop.f32.mrf.mxu0
    %v2849 = vadd.f32 %v2326, %v2848
    %v2850 = vpop.f32.mrf.mxu0
    %v2851 = vadd.f32 %v2328, %v2850
    %v2852 = vpop.f32.mrf.mxu0
    %v2853 = vadd.f32 %v2330, %v2852
    %2854 = vmatprep.mubr.bf16.mxu0 %v1307
    %2855 = vmatmul.mubr.bf16.gmra.mxu0 %v1306
    %v2856 = vpop.f32.mrf.mxu0
    %v2857 = vadd.f32 %v2334, %v2856
    %v2858 = vpop.f32.mrf.mxu0
    %v2859 = vadd.f32 %v2336, %v2858
    %v2860 = vpop.f32.mrf.mxu0
    %v2861 = vadd.f32 %v2338, %v2860
    %v2862 = vpop.f32.mrf.mxu0
    %v2863 = vadd.f32 %v2340, %v2862
    %2864 = vmatprep.mubr.bf16.mxu0 %v1312
    %2865 = vmatmul.mubr.bf16.gmra.mxu0 %v1311
    %v2866 = vpop.f32.mrf.mxu0
    %v2867 = vadd.f32 %v2344, %v2866
    %v2868 = vpop.f32.mrf.mxu0
    %v2869 = vadd.f32 %v2346, %v2868
    %v2870 = vpop.f32.mrf.mxu0
    %v2871 = vadd.f32 %v2348, %v2870
    %v2872 = vpop.f32.mrf.mxu0
    %v2873 = vadd.f32 %v2350, %v2872
    %2874 = vmatprep.mubr.bf16.mxu0 %v1317
    %2875 = vmatmul.mubr.bf16.gmra.mxu0 %v1316
    %v2876 = vpop.f32.mrf.mxu0
    %v2877 = vadd.f32 %v2354, %v2876
    %v2878 = vpop.f32.mrf.mxu0
    %v2879 = vadd.f32 %v2356, %v2878
    %v2880 = vpop.f32.mrf.mxu0
    %v2881 = vadd.f32 %v2358, %v2880
    %v2882 = vpop.f32.mrf.mxu0
    %v2883 = vadd.f32 %v2360, %v2882
    %2884 = vmatprep.mubr.bf16.mxu0 %v1322
    %2885 = vmatmul.mubr.bf16.gmra.mxu0 %v1321
    %v2886 = vpop.f32.mrf.mxu0
    %v2887 = vadd.f32 %v2364, %v2886
    %v2888 = vpop.f32.mrf.mxu0
    %v2889 = vadd.f32 %v2366, %v2888
    %v2890 = vpop.f32.mrf.mxu0
    %v2891 = vadd.f32 %v2368, %v2890
    %v2892 = vpop.f32.mrf.mxu0
    %v2893 = vadd.f32 %v2370, %v2892
    %2894 = vmatprep.mubr.bf16.mxu0 %v1327
    %2895 = vmatmul.mubr.bf16.gmra.mxu0 %v1326
    %v2896 = vpop.f32.mrf.mxu0
    %v2897 = vadd.f32 %v2374, %v2896
    %v2898 = vpop.f32.mrf.mxu0
    %v2899 = vadd.f32 %v2376, %v2898
    %v2900 = vpop.f32.mrf.mxu0
    %v2901 = vadd.f32 %v2378, %v2900
    %v2902 = vpop.f32.mrf.mxu0
    %v2903 = vadd.f32 %v2380, %v2902
    %2904 = vmatprep.mubr.bf16.mxu0 %v1332
    %2905 = vmatmul.mubr.bf16.gmra.mxu0 %v1331
    %v2906 = vpop.f32.mrf.mxu0
    %v2907 = vadd.f32 %v2384, %v2906
    %v2908 = vpop.f32.mrf.mxu0
    %v2909 = vadd.f32 %v2386, %v2908
    %v2910 = vpop.f32.mrf.mxu0
    %v2911 = vadd.f32 %v2388, %v2910
    %v2912 = vpop.f32.mrf.mxu0
    %v2913 = vadd.f32 %v2390, %v2912
    %2914 = vmatprep.mubr.bf16.mxu0 %v1337
    %2915 = vmatmul.mubr.bf16.gmra.mxu0 %v1336
    %v2916 = vpop.f32.mrf.mxu0
    %v2917 = vadd.f32 %v2394, %v2916
    %v2918 = vpop.f32.mrf.mxu0
    %v2919 = vadd.f32 %v2396, %v2918
    %v2920 = vpop.f32.mrf.mxu0
    %v2921 = vadd.f32 %v2398, %v2920
    %v2922 = vpop.f32.mrf.mxu0
    %v2923 = vadd.f32 %v2400, %v2922
    %2924 = vmatprep.mubr.bf16.mxu0 %v1342
    %2925 = vmatmul.mubr.bf16.gmra.mxu0 %v1341
    %v2926 = vpop.f32.mrf.mxu0
    %v2927 = vadd.f32 %v2404, %v2926
    %v2928 = vpop.f32.mrf.mxu0
    %v2929 = vadd.f32 %v2406, %v2928
    %v2930 = vpop.f32.mrf.mxu0
    %v2931 = vadd.f32 %v2408, %v2930
    %v2932 = vpop.f32.mrf.mxu0
    %v2933 = vadd.f32 %v2410, %v2932
    %2934 = vmatprep.mubr.bf16.mxu0 %v1347
    %2935 = vmatmul.mubr.bf16.gmra.mxu0 %v1346
    %v2936 = vpop.f32.mrf.mxu0
    %v2937 = vadd.f32 %v2414, %v2936
    %v2938 = vpop.f32.mrf.mxu0
    %v2939 = vadd.f32 %v2416, %v2938
    %v2940 = vpop.f32.mrf.mxu0
    %v2941 = vadd.f32 %v2418, %v2940
    %v2942 = vpop.f32.mrf.mxu0
    %v2943 = vadd.f32 %v2420, %v2942
    %2944 = vmatprep.mubr.bf16.mxu0 %v1352
    %2945 = vmatmul.mubr.bf16.gmra.mxu0 %v1351
    %v2946 = vpop.f32.mrf.mxu0
    %v2947 = vadd.f32 %v2424, %v2946
    %v2948 = vpop.f32.mrf.mxu0
    %v2949 = vadd.f32 %v2426, %v2948
    %v2950 = vpop.f32.mrf.mxu0
    %v2951 = vadd.f32 %v2428, %v2950
    %v2952 = vpop.f32.mrf.mxu0
    %v2953 = vadd.f32 %v2430, %v2952
    %2954 = vmatprep.mubr.bf16.mxu0 %v1357
    %2955 = vmatmul.mubr.bf16.gmra.mxu0 %v1356
    %v2956 = vpop.f32.mrf.mxu0
    %v2957 = vadd.f32 %v2434, %v2956
    %v2958 = vpop.f32.mrf.mxu0
    %v2959 = vadd.f32 %v2436, %v2958
    %v2960 = vpop.f32.mrf.mxu0
    %v2961 = vadd.f32 %v2438, %v2960
    %v2962 = vpop.f32.mrf.mxu0
    %v2963 = vadd.f32 %v2440, %v2962
    %2964 = vmatprep.mubr.bf16.mxu0 %v1362
    %2965 = vmatmul.mubr.bf16.gmra.mxu0 %v1361
    %v2966 = vpop.f32.mrf.mxu0
    %v2967 = vadd.f32 %v2444, %v2966
    %v2968 = vpop.f32.mrf.mxu0
    %v2969 = vadd.f32 %v2446, %v2968
    %v2970 = vpop.f32.mrf.mxu0
    %v2971 = vadd.f32 %v2448, %v2970
    %v2972 = vpop.f32.mrf.mxu0
    %v2973 = vadd.f32 %v2450, %v2972
    %2974 = vmatprep.mubr.bf16.mxu0 %v1367
    %2975 = vmatmul.mubr.bf16.gmra.mxu0 %v1366
    %v2976 = vpop.f32.mrf.mxu0
    %v2977 = vadd.f32 %v2454, %v2976
    %v2978 = vpop.f32.mrf.mxu0
    %v2979 = vadd.f32 %v2456, %v2978
    %v2980 = vpop.f32.mrf.mxu0
    %v2981 = vadd.f32 %v2458, %v2980
    %v2982 = vpop.f32.mrf.mxu0
    %v2983 = vadd.f32 %v2460, %v2982
    %2984 = vmatprep.mubr.bf16.mxu0 %v1372
    %2985 = vmatmul.mubr.bf16.gmra.mxu0 %v1371
    %v2986 = vpop.f32.mrf.mxu0
    %v2987 = vadd.f32 %v2464, %v2986
    %v2988 = vpop.f32.mrf.mxu0
    %v2989 = vadd.f32 %v2466, %v2988
    %v2990 = vpop.f32.mrf.mxu0
    %v2991 = vadd.f32 %v2468, %v2990
    %v2992 = vpop.f32.mrf.mxu0
    %v2993 = vadd.f32 %v2470, %v2992
    %2994 = vmatprep.mubr.bf16.mxu0 %v1377
    %2995 = vmatmul.mubr.bf16.gmra.mxu0 %v1376
    %v2996 = vpop.f32.mrf.mxu0
    %v2997 = vadd.f32 %v2474, %v2996
    %v2998 = vpop.f32.mrf.mxu0
    %v2999 = vadd.f32 %v2476, %v2998
    %v3000 = vpop.f32.mrf.mxu0
    %v3001 = vadd.f32 %v2478, %v3000
    %v3002 = vpop.f32.mrf.mxu0
    %v3003 = vadd.f32 %v2480, %v3002
    %3004 = vmatprep.mubr.bf16.mxu0 %v1382
    %3005 = vmatmul.mubr.bf16.gmra.mxu0 %v1381
    %v3006 = vpop.f32.mrf.mxu0
    %v3007 = vadd.f32 %v2484, %v3006
    %v3008 = vpop.f32.mrf.mxu0
    %v3009 = vadd.f32 %v2486, %v3008
    %v3010 = vpop.f32.mrf.mxu0
    %v3011 = vadd.f32 %v2488, %v3010
    %v3012 = vpop.f32.mrf.mxu0
    %v3013 = vadd.f32 %v2490, %v3012
    %3014 = vmatprep.mubr.bf16.mxu0 %v1387
    %3015 = vmatmul.mubr.bf16.gmra.mxu0 %v1386
    %v3016 = vpop.f32.mrf.mxu0
    %v3017 = vadd.f32 %v2494, %v3016
    %v3018 = vpop.f32.mrf.mxu0
    %v3019 = vadd.f32 %v2496, %v3018
    %v3020 = vpop.f32.mrf.mxu0
    %v3021 = vadd.f32 %v2498, %v3020
    %v3022 = vpop.f32.mrf.mxu0
    %v3023 = vadd.f32 %v2500, %v3022
    %3024 = vmatprep.mubr.bf16.mxu0 %v1392
    %3025 = vmatmul.mubr.bf16.gmra.mxu0 %v1391
    %v3026 = vpop.f32.mrf.mxu0
    %v3027 = vadd.f32 %v2504, %v3026
    %v3028 = vpop.f32.mrf.mxu0
    %v3029 = vadd.f32 %v2506, %v3028
    %v3030 = vpop.f32.mrf.mxu0
    %v3031 = vadd.f32 %v2508, %v3030
    %v3032 = vpop.f32.mrf.mxu0
    %v3033 = vadd.f32 %v2510, %v3032
    %3034 = vmatprep.mubr.bf16.mxu0 %v1397
    %3035 = vmatmul.mubr.bf16.gmra.mxu0 %v1396
    %v3036 = vpop.f32.mrf.mxu0
    %v3037 = vadd.f32 %v2514, %v3036
    %v3038 = vpop.f32.mrf.mxu0
    %v3039 = vadd.f32 %v2516, %v3038
    %v3040 = vpop.f32.mrf.mxu0
    %v3041 = vadd.f32 %v2518, %v3040
    %v3042 = vpop.f32.mrf.mxu0
    %v3043 = vadd.f32 %v2520, %v3042
    %3044 = vmatprep.mubr.bf16.mxu0 %v1402
    %3045 = vmatmul.mubr.bf16.gmra.mxu0 %v1401
    %v3046 = vpop.f32.mrf.mxu0
    %v3047 = vadd.f32 %v2524, %v3046
    %v3048 = vpop.f32.mrf.mxu0
    %v3049 = vadd.f32 %v2526, %v3048
    %v3050 = vpop.f32.mrf.mxu0
    %v3051 = vadd.f32 %v2528, %v3050
    %v3052 = vpop.f32.mrf.mxu0
    %v3053 = vadd.f32 %v2530, %v3052
    %3054 = vmatprep.mubr.bf16.mxu0 %v1407
    %3055 = vmatmul.mubr.bf16.gmra.mxu0 %v1406
    %v3056 = vpop.f32.mrf.mxu0
    %v3057 = vadd.f32 %v2534, %v3056
    %v3058 = vpop.f32.mrf.mxu0
    %v3059 = vadd.f32 %v2536, %v3058
    %v3060 = vpop.f32.mrf.mxu0
    %v3061 = vadd.f32 %v2538, %v3060
    %v3062 = vpop.f32.mrf.mxu0
    %v3063 = vadd.f32 %v2540, %v3062
    %3064 = vmatprep.mubr.bf16.mxu0 %v1412
    %3065 = vmatmul.mubr.bf16.gmra.mxu0 %v1411
    %v3066 = vpop.f32.mrf.mxu0
    %v3067 = vadd.f32 %v2544, %v3066
    %v3068 = vpop.f32.mrf.mxu0
    %v3069 = vadd.f32 %v2546, %v3068
    %v3070 = vpop.f32.mrf.mxu0
    %v3071 = vadd.f32 %v2548, %v3070
    %v3072 = vpop.f32.mrf.mxu0
    %v3073 = vadd.f32 %v2550, %v3072
    %3074 = vmatprep.mubr.bf16.mxu0 %v1417
    %3075 = vmatmul.mubr.bf16.gmra.mxu0 %v1416
    %v3076 = vpop.f32.mrf.mxu0
    %v3077 = vadd.f32 %v2554, %v3076
    %v3078 = vpop.f32.mrf.mxu0
    %v3079 = vadd.f32 %v2556, %v3078
    %v3080 = vpop.f32.mrf.mxu0
    %v3081 = vadd.f32 %v2558, %v3080
    %v3082 = vpop.f32.mrf.mxu0
    %v3083 = vadd.f32 %v2560, %v3082
    %3084 = vmatprep.mubr.bf16.mxu0 %v1422
    %3085 = vmatmul.mubr.bf16.gmra.mxu0 %v1421
    %v3086 = vpop.f32.mrf.mxu0
    %v3087 = vadd.f32 %v2564, %v3086
    %v3088 = vpop.f32.mrf.mxu0
    %v3089 = vadd.f32 %v2566, %v3088
    %v3090 = vpop.f32.mrf.mxu0
    %v3091 = vadd.f32 %v2568, %v3090
    %v3092 = vpop.f32.mrf.mxu0
    %v3093 = vadd.f32 %v2570, %v3092
    %3094 = vmatprep.mubr.bf16.mxu0 %v1427
    %3095 = vmatmul.mubr.bf16.gmra.mxu0 %v1426
    %v3096 = vpop.f32.mrf.mxu0
    %v3097 = vadd.f32 %v2574, %v3096
    %v3098 = vpop.f32.mrf.mxu0
    %v3099 = vadd.f32 %v2576, %v3098
    %v3100 = vpop.f32.mrf.mxu0
    %v3101 = vadd.f32 %v2578, %v3100
    %v3102 = vpop.f32.mrf.mxu0
    %v3103 = vadd.f32 %v2580, %v3102
    %3104 = vmatprep.mubr.bf16.mxu0 %v1432
    %3105 = vmatmul.mubr.bf16.gmra.mxu0 %v1431
    %v3106 = vpop.f32.mrf.mxu0
    %v3107 = vadd.f32 %v2584, %v3106
    %v3108 = vpop.f32.mrf.mxu0
    %v3109 = vadd.f32 %v2586, %v3108
    %v3110 = vpop.f32.mrf.mxu0
    %v3111 = vadd.f32 %v2588, %v3110
    %v3112 = vpop.f32.mrf.mxu0
    %v3113 = vadd.f32 %v2590, %v3112
    %3114 = vmatprep.mubr.bf16.mxu0 %v1437
    %3115 = vmatmul.mubr.bf16.gmra.mxu0 %v1436
    %v3116 = vpop.f32.mrf.mxu0
    %v3117 = vadd.f32 %v2594, %v3116
    %v3118 = vpop.f32.mrf.mxu0
    %v3119 = vadd.f32 %v2596, %v3118
    %v3120 = vpop.f32.mrf.mxu0
    %v3121 = vadd.f32 %v2598, %v3120
    %v3122 = vpop.f32.mrf.mxu0
    %v3123 = vadd.f32 %v2600, %v3122
    %3124 = vmatprep.mubr.bf16.mxu0 %v1442
    %3125 = vmatmul.mubr.bf16.gmra.mxu0 %v1441
    %v3126 = vpop.f32.mrf.mxu0
    %v3127 = vadd.f32 %v2604, %v3126
    %v3128 = vpop.f32.mrf.mxu0
    %v3129 = vadd.f32 %v2606, %v3128
    %v3130 = vpop.f32.mrf.mxu0
    %v3131 = vadd.f32 %v2608, %v3130
    %v3132 = vpop.f32.mrf.mxu0
    %v3133 = vadd.f32 %v2610, %v3132
    %3134 = vdwg.mxu0
    %3135 = vmatprep.subr.bf16.mxu0 %v2008
    %3136 = vmatpush1.bf16.msra.mxu0 %v2007
    %3137 = vmatprep.subr.bf16.mxu0 %v2006
    %3138 = vmatpush1.bf16.msra.mxu0 %v2005
    %3139 = vmatprep.subr.bf16.mxu0 %v2004
    %3140 = vmatpush1.bf16.msra.mxu0 %v2003
    %3141 = vmatprep.subr.bf16.mxu0 %v2002
    %3142 = vmatpush1.bf16.msra.mxu0 %v2001
    %3143 = vmatprep.subr.bf16.mxu0 %v2000
    %3144 = vmatpush1.bf16.msra.mxu0 %v1999
    %3145 = vmatprep.subr.bf16.mxu0 %v1998
    %3146 = vmatpush1.bf16.msra.mxu0 %v1997
    %3147 = vmatprep.subr.bf16.mxu0 %v1996
    %3148 = vmatpush1.bf16.msra.mxu0 %v1995
    %3149 = vmatprep.subr.bf16.mxu0 %v1994
    %3150 = vmatpush1.bf16.msra.mxu0 %v1993
    %3151 = vmatprep.subr.bf16.mxu0 0
    %3152 = vmatpush2.bf16.msra.mxu0 0
    %3153 = vmatprep.subr.bf16.mxu0 0
    %3154 = vmatpush2.bf16.msra.mxu0 0
    %3155 = vmatprep.subr.bf16.mxu0 0
    %3156 = vmatpush2.bf16.msra.mxu0 0
    %3157 = vmatprep.subr.bf16.mxu0 0
    %3158 = vmatpush2.bf16.msra.mxu0 0
    %3159 = vmatprep.subr.bf16.mxu0 0
    %3160 = vmatpush2.bf16.msra.mxu0 0
    %3161 = vmatprep.subr.bf16.mxu0 0
    %3162 = vmatpush2.bf16.msra.mxu0 0
    %3163 = vmatprep.subr.bf16.mxu0 0
    %3164 = vmatpush2.bf16.msra.mxu0 0
    %3165 = vmatprep.subr.bf16.mxu0 0
    %3166 = vmatpush2.bf16.msra.mxu0 0
    %3167 = vmatprep.mubr.bf16.mxu0 0
    %3168 = vmatmul.mubr.bf16.gmra.mxu0 %v1203
    %v3169 = vpop.f32.mrf.mxu0
    %v3170 = vadd.f32 %v2647, %v3169
    %v3171 = vpop.f32.mrf.mxu0
    %v3172 = vadd.f32 %v2649, %v3171
    %v3173 = vpop.f32.mrf.mxu0
    %v3174 = vadd.f32 %v2651, %v3173
    %v3175 = vpop.f32.mrf.mxu0
    %v3176 = vadd.f32 %v2653, %v3175
    %3177 = vmatprep.mubr.bf16.mxu0 0
    %3178 = vmatmul.mubr.bf16.gmra.mxu0 %v1208
    %v3179 = vpop.f32.mrf.mxu0
    %v3180 = vadd.f32 %v2657, %v3179
    %v3181 = vpop.f32.mrf.mxu0
    %v3182 = vadd.f32 %v2659, %v3181
    %v3183 = vpop.f32.mrf.mxu0
    %v3184 = vadd.f32 %v2661, %v3183
    %v3185 = vpop.f32.mrf.mxu0
    %v3186 = vadd.f32 %v2663, %v3185
    %3187 = vmatprep.mubr.bf16.mxu0 0
    %3188 = vmatmul.mubr.bf16.gmra.mxu0 %v1213
    %v3189 = vpop.f32.mrf.mxu0
    %v3190 = vadd.f32 %v2667, %v3189
    %v3191 = vpop.f32.mrf.mxu0
    %v3192 = vadd.f32 %v2669, %v3191
    %v3193 = vpop.f32.mrf.mxu0
    %v3194 = vadd.f32 %v2671, %v3193
    %v3195 = vpop.f32.mrf.mxu0
    %v3196 = vadd.f32 %v2673, %v3195
    %3197 = vmatprep.mubr.bf16.mxu0 0
    %3198 = vmatmul.mubr.bf16.gmra.mxu0 %v1218
    %v3199 = vpop.f32.mrf.mxu0
    %v3200 = vadd.f32 %v2677, %v3199
    %v3201 = vpop.f32.mrf.mxu0
    %v3202 = vadd.f32 %v2679, %v3201
    %v3203 = vpop.f32.mrf.mxu0
    %v3204 = vadd.f32 %v2681, %v3203
    %v3205 = vpop.f32.mrf.mxu0
    %v3206 = vadd.f32 %v2683, %v3205
    %3207 = vmatprep.mubr.bf16.mxu0 0
    %3208 = vmatmul.mubr.bf16.gmra.mxu0 %v1223
    %v3209 = vpop.f32.mrf.mxu0
    %v3210 = vadd.f32 %v2687, %v3209
    %v3211 = vpop.f32.mrf.mxu0
    %v3212 = vadd.f32 %v2689, %v3211
    %v3213 = vpop.f32.mrf.mxu0
    %v3214 = vadd.f32 %v2691, %v3213
    %v3215 = vpop.f32.mrf.mxu0
    %v3216 = vadd.f32 %v2693, %v3215
    %3217 = vmatprep.mubr.bf16.mxu0 0
    %3218 = vmatmul.mubr.bf16.gmra.mxu0 %v1228
    %v3219 = vpop.f32.mrf.mxu0
    %v3220 = vadd.f32 %v2697, %v3219
    %v3221 = vpop.f32.mrf.mxu0
    %v3222 = vadd.f32 %v2699, %v3221
    %v3223 = vpop.f32.mrf.mxu0
    %v3224 = vadd.f32 %v2701, %v3223
    %v3225 = vpop.f32.mrf.mxu0
    %v3226 = vadd.f32 %v2703, %v3225
    %3227 = vmatprep.mubr.bf16.mxu0 0
    %3228 = vmatmul.mubr.bf16.gmra.mxu0 %v1233
    %v3229 = vpop.f32.mrf.mxu0
    %v3230 = vadd.f32 %v2707, %v3229
    %v3231 = vpop.f32.mrf.mxu0
    %v3232 = vadd.f32 %v2709, %v3231
    %v3233 = vpop.f32.mrf.mxu0
    %v3234 = vadd.f32 %v2711, %v3233
    %v3235 = vpop.f32.mrf.mxu0
    %v3236 = vadd.f32 %v2713, %v3235
    %3237 = vmatprep.mubr.bf16.mxu0 0
    %3238 = vmatmul.mubr.bf16.gmra.mxu0 %v1238
    %v3239 = vpop.f32.mrf.mxu0
    %v3240 = vadd.f32 %v2717, %v3239
    %v3241 = vpop.f32.mrf.mxu0
    %v3242 = vadd.f32 %v2719, %v3241
    %v3243 = vpop.f32.mrf.mxu0
    %v3244 = vadd.f32 %v2721, %v3243
    %v3245 = vpop.f32.mrf.mxu0
    %v3246 = vadd.f32 %v2723, %v3245
    %3247 = vmatprep.mubr.bf16.mxu0 0
    %3248 = vmatmul.mubr.bf16.gmra.mxu0 %v1243
    %v3249 = vpop.f32.mrf.mxu0
    %v3250 = vadd.f32 %v2727, %v3249
    %v3251 = vpop.f32.mrf.mxu0
    %v3252 = vadd.f32 %v2729, %v3251
    %v3253 = vpop.f32.mrf.mxu0
    %v3254 = vadd.f32 %v2731, %v3253
    %v3255 = vpop.f32.mrf.mxu0
    %v3256 = vadd.f32 %v2733, %v3255
    %3257 = vmatprep.mubr.bf16.mxu0 0
    %3258 = vmatmul.mubr.bf16.gmra.mxu0 %v1248
    %v3259 = vpop.f32.mrf.mxu0
    %v3260 = vadd.f32 %v2737, %v3259
    %v3261 = vpop.f32.mrf.mxu0
    %v3262 = vadd.f32 %v2739, %v3261
    %v3263 = vpop.f32.mrf.mxu0
    %v3264 = vadd.f32 %v2741, %v3263
    %v3265 = vpop.f32.mrf.mxu0
    %v3266 = vadd.f32 %v2743, %v3265
    %3267 = vmatprep.mubr.bf16.mxu0 0
    %3268 = vmatmul.mubr.bf16.gmra.mxu0 %v1253
    %v3269 = vpop.f32.mrf.mxu0
    %v3270 = vadd.f32 %v2747, %v3269
    %v3271 = vpop.f32.mrf.mxu0
    %v3272 = vadd.f32 %v2749, %v3271
    %v3273 = vpop.f32.mrf.mxu0
    %v3274 = vadd.f32 %v2751, %v3273
    %v3275 = vpop.f32.mrf.mxu0
    %v3276 = vadd.f32 %v2753, %v3275
    %3277 = vmatprep.mubr.bf16.mxu0 0
    %3278 = vmatmul.mubr.bf16.gmra.mxu0 %v1258
    %v3279 = vpop.f32.mrf.mxu0
    %v3280 = vadd.f32 %v2757, %v3279
    %v3281 = vpop.f32.mrf.mxu0
    %v3282 = vadd.f32 %v2759, %v3281
    %v3283 = vpop.f32.mrf.mxu0
    %v3284 = vadd.f32 %v2761, %v3283
    %v3285 = vpop.f32.mrf.mxu0
    %v3286 = vadd.f32 %v2763, %v3285
    %3287 = vmatprep.mubr.bf16.mxu0 0
    %3288 = vmatmul.mubr.bf16.gmra.mxu0 %v1263
    %v3289 = vpop.f32.mrf.mxu0
    %v3290 = vadd.f32 %v2767, %v3289
    %v3291 = vpop.f32.mrf.mxu0
    %v3292 = vadd.f32 %v2769, %v3291
    %v3293 = vpop.f32.mrf.mxu0
    %v3294 = vadd.f32 %v2771, %v3293
    %v3295 = vpop.f32.mrf.mxu0
    %v3296 = vadd.f32 %v2773, %v3295
    %3297 = vmatprep.mubr.bf16.mxu0 0
    %3298 = vmatmul.mubr.bf16.gmra.mxu0 %v1268
    %v3299 = vpop.f32.mrf.mxu0
    %v3300 = vadd.f32 %v2777, %v3299
    %v3301 = vpop.f32.mrf.mxu0
    %v3302 = vadd.f32 %v2779, %v3301
    %v3303 = vpop.f32.mrf.mxu0
    %v3304 = vadd.f32 %v2781, %v3303
    %v3305 = vpop.f32.mrf.mxu0
    %v3306 = vadd.f32 %v2783, %v3305
    %3307 = vmatprep.mubr.bf16.mxu0 0
    %3308 = vmatmul.mubr.bf16.gmra.mxu0 %v1273
    %v3309 = vpop.f32.mrf.mxu0
    %v3310 = vadd.f32 %v2787, %v3309
    %v3311 = vpop.f32.mrf.mxu0
    %v3312 = vadd.f32 %v2789, %v3311
    %v3313 = vpop.f32.mrf.mxu0
    %v3314 = vadd.f32 %v2791, %v3313
    %v3315 = vpop.f32.mrf.mxu0
    %v3316 = vadd.f32 %v2793, %v3315
    %3317 = vmatprep.mubr.bf16.mxu0 0
    %3318 = vmatmul.mubr.bf16.gmra.mxu0 %v1278
    %v3319 = vpop.f32.mrf.mxu0
    %v3320 = vadd.f32 %v2797, %v3319
    %v3321 = vpop.f32.mrf.mxu0
    %v3322 = vadd.f32 %v2799, %v3321
    %v3323 = vpop.f32.mrf.mxu0
    %v3324 = vadd.f32 %v2801, %v3323
    %v3325 = vpop.f32.mrf.mxu0
    %v3326 = vadd.f32 %v2803, %v3325
    %3327 = vmatprep.mubr.bf16.mxu0 0
    %3328 = vmatmul.mubr.bf16.gmra.mxu0 %v1283
    %v3329 = vpop.f32.mrf.mxu0
    %v3330 = vadd.f32 %v2807, %v3329
    %v3331 = vpop.f32.mrf.mxu0
    %v3332 = vadd.f32 %v2809, %v3331
    %v3333 = vpop.f32.mrf.mxu0
    %v3334 = vadd.f32 %v2811, %v3333
    %v3335 = vpop.f32.mrf.mxu0
    %v3336 = vadd.f32 %v2813, %v3335
    %3337 = vmatprep.mubr.bf16.mxu0 0
    %3338 = vmatmul.mubr.bf16.gmra.mxu0 %v1288
    %v3339 = vpop.f32.mrf.mxu0
    %v3340 = vadd.f32 %v2817, %v3339
    %v3341 = vpop.f32.mrf.mxu0
    %v3342 = vadd.f32 %v2819, %v3341
    %v3343 = vpop.f32.mrf.mxu0
    %v3344 = vadd.f32 %v2821, %v3343
    %v3345 = vpop.f32.mrf.mxu0
    %v3346 = vadd.f32 %v2823, %v3345
    %3347 = vmatprep.mubr.bf16.mxu0 0
    %3348 = vmatmul.mubr.bf16.gmra.mxu0 %v1293
    %v3349 = vpop.f32.mrf.mxu0
    %v3350 = vadd.f32 %v2827, %v3349
    %v3351 = vpop.f32.mrf.mxu0
    %v3352 = vadd.f32 %v2829, %v3351
    %v3353 = vpop.f32.mrf.mxu0
    %v3354 = vadd.f32 %v2831, %v3353
    %v3355 = vpop.f32.mrf.mxu0
    %v3356 = vadd.f32 %v2833, %v3355
    %3357 = vmatprep.mubr.bf16.mxu0 0
    %3358 = vmatmul.mubr.bf16.gmra.mxu0 %v1298
    %v3359 = vpop.f32.mrf.mxu0
    %v3360 = vadd.f32 %v2837, %v3359
    %v3361 = vpop.f32.mrf.mxu0
    %v3362 = vadd.f32 %v2839, %v3361
    %v3363 = vpop.f32.mrf.mxu0
    %v3364 = vadd.f32 %v2841, %v3363
    %v3365 = vpop.f32.mrf.mxu0
    %v3366 = vadd.f32 %v2843, %v3365
    %3367 = vmatprep.mubr.bf16.mxu0 0
    %3368 = vmatmul.mubr.bf16.gmra.mxu0 %v1303
    %v3369 = vpop.f32.mrf.mxu0
    %v3370 = vadd.f32 %v2847, %v3369
    %v3371 = vpop.f32.mrf.mxu0
    %v3372 = vadd.f32 %v2849, %v3371
    %v3373 = vpop.f32.mrf.mxu0
    %v3374 = vadd.f32 %v2851, %v3373
    %v3375 = vpop.f32.mrf.mxu0
    %v3376 = vadd.f32 %v2853, %v3375
    %3377 = vmatprep.mubr.bf16.mxu0 0
    %3378 = vmatmul.mubr.bf16.gmra.mxu0 %v1308
    %v3379 = vpop.f32.mrf.mxu0
    %v3380 = vadd.f32 %v2857, %v3379
    %v3381 = vpop.f32.mrf.mxu0
    %v3382 = vadd.f32 %v2859, %v3381
    %v3383 = vpop.f32.mrf.mxu0
    %v3384 = vadd.f32 %v2861, %v3383
    %v3385 = vpop.f32.mrf.mxu0
    %v3386 = vadd.f32 %v2863, %v3385
    %3387 = vmatprep.mubr.bf16.mxu0 0
    %3388 = vmatmul.mubr.bf16.gmra.mxu0 %v1313
    %v3389 = vpop.f32.mrf.mxu0
    %v3390 = vadd.f32 %v2867, %v3389
    %v3391 = vpop.f32.mrf.mxu0
    %v3392 = vadd.f32 %v2869, %v3391
    %v3393 = vpop.f32.mrf.mxu0
    %v3394 = vadd.f32 %v2871, %v3393
    %v3395 = vpop.f32.mrf.mxu0
    %v3396 = vadd.f32 %v2873, %v3395
    %3397 = vmatprep.mubr.bf16.mxu0 0
    %3398 = vmatmul.mubr.bf16.gmra.mxu0 %v1318
    %v3399 = vpop.f32.mrf.mxu0
    %v3400 = vadd.f32 %v2877, %v3399
    %v3401 = vpop.f32.mrf.mxu0
    %v3402 = vadd.f32 %v2879, %v3401
    %v3403 = vpop.f32.mrf.mxu0
    %v3404 = vadd.f32 %v2881, %v3403
    %v3405 = vpop.f32.mrf.mxu0
    %v3406 = vadd.f32 %v2883, %v3405
    %3407 = vmatprep.mubr.bf16.mxu0 0
    %3408 = vmatmul.mubr.bf16.gmra.mxu0 %v1323
    %v3409 = vpop.f32.mrf.mxu0
    %v3410 = vadd.f32 %v2887, %v3409
    %v3411 = vpop.f32.mrf.mxu0
    %v3412 = vadd.f32 %v2889, %v3411
    %v3413 = vpop.f32.mrf.mxu0
    %v3414 = vadd.f32 %v2891, %v3413
    %v3415 = vpop.f32.mrf.mxu0
    %v3416 = vadd.f32 %v2893, %v3415
    %3417 = vmatprep.mubr.bf16.mxu0 0
    %3418 = vmatmul.mubr.bf16.gmra.mxu0 %v1328
    %v3419 = vpop.f32.mrf.mxu0
    %v3420 = vadd.f32 %v2897, %v3419
    %v3421 = vpop.f32.mrf.mxu0
    %v3422 = vadd.f32 %v2899, %v3421
    %v3423 = vpop.f32.mrf.mxu0
    %v3424 = vadd.f32 %v2901, %v3423
    %v3425 = vpop.f32.mrf.mxu0
    %v3426 = vadd.f32 %v2903, %v3425
    %3427 = vmatprep.mubr.bf16.mxu0 0
    %3428 = vmatmul.mubr.bf16.gmra.mxu0 %v1333
    %v3429 = vpop.f32.mrf.mxu0
    %v3430 = vadd.f32 %v2907, %v3429
    %v3431 = vpop.f32.mrf.mxu0
    %v3432 = vadd.f32 %v2909, %v3431
    %v3433 = vpop.f32.mrf.mxu0
    %v3434 = vadd.f32 %v2911, %v3433
    %v3435 = vpop.f32.mrf.mxu0
    %v3436 = vadd.f32 %v2913, %v3435
    %3437 = vmatprep.mubr.bf16.mxu0 0
    %3438 = vmatmul.mubr.bf16.gmra.mxu0 %v1338
    %v3439 = vpop.f32.mrf.mxu0
    %v3440 = vadd.f32 %v2917, %v3439
    %v3441 = vpop.f32.mrf.mxu0
    %v3442 = vadd.f32 %v2919, %v3441
    %v3443 = vpop.f32.mrf.mxu0
    %v3444 = vadd.f32 %v2921, %v3443
    %v3445 = vpop.f32.mrf.mxu0
    %v3446 = vadd.f32 %v2923, %v3445
    %3447 = vmatprep.mubr.bf16.mxu0 0
    %3448 = vmatmul.mubr.bf16.gmra.mxu0 %v1343
    %v3449 = vpop.f32.mrf.mxu0
    %v3450 = vadd.f32 %v2927, %v3449
    %v3451 = vpop.f32.mrf.mxu0
    %v3452 = vadd.f32 %v2929, %v3451
    %v3453 = vpop.f32.mrf.mxu0
    %v3454 = vadd.f32 %v2931, %v3453
    %v3455 = vpop.f32.mrf.mxu0
    %v3456 = vadd.f32 %v2933, %v3455
    %3457 = vmatprep.mubr.bf16.mxu0 0
    %3458 = vmatmul.mubr.bf16.gmra.mxu0 %v1348
    %v3459 = vpop.f32.mrf.mxu0
    %v3460 = vadd.f32 %v2937, %v3459
    %v3461 = vpop.f32.mrf.mxu0
    %v3462 = vadd.f32 %v2939, %v3461
    %v3463 = vpop.f32.mrf.mxu0
    %v3464 = vadd.f32 %v2941, %v3463
    %v3465 = vpop.f32.mrf.mxu0
    %v3466 = vadd.f32 %v2943, %v3465
    %3467 = vmatprep.mubr.bf16.mxu0 0
    %3468 = vmatmul.mubr.bf16.gmra.mxu0 %v1353
    %v3469 = vpop.f32.mrf.mxu0
    %v3470 = vadd.f32 %v2947, %v3469
    %v3471 = vpop.f32.mrf.mxu0
    %v3472 = vadd.f32 %v2949, %v3471
    %v3473 = vpop.f32.mrf.mxu0
    %v3474 = vadd.f32 %v2951, %v3473
    %v3475 = vpop.f32.mrf.mxu0
    %v3476 = vadd.f32 %v2953, %v3475
    %3477 = vmatprep.mubr.bf16.mxu0 0
    %3478 = vmatmul.mubr.bf16.gmra.mxu0 %v1358
    %v3479 = vpop.f32.mrf.mxu0
    %v3480 = vadd.f32 %v2957, %v3479
    %v3481 = vpop.f32.mrf.mxu0
    %v3482 = vadd.f32 %v2959, %v3481
    %v3483 = vpop.f32.mrf.mxu0
    %v3484 = vadd.f32 %v2961, %v3483
    %v3485 = vpop.f32.mrf.mxu0
    %v3486 = vadd.f32 %v2963, %v3485
    %3487 = vmatprep.mubr.bf16.mxu0 0
    %3488 = vmatmul.mubr.bf16.gmra.mxu0 %v1363
    %v3489 = vpop.f32.mrf.mxu0
    %v3490 = vadd.f32 %v2967, %v3489
    %v3491 = vpop.f32.mrf.mxu0
    %v3492 = vadd.f32 %v2969, %v3491
    %v3493 = vpop.f32.mrf.mxu0
    %v3494 = vadd.f32 %v2971, %v3493
    %v3495 = vpop.f32.mrf.mxu0
    %v3496 = vadd.f32 %v2973, %v3495
    %3497 = vmatprep.mubr.bf16.mxu0 0
    %3498 = vmatmul.mubr.bf16.gmra.mxu0 %v1368
    %v3499 = vpop.f32.mrf.mxu0
    %v3500 = vadd.f32 %v2977, %v3499
    %v3501 = vpop.f32.mrf.mxu0
    %v3502 = vadd.f32 %v2979, %v3501
    %v3503 = vpop.f32.mrf.mxu0
    %v3504 = vadd.f32 %v2981, %v3503
    %v3505 = vpop.f32.mrf.mxu0
    %v3506 = vadd.f32 %v2983, %v3505
    %3507 = vmatprep.mubr.bf16.mxu0 0
    %3508 = vmatmul.mubr.bf16.gmra.mxu0 %v1373
    %v3509 = vpop.f32.mrf.mxu0
    %v3510 = vadd.f32 %v2987, %v3509
    %v3511 = vpop.f32.mrf.mxu0
    %v3512 = vadd.f32 %v2989, %v3511
    %v3513 = vpop.f32.mrf.mxu0
    %v3514 = vadd.f32 %v2991, %v3513
    %v3515 = vpop.f32.mrf.mxu0
    %v3516 = vadd.f32 %v2993, %v3515
    %3517 = vmatprep.mubr.bf16.mxu0 0
    %3518 = vmatmul.mubr.bf16.gmra.mxu0 %v1378
    %v3519 = vpop.f32.mrf.mxu0
    %v3520 = vadd.f32 %v2997, %v3519
    %v3521 = vpop.f32.mrf.mxu0
    %v3522 = vadd.f32 %v2999, %v3521
    %v3523 = vpop.f32.mrf.mxu0
    %v3524 = vadd.f32 %v3001, %v3523
    %v3525 = vpop.f32.mrf.mxu0
    %v3526 = vadd.f32 %v3003, %v3525
    %3527 = vmatprep.mubr.bf16.mxu0 0
    %3528 = vmatmul.mubr.bf16.gmra.mxu0 %v1383
    %v3529 = vpop.f32.mrf.mxu0
    %v3530 = vadd.f32 %v3007, %v3529
    %v3531 = vpop.f32.mrf.mxu0
    %v3532 = vadd.f32 %v3009, %v3531
    %v3533 = vpop.f32.mrf.mxu0
    %v3534 = vadd.f32 %v3011, %v3533
    %v3535 = vpop.f32.mrf.mxu0
    %v3536 = vadd.f32 %v3013, %v3535
    %3537 = vmatprep.mubr.bf16.mxu0 0
    %3538 = vmatmul.mubr.bf16.gmra.mxu0 %v1388
    %v3539 = vpop.f32.mrf.mxu0
    %v3540 = vadd.f32 %v3017, %v3539
    %v3541 = vpop.f32.mrf.mxu0
    %v3542 = vadd.f32 %v3019, %v3541
    %v3543 = vpop.f32.mrf.mxu0
    %v3544 = vadd.f32 %v3021, %v3543
    %v3545 = vpop.f32.mrf.mxu0
    %v3546 = vadd.f32 %v3023, %v3545
    %3547 = vmatprep.mubr.bf16.mxu0 0
    %3548 = vmatmul.mubr.bf16.gmra.mxu0 %v1393
    %v3549 = vpop.f32.mrf.mxu0
    %v3550 = vadd.f32 %v3027, %v3549
    %v3551 = vpop.f32.mrf.mxu0
    %v3552 = vadd.f32 %v3029, %v3551
    %v3553 = vpop.f32.mrf.mxu0
    %v3554 = vadd.f32 %v3031, %v3553
    %v3555 = vpop.f32.mrf.mxu0
    %v3556 = vadd.f32 %v3033, %v3555
    %3557 = vmatprep.mubr.bf16.mxu0 0
    %3558 = vmatmul.mubr.bf16.gmra.mxu0 %v1398
    %v3559 = vpop.f32.mrf.mxu0
    %v3560 = vadd.f32 %v3037, %v3559
    %v3561 = vpop.f32.mrf.mxu0
    %v3562 = vadd.f32 %v3039, %v3561
    %v3563 = vpop.f32.mrf.mxu0
    %v3564 = vadd.f32 %v3041, %v3563
    %v3565 = vpop.f32.mrf.mxu0
    %v3566 = vadd.f32 %v3043, %v3565
    %3567 = vmatprep.mubr.bf16.mxu0 0
    %3568 = vmatmul.mubr.bf16.gmra.mxu0 %v1403
    %v3569 = vpop.f32.mrf.mxu0
    %v3570 = vadd.f32 %v3047, %v3569
    %v3571 = vpop.f32.mrf.mxu0
    %v3572 = vadd.f32 %v3049, %v3571
    %v3573 = vpop.f32.mrf.mxu0
    %v3574 = vadd.f32 %v3051, %v3573
    %v3575 = vpop.f32.mrf.mxu0
    %v3576 = vadd.f32 %v3053, %v3575
    %3577 = vmatprep.mubr.bf16.mxu0 0
    %3578 = vmatmul.mubr.bf16.gmra.mxu0 %v1408
    %v3579 = vpop.f32.mrf.mxu0
    %v3580 = vadd.f32 %v3057, %v3579
    %v3581 = vpop.f32.mrf.mxu0
    %v3582 = vadd.f32 %v3059, %v3581
    %v3583 = vpop.f32.mrf.mxu0
    %v3584 = vadd.f32 %v3061, %v3583
    %v3585 = vpop.f32.mrf.mxu0
    %v3586 = vadd.f32 %v3063, %v3585
    %3587 = vmatprep.mubr.bf16.mxu0 0
    %3588 = vmatmul.mubr.bf16.gmra.mxu0 %v1413
    %v3589 = vpop.f32.mrf.mxu0
    %v3590 = vadd.f32 %v3067, %v3589
    %v3591 = vpop.f32.mrf.mxu0
    %v3592 = vadd.f32 %v3069, %v3591
    %v3593 = vpop.f32.mrf.mxu0
    %v3594 = vadd.f32 %v3071, %v3593
    %v3595 = vpop.f32.mrf.mxu0
    %v3596 = vadd.f32 %v3073, %v3595
    %3597 = vmatprep.mubr.bf16.mxu0 0
    %3598 = vmatmul.mubr.bf16.gmra.mxu0 %v1418
    %v3599 = vpop.f32.mrf.mxu0
    %v3600 = vadd.f32 %v3077, %v3599
    %v3601 = vpop.f32.mrf.mxu0
    %v3602 = vadd.f32 %v3079, %v3601
    %v3603 = vpop.f32.mrf.mxu0
    %v3604 = vadd.f32 %v3081, %v3603
    %v3605 = vpop.f32.mrf.mxu0
    %v3606 = vadd.f32 %v3083, %v3605
    %3607 = vmatprep.mubr.bf16.mxu0 0
    %3608 = vmatmul.mubr.bf16.gmra.mxu0 %v1423
    %v3609 = vpop.f32.mrf.mxu0
    %v3610 = vadd.f32 %v3087, %v3609
    %v3611 = vpop.f32.mrf.mxu0
    %v3612 = vadd.f32 %v3089, %v3611
    %v3613 = vpop.f32.mrf.mxu0
    %v3614 = vadd.f32 %v3091, %v3613
    %v3615 = vpop.f32.mrf.mxu0
    %v3616 = vadd.f32 %v3093, %v3615
    %3617 = vmatprep.mubr.bf16.mxu0 0
    %3618 = vmatmul.mubr.bf16.gmra.mxu0 %v1428
    %v3619 = vpop.f32.mrf.mxu0
    %v3620 = vadd.f32 %v3097, %v3619
    %v3621 = vpop.f32.mrf.mxu0
    %v3622 = vadd.f32 %v3099, %v3621
    %v3623 = vpop.f32.mrf.mxu0
    %v3624 = vadd.f32 %v3101, %v3623
    %v3625 = vpop.f32.mrf.mxu0
    %v3626 = vadd.f32 %v3103, %v3625
    %3627 = vmatprep.mubr.bf16.mxu0 0
    %3628 = vmatmul.mubr.bf16.gmra.mxu0 %v1433
    %v3629 = vpop.f32.mrf.mxu0
    %v3630 = vadd.f32 %v3107, %v3629
    %v3631 = vpop.f32.mrf.mxu0
    %v3632 = vadd.f32 %v3109, %v3631
    %v3633 = vpop.f32.mrf.mxu0
    %v3634 = vadd.f32 %v3111, %v3633
    %v3635 = vpop.f32.mrf.mxu0
    %v3636 = vadd.f32 %v3113, %v3635
    %3637 = vmatprep.mubr.bf16.mxu0 0
    %3638 = vmatmul.mubr.bf16.gmra.mxu0 %v1438
    %v3639 = vpop.f32.mrf.mxu0
    %v3640 = vadd.f32 %v3117, %v3639
    %v3641 = vpop.f32.mrf.mxu0
    %v3642 = vadd.f32 %v3119, %v3641
    %v3643 = vpop.f32.mrf.mxu0
    %v3644 = vadd.f32 %v3121, %v3643
    %v3645 = vpop.f32.mrf.mxu0
    %v3646 = vadd.f32 %v3123, %v3645
    %3647 = vmatprep.mubr.bf16.mxu0 0
    %3648 = vmatmul.mubr.bf16.gmra.mxu0 %v1443
    %v3649 = vpop.f32.mrf.mxu0
    %v3650 = vadd.f32 %v3127, %v3649
    %v3651 = vpop.f32.mrf.mxu0
    %v3652 = vadd.f32 %v3129, %v3651
    %v3653 = vpop.f32.mrf.mxu0
    %v3654 = vadd.f32 %v3131, %v3653
    %v3655 = vpop.f32.mrf.mxu0
    %v3656 = vadd.f32 %v3133, %v3655
    %3657 = vdwg.mxu0
    %v3658 = vpack.c.bf16 %v3174, %v3170
    %v3659 = vpack.c.bf16 %v3176, %v3172
    %v3660 = vpack.c.bf16 %v3184, %v3180
    %v3661 = vpack.c.bf16 %v3186, %v3182
    %v3662 = vpack.c.bf16 %v3194, %v3190
    %v3663 = vpack.c.bf16 %v3196, %v3192
    %v3664 = vpack.c.bf16 %v3204, %v3200
    %v3665 = vpack.c.bf16 %v3206, %v3202
    %v3666 = vpack.c.bf16 %v3214, %v3210
    %v3667 = vpack.c.bf16 %v3216, %v3212
    %v3668 = vpack.c.bf16 %v3224, %v3220
    %v3669 = vpack.c.bf16 %v3226, %v3222
    %v3670 = vpack.c.bf16 %v3234, %v3230
    %v3671 = vpack.c.bf16 %v3236, %v3232
    %v3672 = vpack.c.bf16 %v3244, %v3240
    %v3673 = vpack.c.bf16 %v3246, %v3242
    %v3674 = vpack.c.bf16 %v3254, %v3250
    %v3675 = vpack.c.bf16 %v3256, %v3252
    %v3676 = vpack.c.bf16 %v3264, %v3260
    %v3677 = vpack.c.bf16 %v3266, %v3262
    %v3678 = vpack.c.bf16 %v3274, %v3270
    %v3679 = vpack.c.bf16 %v3276, %v3272
    %v3680 = vpack.c.bf16 %v3284, %v3280
    %v3681 = vpack.c.bf16 %v3286, %v3282
    %v3682 = vpack.c.bf16 %v3294, %v3290
    %v3683 = vpack.c.bf16 %v3296, %v3292
    %v3684 = vpack.c.bf16 %v3304, %v3300
    %v3685 = vpack.c.bf16 %v3306, %v3302
    %v3686 = vpack.c.bf16 %v3314, %v3310
    %v3687 = vpack.c.bf16 %v3316, %v3312
    %v3688 = vpack.c.bf16 %v3324, %v3320
    %v3689 = vpack.c.bf16 %v3326, %v3322
    %v3690 = vpack.c.bf16 %v3334, %v3330
    %v3691 = vpack.c.bf16 %v3336, %v3332
    %v3692 = vpack.c.bf16 %v3344, %v3340
    %v3693 = vpack.c.bf16 %v3346, %v3342
    %v3694 = vpack.c.bf16 %v3354, %v3350
    %v3695 = vpack.c.bf16 %v3356, %v3352
    %v3696 = vpack.c.bf16 %v3364, %v3360
    %v3697 = vpack.c.bf16 %v3366, %v3362
    %v3698 = vpack.c.bf16 %v3374, %v3370
    %v3699 = vpack.c.bf16 %v3376, %v3372
    %v3700 = vpack.c.bf16 %v3384, %v3380
    %v3701 = vpack.c.bf16 %v3386, %v3382
    %v3702 = vpack.c.bf16 %v3394, %v3390
    %v3703 = vpack.c.bf16 %v3396, %v3392
    %v3704 = vpack.c.bf16 %v3404, %v3400
    %v3705 = vpack.c.bf16 %v3406, %v3402
    %v3706 = vpack.c.bf16 %v3414, %v3410
    %v3707 = vpack.c.bf16 %v3416, %v3412
    %v3708 = vpack.c.bf16 %v3424, %v3420
    %v3709 = vpack.c.bf16 %v3426, %v3422
    %v3710 = vpack.c.bf16 %v3434, %v3430
    %v3711 = vpack.c.bf16 %v3436, %v3432
    %v3712 = vpack.c.bf16 %v3444, %v3440
    %v3713 = vpack.c.bf16 %v3446, %v3442
    %v3714 = vpack.c.bf16 %v3454, %v3450
    %v3715 = vpack.c.bf16 %v3456, %v3452
    %v3716 = vpack.c.bf16 %v3464, %v3460
    %v3717 = vpack.c.bf16 %v3466, %v3462
    %v3718 = vpack.c.bf16 %v3474, %v3470
    %v3719 = vpack.c.bf16 %v3476, %v3472
    %v3720 = vpack.c.bf16 %v3484, %v3480
    %v3721 = vpack.c.bf16 %v3486, %v3482
    %v3722 = vpack.c.bf16 %v3494, %v3490
    %v3723 = vpack.c.bf16 %v3496, %v3492
    %v3724 = vpack.c.bf16 %v3504, %v3500
    %v3725 = vpack.c.bf16 %v3506, %v3502
    %v3726 = vpack.c.bf16 %v3514, %v3510
    %v3727 = vpack.c.bf16 %v3516, %v3512
    %v3728 = vpack.c.bf16 %v3524, %v3520
    %v3729 = vpack.c.bf16 %v3526, %v3522
    %v3730 = vpack.c.bf16 %v3534, %v3530
    %v3731 = vpack.c.bf16 %v3536, %v3532
    %v3732 = vpack.c.bf16 %v3544, %v3540
    %v3733 = vpack.c.bf16 %v3546, %v3542
    %v3734 = vpack.c.bf16 %v3554, %v3550
    %v3735 = vpack.c.bf16 %v3556, %v3552
    %v3736 = vpack.c.bf16 %v3564, %v3560
    %v3737 = vpack.c.bf16 %v3566, %v3562
    %v3738 = vpack.c.bf16 %v3574, %v3570
    %v3739 = vpack.c.bf16 %v3576, %v3572
    %v3740 = vpack.c.bf16 %v3584, %v3580
    %v3741 = vpack.c.bf16 %v3586, %v3582
    %v3742 = vpack.c.bf16 %v3594, %v3590
    %v3743 = vpack.c.bf16 %v3596, %v3592
    %v3744 = vpack.c.bf16 %v3604, %v3600
    %v3745 = vpack.c.bf16 %v3606, %v3602
    %v3746 = vpack.c.bf16 %v3614, %v3610
    %v3747 = vpack.c.bf16 %v3616, %v3612
    %v3748 = vpack.c.bf16 %v3624, %v3620
    %v3749 = vpack.c.bf16 %v3626, %v3622
    %v3750 = vpack.c.bf16 %v3634, %v3630
    %v3751 = vpack.c.bf16 %v3636, %v3632
    %v3752 = vpack.c.bf16 %v3644, %v3640
    %v3753 = vpack.c.bf16 %v3646, %v3642
    %v3754 = vpack.c.bf16 %v3654, %v3650
    %v3755 = vpack.c.bf16 %v3656, %v3652
    %v3854 = vunpack.c.l.b16 %v3658
    %v3855 = vunpack.c.l.b16 %v3659
    %v3856 = vunpack.c.h.b16 %v3658
    %v3857 = vunpack.c.h.b16 %v3659
    %v3858 = vunpack.c.l.b16 %v3660
    %v3859 = vunpack.c.l.b16 %v3661
    %v3860 = vunpack.c.h.b16 %v3660
    %v3861 = vunpack.c.h.b16 %v3661
    %v3862 = vunpack.c.l.b16 %v3662
    %v3863 = vunpack.c.l.b16 %v3663
    %v3864 = vunpack.c.h.b16 %v3662
    %v3865 = vunpack.c.h.b16 %v3663
    %v3866 = vunpack.c.l.b16 %v3664
    %v3867 = vunpack.c.l.b16 %v3665
    %v3868 = vunpack.c.h.b16 %v3664
    %v3869 = vunpack.c.h.b16 %v3665
    %v3870 = vunpack.c.l.b16 %v3666
    %v3871 = vunpack.c.l.b16 %v3667
    %v3872 = vunpack.c.h.b16 %v3666
    %v3873 = vunpack.c.h.b16 %v3667
    %v3874 = vunpack.c.l.b16 %v3668
    %v3875 = vunpack.c.l.b16 %v3669
    %v3876 = vunpack.c.h.b16 %v3668
    %v3877 = vunpack.c.h.b16 %v3669
    %v3878 = vunpack.c.l.b16 %v3670
    %v3879 = vunpack.c.l.b16 %v3671
    %v3880 = vunpack.c.h.b16 %v3670
    %v3881 = vunpack.c.h.b16 %v3671
    %v3882 = vunpack.c.l.b16 %v3672
    %v3883 = vunpack.c.l.b16 %v3673
    %v3884 = vunpack.c.h.b16 %v3672
    %v3885 = vunpack.c.h.b16 %v3673
    %v3886 = vunpack.c.l.b16 %v3674
    %v3887 = vunpack.c.l.b16 %v3675
    %v3888 = vunpack.c.h.b16 %v3674
    %v3889 = vunpack.c.h.b16 %v3675
    %v3890 = vunpack.c.l.b16 %v3676
    %v3891 = vunpack.c.l.b16 %v3677
    %v3892 = vunpack.c.h.b16 %v3676
    %v3893 = vunpack.c.h.b16 %v3677
    %v3894 = vunpack.c.l.b16 %v3678
    %v3895 = vunpack.c.l.b16 %v3679
    %v3896 = vunpack.c.h.b16 %v3678
    %v3897 = vunpack.c.h.b16 %v3679
    %v3898 = vunpack.c.l.b16 %v3680
    %v3899 = vunpack.c.l.b16 %v3681
    %v3900 = vunpack.c.h.b16 %v3680
    %v3901 = vunpack.c.h.b16 %v3681
    %v3902 = vunpack.c.l.b16 %v3682
    %v3903 = vunpack.c.l.b16 %v3683
    %v3904 = vunpack.c.h.b16 %v3682
    %v3905 = vunpack.c.h.b16 %v3683
    %v3906 = vunpack.c.l.b16 %v3684
    %v3907 = vunpack.c.l.b16 %v3685
    %v3908 = vunpack.c.h.b16 %v3684
    %v3909 = vunpack.c.h.b16 %v3685
    %v3910 = vunpack.c.l.b16 %v3686
    %v3911 = vunpack.c.l.b16 %v3687
    %v3912 = vunpack.c.h.b16 %v3686
    %v3913 = vunpack.c.h.b16 %v3687
    %v3914 = vunpack.c.l.b16 %v3688
    %v3915 = vunpack.c.l.b16 %v3689
    %v3916 = vunpack.c.h.b16 %v3688
    %v3917 = vunpack.c.h.b16 %v3689
    %v3918 = vunpack.c.l.b16 %v3690
    %v3919 = vunpack.c.l.b16 %v3691
    %v3920 = vunpack.c.h.b16 %v3690
    %v3921 = vunpack.c.h.b16 %v3691
    %v3922 = vunpack.c.l.b16 %v3692
    %v3923 = vunpack.c.l.b16 %v3693
    %v3924 = vunpack.c.h.b16 %v3692
    %v3925 = vunpack.c.h.b16 %v3693
    %v3926 = vunpack.c.l.b16 %v3694
    %v3927 = vunpack.c.l.b16 %v3695
    %v3928 = vunpack.c.h.b16 %v3694
    %v3929 = vunpack.c.h.b16 %v3695
    %v3930 = vunpack.c.l.b16 %v3696
    %v3931 = vunpack.c.l.b16 %v3697
    %v3932 = vunpack.c.h.b16 %v3696
    %v3933 = vunpack.c.h.b16 %v3697
    %v3934 = vunpack.c.l.b16 %v3698
    %v3935 = vunpack.c.l.b16 %v3699
    %v3936 = vunpack.c.h.b16 %v3698
    %v3937 = vunpack.c.h.b16 %v3699
    %v3938 = vunpack.c.l.b16 %v3700
    %v3939 = vunpack.c.l.b16 %v3701
    %v3940 = vunpack.c.h.b16 %v3700
    %v3941 = vunpack.c.h.b16 %v3701
    %v3942 = vunpack.c.l.b16 %v3702
    %v3943 = vunpack.c.l.b16 %v3703
    %v3944 = vunpack.c.h.b16 %v3702
    %v3945 = vunpack.c.h.b16 %v3703
    %v3946 = vunpack.c.l.b16 %v3704
    %v3947 = vunpack.c.l.b16 %v3705
    %v3948 = vunpack.c.h.b16 %v3704
    %v3949 = vunpack.c.h.b16 %v3705
    %v3950 = vunpack.c.l.b16 %v3706
    %v3951 = vunpack.c.l.b16 %v3707
    %v3952 = vunpack.c.h.b16 %v3706
    %v3953 = vunpack.c.h.b16 %v3707
    %v3954 = vunpack.c.l.b16 %v3708
    %v3955 = vunpack.c.l.b16 %v3709
    %v3956 = vunpack.c.h.b16 %v3708
    %v3957 = vunpack.c.h.b16 %v3709
    %v3958 = vunpack.c.l.b16 %v3710
    %v3959 = vunpack.c.l.b16 %v3711
    %v3960 = vunpack.c.h.b16 %v3710
    %v3961 = vunpack.c.h.b16 %v3711
    %v3962 = vunpack.c.l.b16 %v3712
    %v3963 = vunpack.c.l.b16 %v3713
    %v3964 = vunpack.c.h.b16 %v3712
    %v3965 = vunpack.c.h.b16 %v3713
    %v3966 = vunpack.c.l.b16 %v3714
    %v3967 = vunpack.c.l.b16 %v3715
    %v3968 = vunpack.c.h.b16 %v3714
    %v3969 = vunpack.c.h.b16 %v3715
    %v3970 = vunpack.c.l.b16 %v3716
    %v3971 = vunpack.c.l.b16 %v3717
    %v3972 = vunpack.c.h.b16 %v3716
    %v3973 = vunpack.c.h.b16 %v3717
    %v3974 = vunpack.c.l.b16 %v3718
    %v3975 = vunpack.c.l.b16 %v3719
    %v3976 = vunpack.c.h.b16 %v3718
    %v3977 = vunpack.c.h.b16 %v3719
    %v3978 = vunpack.c.l.b16 %v3720
    %v3979 = vunpack.c.l.b16 %v3721
    %v3980 = vunpack.c.h.b16 %v3720
    %v3981 = vunpack.c.h.b16 %v3721
    %v3982 = vunpack.c.l.b16 %v3722
    %v3983 = vunpack.c.l.b16 %v3723
    %v3984 = vunpack.c.h.b16 %v3722
    %v3985 = vunpack.c.h.b16 %v3723
    %v3986 = vunpack.c.l.b16 %v3724
    %v3987 = vunpack.c.l.b16 %v3725
    %v3988 = vunpack.c.h.b16 %v3724
    %v3989 = vunpack.c.h.b16 %v3725
    %v3990 = vunpack.c.l.b16 %v3726
    %v3991 = vunpack.c.l.b16 %v3727
    %v3992 = vunpack.c.h.b16 %v3726
    %v3993 = vunpack.c.h.b16 %v3727
    %v3994 = vunpack.c.l.b16 %v3728
    %v3995 = vunpack.c.l.b16 %v3729
    %v3996 = vunpack.c.h.b16 %v3728
    %v3997 = vunpack.c.h.b16 %v3729
    %v3998 = vunpack.c.l.b16 %v3730
    %v3999 = vunpack.c.l.b16 %v3731
    %v4000 = vunpack.c.h.b16 %v3730
    %v4001 = vunpack.c.h.b16 %v3731
    %v4002 = vunpack.c.l.b16 %v3732
    %v4003 = vunpack.c.l.b16 %v3733
    %v4004 = vunpack.c.h.b16 %v3732
    %v4005 = vunpack.c.h.b16 %v3733
    %v4006 = vunpack.c.l.b16 %v3734
    %v4007 = vunpack.c.l.b16 %v3735
    %v4008 = vunpack.c.h.b16 %v3734
    %v4009 = vunpack.c.h.b16 %v3735
    %v4010 = vunpack.c.l.b16 %v3736
    %v4011 = vunpack.c.l.b16 %v3737
    %v4012 = vunpack.c.h.b16 %v3736
    %v4013 = vunpack.c.h.b16 %v3737
    %v4014 = vunpack.c.l.b16 %v3738
    %v4015 = vunpack.c.l.b16 %v3739
    %v4016 = vunpack.c.h.b16 %v3738
    %v4017 = vunpack.c.h.b16 %v3739
    %v4018 = vunpack.c.l.b16 %v3740
    %v4019 = vunpack.c.l.b16 %v3741
    %v4020 = vunpack.c.h.b16 %v3740
    %v4021 = vunpack.c.h.b16 %v3741
    %v4022 = vunpack.c.l.b16 %v3742
    %v4023 = vunpack.c.l.b16 %v3743
    %v4024 = vunpack.c.h.b16 %v3742
    %v4025 = vunpack.c.h.b16 %v3743
    %v4026 = vunpack.c.l.b16 %v3744
    %v4027 = vunpack.c.l.b16 %v3745
    %v4028 = vunpack.c.h.b16 %v3744
    %v4029 = vunpack.c.h.b16 %v3745
    %v4030 = vunpack.c.l.b16 %v3746
    %v4031 = vunpack.c.l.b16 %v3747
    %v4032 = vunpack.c.h.b16 %v3746
    %v4033 = vunpack.c.h.b16 %v3747
    %v4034 = vunpack.c.l.b16 %v3748
    %v4035 = vunpack.c.l.b16 %v3749
    %v4036 = vunpack.c.h.b16 %v3748
    %v4037 = vunpack.c.h.b16 %v3749
    %v4038 = vunpack.c.l.b16 %v3750
    %v4039 = vunpack.c.l.b16 %v3751
    %v4040 = vunpack.c.h.b16 %v3750
    %v4041 = vunpack.c.h.b16 %v3751
    %v4042 = vunpack.c.l.b16 %v3752
    %v4043 = vunpack.c.l.b16 %v3753
    %v4044 = vunpack.c.h.b16 %v3752
    %v4045 = vunpack.c.h.b16 %v3753
    %v4046 = vunpack.c.l.b16 %v3754
    %v4047 = vunpack.c.l.b16 %v3755
    %v4048 = vunpack.c.h.b16 %v3754
    %v4049 = vunpack.c.h.b16 %v3755
    %v4050 = vpack.c.b16 %v3855, %v3854
    %v4051 = vpack.c.b16 %v3857, %v3856
    %v4052 = vpack.c.b16 %v3859, %v3858
    %v4053 = vpack.c.b16 %v3861, %v3860
    %v4054 = vpack.c.b16 %v3863, %v3862
    %v4055 = vpack.c.b16 %v3865, %v3864
    %v4056 = vpack.c.b16 %v3867, %v3866
    %v4057 = vpack.c.b16 %v3869, %v3868
    %v4058 = vpack.c.b16 %v3871, %v3870
    %v4059 = vpack.c.b16 %v3873, %v3872
    %v4060 = vpack.c.b16 %v3875, %v3874
    %v4061 = vpack.c.b16 %v3877, %v3876
    %v4062 = vpack.c.b16 %v3879, %v3878
    %v4063 = vpack.c.b16 %v3881, %v3880
    %v4064 = vpack.c.b16 %v3883, %v3882
    %v4065 = vpack.c.b16 %v3885, %v3884
    %v4066 = vpack.c.b16 %v3887, %v3886
    %v4067 = vpack.c.b16 %v3889, %v3888
    %v4068 = vpack.c.b16 %v3891, %v3890
    %v4069 = vpack.c.b16 %v3893, %v3892
    %v4070 = vpack.c.b16 %v3895, %v3894
    %v4071 = vpack.c.b16 %v3897, %v3896
    %v4072 = vpack.c.b16 %v3899, %v3898
    %v4073 = vpack.c.b16 %v3901, %v3900
    %v4074 = vpack.c.b16 %v3903, %v3902
    %v4075 = vpack.c.b16 %v3905, %v3904
    %v4076 = vpack.c.b16 %v3907, %v3906
    %v4077 = vpack.c.b16 %v3909, %v3908
    %v4078 = vpack.c.b16 %v3911, %v3910
    %v4079 = vpack.c.b16 %v3913, %v3912
    %v4080 = vpack.c.b16 %v3915, %v3914
    %v4081 = vpack.c.b16 %v3917, %v3916
    %v4082 = vpack.c.b16 %v3919, %v3918
    %v4083 = vpack.c.b16 %v3921, %v3920
    %v4084 = vpack.c.b16 %v3923, %v3922
    %v4085 = vpack.c.b16 %v3925, %v3924
    %v4086 = vpack.c.b16 %v3927, %v3926
    %v4087 = vpack.c.b16 %v3929, %v3928
    %v4088 = vpack.c.b16 %v3931, %v3930
    %v4089 = vpack.c.b16 %v3933, %v3932
    %v4090 = vpack.c.b16 %v3935, %v3934
    %v4091 = vpack.c.b16 %v3937, %v3936
    %v4092 = vpack.c.b16 %v3939, %v3938
    %v4093 = vpack.c.b16 %v3941, %v3940
    %v4094 = vpack.c.b16 %v3943, %v3942
    %v4095 = vpack.c.b16 %v3945, %v3944
    %v4096 = vpack.c.b16 %v3947, %v3946
    %v4097 = vpack.c.b16 %v3949, %v3948
    %v4098 = vpack.c.b16 %v3951, %v3950
    %v4099 = vpack.c.b16 %v3953, %v3952
    %v4100 = vpack.c.b16 %v3955, %v3954
    %v4101 = vpack.c.b16 %v3957, %v3956
    %v4102 = vpack.c.b16 %v3959, %v3958
    %v4103 = vpack.c.b16 %v3961, %v3960
    %v4104 = vpack.c.b16 %v3963, %v3962
    %v4105 = vpack.c.b16 %v3965, %v3964
    %v4106 = vpack.c.b16 %v3967, %v3966
    %v4107 = vpack.c.b16 %v3969, %v3968
    %v4108 = vpack.c.b16 %v3971, %v3970
    %v4109 = vpack.c.b16 %v3973, %v3972
    %v4110 = vpack.c.b16 %v3975, %v3974
    %v4111 = vpack.c.b16 %v3977, %v3976
    %v4112 = vpack.c.b16 %v3979, %v3978
    %v4113 = vpack.c.b16 %v3981, %v3980
    %v4114 = vpack.c.b16 %v3983, %v3982
    %v4115 = vpack.c.b16 %v3985, %v3984
    %v4116 = vpack.c.b16 %v3987, %v3986
    %v4117 = vpack.c.b16 %v3989, %v3988
    %v4118 = vpack.c.b16 %v3991, %v3990
    %v4119 = vpack.c.b16 %v3993, %v3992
    %v4120 = vpack.c.b16 %v3995, %v3994
    %v4121 = vpack.c.b16 %v3997, %v3996
    %v4122 = vpack.c.b16 %v3999, %v3998
    %v4123 = vpack.c.b16 %v4001, %v4000
    %v4124 = vpack.c.b16 %v4003, %v4002
    %v4125 = vpack.c.b16 %v4005, %v4004
    %v4126 = vpack.c.b16 %v4007, %v4006
    %v4127 = vpack.c.b16 %v4009, %v4008
    %v4128 = vpack.c.b16 %v4011, %v4010
    %v4129 = vpack.c.b16 %v4013, %v4012
    %v4130 = vpack.c.b16 %v4015, %v4014
    %v4131 = vpack.c.b16 %v4017, %v4016
    %v4132 = vpack.c.b16 %v4019, %v4018
    %v4133 = vpack.c.b16 %v4021, %v4020
    %v4134 = vpack.c.b16 %v4023, %v4022
    %v4135 = vpack.c.b16 %v4025, %v4024
    %v4136 = vpack.c.b16 %v4027, %v4026
    %v4137 = vpack.c.b16 %v4029, %v4028
    %v4138 = vpack.c.b16 %v4031, %v4030
    %v4139 = vpack.c.b16 %v4033, %v4032
    %v4140 = vpack.c.b16 %v4035, %v4034
    %v4141 = vpack.c.b16 %v4037, %v4036
    %v4142 = vpack.c.b16 %v4039, %v4038
    %v4143 = vpack.c.b16 %v4041, %v4040
    %v4144 = vpack.c.b16 %v4043, %v4042
    %v4145 = vpack.c.b16 %v4045, %v4044
    %v4146 = vpack.c.b16 %v4047, %v4046
    %v4147 = vpack.c.b16 %v4049, %v4048
    %4246 = vst [vmem:[#allocation7] sm:$0xff] %v4050
    %4247 = vst [vmem:[#allocation7 + $0x8] sm:$0xff] %v4051
    %4248 = vst [vmem:[#allocation7 + $0x10] sm:$0xff] %v4052
    %4249 = vst [vmem:[#allocation7 + $0x18] sm:$0xff] %v4053
    %4250 = vst [vmem:[#allocation7 + $0x20] sm:$0xff] %v4054
    %4251 = vst [vmem:[#allocation7 + $0x28] sm:$0xff] %v4055
    %4252 = vst [vmem:[#allocation7 + $0x30] sm:$0xff] %v4056
    %4253 = vst [vmem:[#allocation7 + $0x38] sm:$0xff] %v4057
    %4254 = vst [vmem:[#allocation7 + $0x40] sm:$0xff] %v4058
    %4255 = vst [vmem:[#allocation7 + $0x48] sm:$0xff] %v4059
    %4256 = vst [vmem:[#allocation7 + $0x50] sm:$0xff] %v4060
    %4257 = vst [vmem:[#allocation7 + $0x58] sm:$0xff] %v4061
    %4258 = vst [vmem:[#allocation7 + $0x60] sm:$0xff] %v4062
    %4259 = vst [vmem:[#allocation7 + $0x68] sm:$0xff] %v4063
    %4260 = vst [vmem:[#allocation7 + $0x70] sm:$0xff] %v4064
    %4261 = vst [vmem:[#allocation7 + $0x78] sm:$0xff] %v4065
    %4262 = vst [vmem:[#allocation7 + $0x80] sm:$0xff] %v4066
    %4263 = vst [vmem:[#allocation7 + $0x88] sm:$0xff] %v4067
    %4264 = vst [vmem:[#allocation7 + $0x90] sm:$0xff] %v4068
    %4265 = vst [vmem:[#allocation7 + $0x98] sm:$0xff] %v4069
    %4266 = vst [vmem:[#allocation7 + $0xa0] sm:$0xff] %v4070
    %4267 = vst [vmem:[#allocation7 + $0xa8] sm:$0xff] %v4071
    %4268 = vst [vmem:[#allocation7 + $0xb0] sm:$0xff] %v4072
    %4269 = vst [vmem:[#allocation7 + $0xb8] sm:$0xff] %v4073
    %4270 = vst [vmem:[#allocation7 + $0xc0] sm:$0xff] %v4074
    %4271 = vst [vmem:[#allocation7 + $0xc8] sm:$0xff] %v4075
    %4272 = vst [vmem:[#allocation7 + $0xd0] sm:$0xff] %v4076
    %4273 = vst [vmem:[#allocation7 + $0xd8] sm:$0xff] %v4077
    %4274 = vst [vmem:[#allocation7 + $0xe0] sm:$0xff] %v4078
    %4275 = vst [vmem:[#allocation7 + $0xe8] sm:$0xff] %v4079
    %4276 = vst [vmem:[#allocation7 + $0xf0] sm:$0xff] %v4080
    %4277 = vst [vmem:[#allocation7 + $0xf8] sm:$0xff] %v4081
    %4278 = vst [vmem:[#allocation7 + $0x100] sm:$0xff] %v4082
    %4279 = vst [vmem:[#allocation7 + $0x108] sm:$0xff] %v4083
    %4280 = vst [vmem:[#allocation7 + $0x110] sm:$0xff] %v4084
    %4281 = vst [vmem:[#allocation7 + $0x118] sm:$0xff] %v4085
    %4282 = vst [vmem:[#allocation7 + $0x120] sm:$0xff] %v4086
    %4283 = vst [vmem:[#allocation7 + $0x128] sm:$0xff] %v4087
    %4284 = vst [vmem:[#allocation7 + $0x130] sm:$0xff] %v4088
    %4285 = vst [vmem:[#allocation7 + $0x138] sm:$0xff] %v4089
    %4286 = vst [vmem:[#allocation7 + $0x140] sm:$0xff] %v4090
    %4287 = vst [vmem:[#allocation7 + $0x148] sm:$0xff] %v4091
    %4288 = vst [vmem:[#allocation7 + $0x150] sm:$0xff] %v4092
    %4289 = vst [vmem:[#allocation7 + $0x158] sm:$0xff] %v4093
    %4290 = vst [vmem:[#allocation7 + $0x160] sm:$0xff] %v4094
    %4291 = vst [vmem:[#allocation7 + $0x168] sm:$0xff] %v4095
    %4292 = vst [vmem:[#allocation7 + $0x170] sm:$0xff] %v4096
    %4293 = vst [vmem:[#allocation7 + $0x178] sm:$0xff] %v4097
    %4294 = vst [vmem:[#allocation7 + $0x180] sm:$0xff] %v4098
    %4295 = vst [vmem:[#allocation7 + $0x188] sm:$0xff] %v4099
    %4296 = vst [vmem:[#allocation7 + $0x190] sm:$0xff] %v4100
    %4297 = vst [vmem:[#allocation7 + $0x198] sm:$0xff] %v4101
    %4298 = vst [vmem:[#allocation7 + $0x1a0] sm:$0xff] %v4102
    %4299 = vst [vmem:[#allocation7 + $0x1a8] sm:$0xff] %v4103
    %4300 = vst [vmem:[#allocation7 + $0x1b0] sm:$0xff] %v4104
    %4301 = vst [vmem:[#allocation7 + $0x1b8] sm:$0xff] %v4105
    %4302 = vst [vmem:[#allocation7 + $0x1c0] sm:$0xff] %v4106
    %4303 = vst [vmem:[#allocation7 + $0x1c8] sm:$0xff] %v4107
    %4304 = vst [vmem:[#allocation7 + $0x1d0] sm:$0xff] %v4108
    %4305 = vst [vmem:[#allocation7 + $0x1d8] sm:$0xff] %v4109
    %4306 = vst [vmem:[#allocation7 + $0x1e0] sm:$0xff] %v4110
    %4307 = vst [vmem:[#allocation7 + $0x1e8] sm:$0xff] %v4111
    %4308 = vst [vmem:[#allocation7 + $0x1f0] sm:$0xff] %v4112
    %4309 = vst [vmem:[#allocation7 + $0x1f8] sm:$0xff] %v4113
    %4310 = vst [vmem:[#allocation7 + $0x200] sm:$0xff] %v4114
    %4311 = vst [vmem:[#allocation7 + $0x208] sm:$0xff] %v4115
    %4312 = vst [vmem:[#allocation7 + $0x210] sm:$0xff] %v4116
    %4313 = vst [vmem:[#allocation7 + $0x218] sm:$0xff] %v4117
    %4314 = vst [vmem:[#allocation7 + $0x220] sm:$0xff] %v4118
    %4315 = vst [vmem:[#allocation7 + $0x228] sm:$0xff] %v4119
    %4316 = vst [vmem:[#allocation7 + $0x230] sm:$0xff] %v4120
    %4317 = vst [vmem:[#allocation7 + $0x238] sm:$0xff] %v4121
    %4318 = vst [vmem:[#allocation7 + $0x240] sm:$0xff] %v4122
    %4319 = vst [vmem:[#allocation7 + $0x248] sm:$0xff] %v4123
    %4320 = vst [vmem:[#allocation7 + $0x250] sm:$0xff] %v4124
    %4321 = vst [vmem:[#allocation7 + $0x258] sm:$0xff] %v4125
    %4322 = vst [vmem:[#allocation7 + $0x260] sm:$0xff] %v4126
    %4323 = vst [vmem:[#allocation7 + $0x268] sm:$0xff] %v4127
    %4324 = vst [vmem:[#allocation7 + $0x270] sm:$0xff] %v4128
    %4325 = vst [vmem:[#allocation7 + $0x278] sm:$0xff] %v4129
    %4326 = vst [vmem:[#allocation7 + $0x280] sm:$0xff] %v4130
    %4327 = vst [vmem:[#allocation7 + $0x288] sm:$0xff] %v4131
    %4328 = vst [vmem:[#allocation7 + $0x290] sm:$0xff] %v4132
    %4329 = vst [vmem:[#allocation7 + $0x298] sm:$0xff] %v4133
    %4330 = vst [vmem:[#allocation7 + $0x2a0] sm:$0xff] %v4134
    %4331 = vst [vmem:[#allocation7 + $0x2a8] sm:$0xff] %v4135
    %4332 = vst [vmem:[#allocation7 + $0x2b0] sm:$0xff] %v4136
    %4333 = vst [vmem:[#allocation7 + $0x2b8] sm:$0xff] %v4137
    %4334 = vst [vmem:[#allocation7 + $0x2c0] sm:$0xff] %v4138
    %4335 = vst [vmem:[#allocation7 + $0x2c8] sm:$0xff] %v4139
    %4336 = vst [vmem:[#allocation7 + $0x2d0] sm:$0xff] %v4140
    %4337 = vst [vmem:[#allocation7 + $0x2d8] sm:$0xff] %v4141
    %4338 = vst [vmem:[#allocation7 + $0x2e0] sm:$0xff] %v4142
    %4339 = vst [vmem:[#allocation7 + $0x2e8] sm:$0xff] %v4143
    %4340 = vst [vmem:[#allocation7 + $0x2f0] sm:$0xff] %v4144
    %4341 = vst [vmem:[#allocation7 + $0x2f8] sm:$0xff] %v4145
    %4342 = vst [vmem:[#allocation7 + $0x300] sm:$0xff] %v4146
    %4343 = vst [vmem:[#allocation7 + $0x308] sm:$0xff] %v4147
    // Predicated region
    $region18: #{tpu_custom_call.1} parent=1 // pred_check
      _
    $region19: #{tpu_custom_call.1} parent=1 // pred_check_branch
      %4345 = sbr.rel (0) target = $region21
    $region20: #{tpu_custom_call.1} parent=1 // pred_region
      %s4347 = ssub.s32 12544, 12544
      %4348 = vsyncadd [#allocation4], %s4347
      %s4349 = sshll.u32 [#allocation7], 4
      %s4350 = int_to_ptr.vmem [resolvable:$true] %s4349
      %4355 = dma.vmem_to_hbm [thread:$0]  %s4350, 12544, %s2, [#allocation4], 128, 128, 8
    $region21: #{tpu_custom_call.1} parent=1 // pred_fallthru
      _
    // Predicated region
    $region22: #{tpu_custom_call.1} parent=1 // pred_check
      _
    $region23: #{tpu_custom_call.1} parent=1 // pred_check_branch
      %4357 = sbr.rel (0) target = $region25
    $region24: #{tpu_custom_call.1} parent=1 // pred_region
      %4358 = dma.done [#allocation4], 12544
    $region25: #{tpu_custom_call.1} parent=1 // pred_fallthru
      _
    %4359 = vsyncpa [#allocation3], 1
    %4360 = vsyncpa [#allocation6], 1
    %4361 = vsyncpa [#allocation4], 1

</llo_original>
